<compile_context>
chip_gen: v7x
topology: tpu7x:2x2x1
jax: 0.10.0
libtpu: 0.0.40
codegen_flags: <defaults>
</compile_context>

<pallas_src>
from functools import partial

import jax
import jax.numpy as jnp
from jax import lax
from jax.experimental import pallas as pl
from jax.experimental.pallas import tpu as pltpu


def _round_up(x, m):
    return ((x + m - 1) // m) * m


def _pad_gate_matrix(w, din_p, hid, hid_p):
    """Pad an LSTM gate matrix (din, 4*hid) -> (din_p, 4*hid_p), per-gate."""
    din = w.shape[0]
    w4 = w.reshape(din, 4, hid)
    w4 = jnp.pad(w4, ((0, din_p - din), (0, 0), (0, hid_p - hid)))
    return w4.reshape(din_p, 4 * hid_p)


# ----------------------------------------------------------------------------
# Fused Pallas kernel: all layers (wavefront), all bptt chunks, state in VMEM.
# ----------------------------------------------------------------------------
def _make_wavefront_lstm_kernel(n_layers, T, Bp, Hp):
    """kernel(x, (wih, whh, b) x L, y x L, h_sc, c_sc, gx_sc)."""
    n_steps = T + n_layers - 1  # wavefront length

    def kernel(*refs):
        x_ref = refs[0]
        w_refs = refs[1:1 + 3 * n_layers]
        y_refs = refs[1 + 3 * n_layers:1 + 4 * n_layers]
        h_sc, c_sc, gx_sc = refs[1 + 4 * n_layers:]

        # Zero the recurrent state at the first chunk (== module.reset()).
        @pl.when(pl.program_id(0) == 0)
        def _init():
            h_sc[...] = jnp.zeros_like(h_sc)
            c_sc[...] = jnp.zeros_like(c_sc)

        # Hoisted layer-0 input projection: one large, well-shaped bf16 MXU
        # matmul per chunk, cached bf16 in VMEM scratch.
        wih0_ref, _, b0_ref = w_refs[0:3]
        x_all = x_ref[...].reshape(T * Bp, x_ref.shape[-1])
        gx0 = jnp.dot(x_all, wih0_ref[...],
                      preferred_element_type=jnp.float32) + b0_ref[...]
        gx_sc[...] = gx0.reshape(T, Bp, 4 * Hp).astype(gx_sc.dtype)

        def lstm_cell(gates, c_prev):
            # PyTorch gate order: input, forget, cell(g), output.
            # Hp is a multiple of 128 -> lane-aligned slices (no XLU shifts).
            i_g = jax.nn.sigmoid(gates[:, 0 * Hp:1 * Hp])
            f_g = jax.nn.sigmoid(gates[:, 1 * Hp:2 * Hp])
            g_g = jnp.tanh(gates[:, 2 * Hp:3 * Hp])
            o_g = jax.nn.sigmoid(gates[:, 3 * Hp:4 * Hp])
            c_new = f_g * c_prev + i_g * g_g
            h_new = o_g * jnp.tanh(c_new)
            return h_new, c_new

        def step(s, carry):
            hs, cs = carry          # previous-wavefront-step values, all layers
            new_h, new_c = [], []
            for l in range(n_layers):
                wih_ref, whh_ref, b_ref = w_refs[3 * l:3 * l + 3]
                t = s - l
                valid = jnp.logical_and(t >= 0, t < T)
                t_c = jnp.clip(t, 0, T - 1)
                h_prev, c_prev = hs[l], cs[l]
                rec = jnp.dot(h_prev.astype(whh_ref.dtype), whh_ref[...],
                              preferred_element_type=jnp.float32)
                if l == 0:
                    gates = gx_sc[t_c].astype(jnp.float32) + rec
                else:
                    inp = hs[l - 1]   # == h^{l-1}_t (previous wavefront step)
                    gates = (jnp.dot(inp.astype(wih_ref.dtype), wih_ref[...],
                                     preferred_element_type=jnp.float32)
                             + b_ref[...] + rec)
                h_new, c_new = lstm_cell(gates, c_prev)
                h_sel = jnp.where(valid, h_new, h_prev)
                c_sel = jnp.where(valid, c_new, c_prev)
                # Masked steps rewrite an already-correct slot (t=T-1) or a
                # slot that is overwritten later (t=0), so this store is safe.
                y_refs[l][t_c] = h_sel.astype(y_refs[l].dtype)
                new_h.append(h_sel)
                new_c.append(c_sel)
            return tuple(new_h), tuple(new_c)

        carry0 = (tuple(h_sc[l] for l in range(n_layers)),
                  tuple(c_sc[l] for l in range(n_layers)))
        unroll = n_steps if n_steps <= 8 else 4
        hs_f, cs_f = lax.fori_loop(0, n_steps, step, carry0, unroll=unroll)
        for l in range(n_layers):
            h_sc[l] = hs_f[l]
            c_sc[l] = cs_f[l]

    return kernel


def _run_lstm_stack(x_tm, flat_w, *, bptt, n_layers, Hp):
    """x_tm: (SLp, Bp, Ep) bf16; flat_w: (wih bf16, whh bf16, b f32) per layer."""
    SLp, Bp, Ep = x_tm.shape
    n_chunks = SLp // bptt

    in_specs = [pl.BlockSpec((bptt, Bp, Ep), lambda c: (c, 0, 0))]
    # Weights: whole-array resident in VMEM, single buffer (no per-chunk DMA,
    # no double-buffering -> half the weight footprint of blocked specs).
    in_specs += [pl.BlockSpec(memory_space=pltpu.MemorySpace.VMEM)
                 for _ in flat_w]

    out_specs = tuple(pl.BlockSpec((bptt, Bp, Hp), lambda c: (c, 0, 0))
                      for _ in range(n_layers))
    out_shape = tuple(jax.ShapeDtypeStruct((SLp, Bp, Hp), jnp.bfloat16)
                      for _ in range(n_layers))

    scratch_shapes = [
        pltpu.VMEM((n_layers, Bp, Hp), jnp.float32),    # h state, all layers
        pltpu.VMEM((n_layers, Bp, Hp), jnp.float32),    # c state, all layers
        pltpu.VMEM((bptt, Bp, 4 * Hp), jnp.bfloat16),   # layer-0 x projection
    ]

    # VMEM budget from the actual buffer sizes (weights x1 buffer, pipelined
    # x/y blocks x2, scratch), clamped under this chip's physical capacity.
    w_bytes = sum(int(w.size) * w.dtype.itemsize for w in flat_w)
    x_bytes = 2 * bptt * Bp * Ep * 2
    y_bytes = 2 * n_layers * bptt * Bp * Hp * 2
    s_bytes = (2 * n_layers * Bp * Hp * 4) + (bptt * Bp * 4 * Hp * 2)
    needed = w_bytes + x_bytes + y_bytes + s_bytes
    try:
        cap = int(0.75 * pltpu.get_tpu_info().vmem_capacity_bytes)
    except Exception:
        cap = 48 * 1024 * 1024        # conservative for v7x's 64 MiB VMEM
    vmem_limit = min(max(int(1.5 * needed) + (2 << 20), 16 << 20), cap)

    kernel = _make_wavefront_lstm_kernel(n_layers, bptt, Bp, Hp)

    grid_spec = pltpu.PrefetchScalarGridSpec(
        num_scalar_prefetch=0,
        grid=(n_chunks,),
        in_specs=in_specs,
        out_specs=out_specs,
        scratch_shapes=scratch_shapes,
    )

    return pl.pallas_call(
        kernel,
        out_shape=out_shape,
        grid_spec=grid_spec,
        compiler_params=pltpu.CompilerParams(
            # State carries across chunks -> the grid axis is sequential.
            dimension_semantics=("arbitrary",),
            vmem_limit_bytes=vmem_limit,
        ),
    )(x_tm, *flat_w)


@partial(jax.jit, static_argnames=("bptt", "pad_idx", "hid_sz", "n_layers"))
def _fused_forward(ids_input, emb_p, flat_w, *, bptt, pad_idx, hid_sz, n_layers):
    """Embedding gather + fused wavefront LSTM stack over the full sequence."""
    B, SL = ids_input.shape
    Bp = _round_up(B, 8)                 # sublane tile
    SLp = _round_up(max(SL, 1), bptt)    # every chunk has the same T
    Hp = flat_w[1].shape[0]              # W_hh of layer 0: (Hp, 4Hp)

    ids_p = jnp.pad(ids_input, ((0, Bp - B), (0, SLp - SL)),
                    constant_values=pad_idx)
    # Gather straight into time-major (SLp, Bp, Ep), bf16 MXU operand.
    x_tm = jnp.take(emb_p, ids_p.T, axis=0).astype(jnp.bfloat16)

    ys = _run_lstm_stack(x_tm, flat_w, bptt=bptt, n_layers=n_layers, Hp=Hp)

    # Trim time/batch/hidden padding, back to batch-major (B, SL, H) f32.
    outs = [jnp.transpose(y[:SL, :B, :hid_sz], (1, 0, 2)).astype(jnp.float32)
            for y in ys]
    mask = ids_input == pad_idx
    return outs, mask


# ----------------------------------------------------------------------------
# Concrete RNN core (the `module` argument of TextPlusSentenceEncoder).
# ----------------------------------------------------------------------------
class LSTMTextCore:
    """Embedding + stacked LSTM returning (raw_outputs, outputs, mask)."""

    def __init__(self, vocab_sz, emb_sz, hid_sz, n_layers, pad_idx, key):
        self.vocab_sz, self.emb_sz, self.hid_sz = vocab_sz, emb_sz, hid_sz
        self.n_layers, self.pad_idx = n_layers, pad_idx
        self.Ep = _round_up(emb_sz, 128)
        self.Hp = _round_up(hid_sz, 128)

        keys = jax.random.split(key, 1 + 3 * n_layers)
        emb = 0.1 * jax.random.normal(keys[0], (vocab_sz, emb_sz),
                                      dtype=jnp.float32)
        # bf16 table: halves the gather HBM traffic and feeds the MXU directly.
        self.emb_p = jnp.pad(emb, ((0, 0), (0, self.Ep - emb_sz))
                             ).astype(jnp.bfloat16)

        flat_w = []
        for l in range(n_layers):
            din = emb_sz if l == 0 else hid_sz
            din_p = self.Ep if l == 0 else self.Hp
            scale = 1.0 / jnp.sqrt(jnp.float32(hid_sz))
            w_ih = scale * jax.random.normal(
                keys[1 + 3 * l], (din, 4 * hid_sz), dtype=jnp.float32)
            w_hh = scale * jax.random.normal(
                keys[2 + 3 * l], (hid_sz, 4 * hid_sz), dtype=jnp.float32)
            b = scale * jax.random.normal(
                keys[3 + 3 * l], (1, 4 * hid_sz), dtype=jnp.float32)
            flat_w += [
                _pad_gate_matrix(w_ih, din_p, hid_sz, self.Hp
                                 ).astype(jnp.bfloat16),
                _pad_gate_matrix(w_hh, self.Hp, hid_sz, self.Hp
                                 ).astype(jnp.bfloat16),
                _pad_gate_matrix(b, 1, hid_sz, self.Hp),   # bias kept f32
            ]
        self.flat_w = tuple(flat_w)

    def reset(self, bs=None):
        # Recurrent state lives in VMEM scratch inside the fused kernel and is
        # zeroed at chunk 0 of every forward pass; nothing to do host-side.
        pass

    def forward_sequence(self, ids_input, bptt):
        """Run the fused kernel over the whole sequence (all chunks/layers)."""
        return _fused_forward(ids_input, self.emb_p, self.flat_w,
                              bptt=bptt, pad_idx=self.pad_idx,
                              hid_sz=self.hid_sz, n_layers=self.n_layers)

    def __call__(self, ids_chunk):
        # Per-chunk API kept for fidelity to the PyTorch module interface
        # (the fused encoder path below does not use it).
        outs, mask = self.forward_sequence(ids_chunk, ids_chunk.shape[1])
        return outs, list(outs), mask


# ----------------------------------------------------------------------------
# TextPlusSentenceEncoder — faithful port of the PyTorch forward.
# ----------------------------------------------------------------------------
class TextPlusSentenceEncoder:
    def __init__(self, module, bptt, pad_idx=1):
        self.bptt = bptt
        self.module = module
        self.pad_idx = pad_idx

    def pad_tensor(self, t, bs, val=0.0):
        if t.shape[0] < bs:
            pad = jnp.full((bs - t.shape[0],) + tuple(t.shape[1:]), val, t.dtype)
            return jnp.concatenate([t, pad], axis=0)
        return t

    def concat(self, arrs, bs):
        return [jnp.concatenate([self.pad_tensor(l[si], bs) for l in arrs], axis=1)
                for si in range(len(arrs[0]))]

    def forward(self, inp):
        if len(inp) != 2:
            ids_input, kw_ls = zip(*inp)
            ids_input = jnp.stack(ids_input)
            kw_ls = jnp.stack(kw_ls)
        else:
            ids_input, kw_ls = inp
        bs, sl = ids_input.shape
        self.module.reset()

        # All chunks x all layers run in ONE fused pallas_call; the per-chunk
        # bookkeeping below only re-slices its results to preserve the exact
        # PyTorch return structure.
        layer_outs, mask_full = self.module.forward_sequence(ids_input, self.bptt)

        raw_outputs, outputs, masks = [], [], []
        for i in range(0, sl, self.bptt):
            j = min(i + self.bptt, sl)
            r = [y[:, i:j] for y in layer_outs]
            raw_outputs.append(r)
            outputs.append(r)   # eval-mode dropout p=0 -> identical
            masks.append(self.pad_tensor(mask_full[:, i:j], bs, True))
        return (self.concat(raw_outputs, bs), self.concat(outputs, bs),
                jnp.concatenate(masks, axis=1), kw_ls)


# ----------------------------------------------------------------------------
if __name__ == "__main__":
    key = jax.random.PRNGKey(0)
    k_ids, k_kw, k_params = jax.random.split(key, 3)

    bs, sl, bptt = 2, 8, 4
    vocab_sz, emb_sz, hid_sz, n_layers, pad_idx = 16, 32, 32, 2, 1

    ids_input = jax.random.randint(k_ids, (bs, sl), 0, vocab_sz, dtype=jnp.int32)
    kw_ls = jax.random.normal(k_kw, (bs, 4), dtype=jnp.float32)

    core = LSTMTextCore(vocab_sz, emb_sz, hid_sz, n_layers, pad_idx, k_params)
    enc = TextPlusSentenceEncoder(core, bptt=bptt, pad_idx=pad_idx)

    raw_outs, outs, mask, kw_out = enc.forward((ids_input, kw_ls))

    for arr in raw_outs + outs:
        jax.block_until_ready(arr)
    jax.block_until_ready(mask)
    jax.block_until_ready(kw_out)

    assert len(raw_outs) == n_layers and len(outs) == n_layers
    assert raw_outs[0].shape == (bs, sl, hid_sz)
    assert raw_outs[-1].shape == (bs, sl, hid_sz)
    assert mask.shape == (bs, sl) and mask.dtype == jnp.bool_
    assert kw_out.shape == (bs, 4)
    assert all(bool(jnp.all(jnp.isfinite(a))) for a in raw_outs)

    print("KERNEL_OK")
</pallas_src>

<mosaic_0001>
module attributes {stable_mosaic.version = 11 : i64} {
  func.func @kernel(%arg0: i32, %arg1: memref<4x8x128xbf16, #tpu.memory_space<vmem>>, %arg2: memref<128x512xbf16, #tpu.memory_space<vmem>>, %arg3: memref<128x512xbf16, #tpu.memory_space<vmem>>, %arg4: memref<1x512xf32, #tpu.memory_space<vmem>>, %arg5: memref<128x512xbf16, #tpu.memory_space<vmem>>, %arg6: memref<128x512xbf16, #tpu.memory_space<vmem>>, %arg7: memref<1x512xf32, #tpu.memory_space<vmem>>, %arg8: memref<4x8x128xbf16, #tpu.memory_space<vmem>>, %arg9: memref<4x8x128xbf16, #tpu.memory_space<vmem>>, %arg10: memref<2x8x128xf32, #tpu.memory_space<vmem>>, %arg11: memref<2x8x128xf32, #tpu.memory_space<vmem>>, %arg12: memref<4x8x512xbf16, #tpu.memory_space<vmem>>) attributes {dimension_semantics = [#tpu.dimension_semantics<arbitrary>], iteration_bounds = array<i64: 2>, scalar_prefetch = 0 : i64, scratch_operands = 3 : i64, tpu.core_type = #tpu.core_type<tc>, window_params = [{transform_indices = @transform_0, window_bounds = array<i64: 4, 8, 128>}, {pipeline_mode = #tpu.pipeline_mode<synchronous>, transform_indices = @transform_1, window_bounds = array<i64: 128, 512>}, {pipeline_mode = #tpu.pipeline_mode<synchronous>, transform_indices = @transform_2, window_bounds = array<i64: 128, 512>}, {pipeline_mode = #tpu.pipeline_mode<synchronous>, transform_indices = @transform_3, window_bounds = array<i64: 1, 512>}, {pipeline_mode = #tpu.pipeline_mode<synchronous>, transform_indices = @transform_4, window_bounds = array<i64: 128, 512>}, {pipeline_mode = #tpu.pipeline_mode<synchronous>, transform_indices = @transform_5, window_bounds = array<i64: 128, 512>}, {pipeline_mode = #tpu.pipeline_mode<synchronous>, transform_indices = @transform_6, window_bounds = array<i64: 1, 512>}, {transform_indices = @transform_7, window_bounds = array<i64: 4, 8, 128>}, {transform_indices = @transform_8, window_bounds = array<i64: 4, 8, 128>}]} {
    %c0_i32 = arith.constant 0 : i32
    %0 = arith.cmpi eq, %arg0, %c0_i32 : i32
    %1 = arith.extui %0 : i1 to i32
    %c0_i32_0 = arith.constant 0 : i32
    %2 = arith.cmpi ne, %1, %c0_i32_0 : i32
    scf.if %2 {
      %cst_199 = arith.constant 0.000000e+00 : f32
      %503 = vector.broadcast %cst_199 : f32 to vector<2x8x128xf32>
      %c0_200 = arith.constant 0 : index
      %c0_201 = arith.constant 0 : index
      %c0_202 = arith.constant 0 : index
      %504 = vector.load %arg10[%c0_200, %c0_201, %c0_202] : memref<2x8x128xf32, #tpu.memory_space<vmem>>, vector<2x8x128xf32>
      tpu.vector_store %arg10[%c0_200, %c0_201, %c0_202], %503 {strides = array<i32>} : memref<2x8x128xf32, #tpu.memory_space<vmem>>, vector<2x8x128xf32>,
      %cst_203 = arith.constant 0.000000e+00 : f32
      %505 = vector.broadcast %cst_203 : f32 to vector<2x8x128xf32>
      %c0_204 = arith.constant 0 : index
      %c0_205 = arith.constant 0 : index
      %c0_206 = arith.constant 0 : index
      %506 = vector.load %arg11[%c0_204, %c0_205, %c0_206] : memref<2x8x128xf32, #tpu.memory_space<vmem>>, vector<2x8x128xf32>
      tpu.vector_store %arg11[%c0_204, %c0_205, %c0_206], %505 {strides = array<i32>} : memref<2x8x128xf32, #tpu.memory_space<vmem>>, vector<2x8x128xf32>,
    } else {
    }
    %c0 = arith.constant 0 : index
    %c0_1 = arith.constant 0 : index
    %c0_2 = arith.constant 0 : index
    %3 = vector.load %arg1[%c0, %c0_1, %c0_2] : memref<4x8x128xbf16, #tpu.memory_space<vmem>>, vector<4x8x128xbf16>
    %4 = vector.shape_cast %3 : vector<4x8x128xbf16> to vector<32x128xbf16>
    %c0_3 = arith.constant 0 : index
    %c0_4 = arith.constant 0 : index
    %5 = vector.load %arg2[%c0_3, %c0_4] : memref<128x512xbf16, #tpu.memory_space<vmem>>, vector<128x512xbf16>
    %cst = arith.constant dense<0.000000e+00> : vector<32x512xf32>
    %6 = tpu.matmul %4, %5, %cst {dimension_numbers = #tpu.dot_dimension_numbers<[1], [0], [0], [1], [0, 0, 1, 1], [], []>} : vector<32x128xbf16>, vector<128x512xbf16>, vector<32x512xf32> -> vector<32x512xf32>
    %c0_5 = arith.constant 0 : index
    %c0_6 = arith.constant 0 : index
    %7 = vector.load %arg4[%c0_5, %c0_6] : memref<1x512xf32, #tpu.memory_space<vmem>>, vector<1x512xf32>
    %8 = vector.broadcast %7 : vector<1x512xf32> to vector<32x512xf32>
    %9 = arith.addf %6, %8 : vector<32x512xf32>
    %10 = vector.shape_cast %9 : vector<32x512xf32> to vector<4x8x512xf32>
    %11 = arith.truncf %10 : vector<4x8x512xf32> to vector<4x8x512xbf16>
    %c0_7 = arith.constant 0 : index
    %c0_8 = arith.constant 0 : index
    %c0_9 = arith.constant 0 : index
    %12 = vector.load %arg12[%c0_7, %c0_8, %c0_9] : memref<4x8x512xbf16, #tpu.memory_space<vmem>>, vector<4x8x512xbf16>
    tpu.vector_store %arg12[%c0_7, %c0_8, %c0_9], %11 {strides = array<i32>} : memref<4x8x512xbf16, #tpu.memory_space<vmem>>, vector<4x8x512xbf16>,
    %c0_10 = arith.constant 0 : index
    %c0_11 = arith.constant 0 : index
    %c0_12 = arith.constant 0 : index
    %13 = vector.load %arg10[%c0_10, %c0_11, %c0_12] : memref<2x8x128xf32, #tpu.memory_space<vmem>>, vector<1x8x128xf32>
    %14 = vector.shape_cast %13 : vector<1x8x128xf32> to vector<8x128xf32>
    %c1 = arith.constant 1 : index
    %c0_13 = arith.constant 0 : index
    %c0_14 = arith.constant 0 : index
    %15 = vector.load %arg10[%c1, %c0_13, %c0_14] : memref<2x8x128xf32, #tpu.memory_space<vmem>>, vector<1x8x128xf32>
    %16 = vector.shape_cast %15 : vector<1x8x128xf32> to vector<8x128xf32>
    %c0_15 = arith.constant 0 : index
    %c0_16 = arith.constant 0 : index
    %c0_17 = arith.constant 0 : index
    %17 = vector.load %arg11[%c0_15, %c0_16, %c0_17] : memref<2x8x128xf32, #tpu.memory_space<vmem>>, vector<1x8x128xf32>
    %18 = vector.shape_cast %17 : vector<1x8x128xf32> to vector<8x128xf32>
    %c1_18 = arith.constant 1 : index
    %c0_19 = arith.constant 0 : index
    %c0_20 = arith.constant 0 : index
    %19 = vector.load %arg11[%c1_18, %c0_19, %c0_20] : memref<2x8x128xf32, #tpu.memory_space<vmem>>, vector<1x8x128xf32>
    %20 = vector.shape_cast %19 : vector<1x8x128xf32> to vector<8x128xf32>
    %c0_i32_21 = arith.constant 0 : i32
    %c0_i32_22 = arith.constant 0 : i32
    %21 = arith.subi %c0_i32_21, %c0_i32_22 : i32
    %c0_i32_23 = arith.constant 0 : i32
    %22 = arith.cmpi sge, %21, %c0_i32_23 : i32
    %c4_i32 = arith.constant 4 : i32
    %23 = arith.cmpi slt, %21, %c4_i32 : i32
    %24 = arith.andi %22, %23 : i1
    %c0_i32_24 = arith.constant 0 : i32
    %c3_i32 = arith.constant 3 : i32
    %25 = arith.maxsi %c0_i32_24, %21 : i32
    %26 = arith.minsi %c3_i32, %25 : i32
    %27 = arith.truncf %14 : vector<8x128xf32> to vector<8x128xbf16>
    %c0_25 = arith.constant 0 : index
    %c0_26 = arith.constant 0 : index
    %28 = vector.load %arg3[%c0_25, %c0_26] : memref<128x512xbf16, #tpu.memory_space<vmem>>, vector<128x512xbf16>
    %cst_27 = arith.constant dense<0.000000e+00> : vector<8x512xf32>
    %29 = tpu.matmul %27, %28, %cst_27 {dimension_numbers = #tpu.dot_dimension_numbers<[1], [0], [0], [1], [0, 0, 1, 1], [], []>} : vector<8x128xbf16>, vector<128x512xbf16>, vector<8x512xf32> -> vector<8x512xf32>
    %30 = arith.index_cast %26 : i32 to index
    %c0_28 = arith.constant 0 : index
    %c0_29 = arith.constant 0 : index
    %31 = vector.load %arg12[%30, %c0_28, %c0_29] : memref<4x8x512xbf16, #tpu.memory_space<vmem>>, vector<1x8x512xbf16>
    %32 = vector.shape_cast %31 : vector<1x8x512xbf16> to vector<8x512xbf16>
    %33 = arith.extf %32 : vector<8x512xbf16> to vector<8x512xf32>
    %34 = arith.addf %33, %29 : vector<8x512xf32>
    %35 = vector.extract_strided_slice %34 {offsets = [0, 0], sizes = [8, 128], strides = [1, 1]} : vector<8x512xf32> to vector<8x128xf32>
    %36 = arith.negf %35 : vector<8x128xf32>
    %37 = math.exp %36 : vector<8x128xf32>
    %cst_30 = arith.constant 1.000000e+00 : f32
    %38 = vector.broadcast %cst_30 : f32 to vector<8x128xf32>
    %39 = arith.addf %38, %37 : vector<8x128xf32>
    %40 = arith.divf %38, %39 : vector<8x128xf32>
    %41 = vector.extract_strided_slice %34 {offsets = [0, 128], sizes = [8, 128], strides = [1, 1]} : vector<8x512xf32> to vector<8x128xf32>
    %42 = arith.negf %41 : vector<8x128xf32>
    %43 = math.exp %42 : vector<8x128xf32>
    %cst_31 = arith.constant 1.000000e+00 : f32
    %44 = vector.broadcast %cst_31 : f32 to vector<8x128xf32>
    %45 = arith.addf %44, %43 : vector<8x128xf32>
    %46 = arith.divf %44, %45 : vector<8x128xf32>
    %47 = vector.extract_strided_slice %34 {offsets = [0, 256], sizes = [8, 128], strides = [1, 1]} : vector<8x512xf32> to vector<8x128xf32>
    %48 = math.tanh %47 : vector<8x128xf32>
    %49 = vector.extract_strided_slice %34 {offsets = [0, 384], sizes = [8, 128], strides = [1, 1]} : vector<8x512xf32> to vector<8x128xf32>
    %50 = arith.negf %49 : vector<8x128xf32>
    %51 = math.exp %50 : vector<8x128xf32>
    %cst_32 = arith.constant 1.000000e+00 : f32
    %52 = vector.broadcast %cst_32 : f32 to vector<8x128xf32>
    %53 = arith.addf %52, %51 : vector<8x128xf32>
    %54 = arith.divf %52, %53 : vector<8x128xf32>
    %55 = arith.mulf %46, %18 : vector<8x128xf32>
    %56 = arith.mulf %40, %48 : vector<8x128xf32>
    %57 = arith.addf %55, %56 : vector<8x128xf32>
    %58 = math.tanh %57 : vector<8x128xf32>
    %59 = arith.mulf %54, %58 : vector<8x128xf32>
    %60 = arith.select %24, %59, %14 : vector<8x128xf32>
    %61 = arith.select %24, %57, %18 : vector<8x128xf32>
    %62 = arith.truncf %60 : vector<8x128xf32> to vector<8x128xbf16>
    %63 = arith.index_cast %26 : i32 to index
    %c0_33 = arith.constant 0 : index
    %c0_34 = arith.constant 0 : index
    %64 = vector.load %arg8[%63, %c0_33, %c0_34] : memref<4x8x128xbf16, #tpu.memory_space<vmem>>, vector<1x8x128xbf16>
    %65 = vector.shape_cast %64 : vector<1x8x128xbf16> to vector<8x128xbf16>
    %66 = vector.shape_cast %62 : vector<8x128xbf16> to vector<1x8x128xbf16>
    tpu.vector_store %arg8[%63, %c0_33, %c0_34], %66 {strides = array<i32>} : memref<4x8x128xbf16, #tpu.memory_space<vmem>>, vector<1x8x128xbf16>,
    %c1_i32 = arith.constant 1 : i32
    %67 = arith.subi %c0_i32_21, %c1_i32 : i32
    %c0_i32_35 = arith.constant 0 : i32
    %68 = arith.cmpi sge, %67, %c0_i32_35 : i32
    %c4_i32_36 = arith.constant 4 : i32
    %69 = arith.cmpi slt, %67, %c4_i32_36 : i32
    %70 = arith.andi %68, %69 : i1
    %c0_i32_37 = arith.constant 0 : i32
    %c3_i32_38 = arith.constant 3 : i32
    %71 = arith.maxsi %c0_i32_37, %67 : i32
    %72 = arith.minsi %c3_i32_38, %71 : i32
    %73 = arith.truncf %16 : vector<8x128xf32> to vector<8x128xbf16>
    %c0_39 = arith.constant 0 : index
    %c0_40 = arith.constant 0 : index
    %74 = vector.load %arg6[%c0_39, %c0_40] : memref<128x512xbf16, #tpu.memory_space<vmem>>, vector<128x512xbf16>
    %cst_41 = arith.constant dense<0.000000e+00> : vector<8x512xf32>
    %75 = tpu.matmul %73, %74, %cst_41 {dimension_numbers = #tpu.dot_dimension_numbers<[1], [0], [0], [1], [0, 0, 1, 1], [], []>} : vector<8x128xbf16>, vector<128x512xbf16>, vector<8x512xf32> -> vector<8x512xf32>
    %76 = arith.truncf %14 : vector<8x128xf32> to vector<8x128xbf16>
    %c0_42 = arith.constant 0 : index
    %c0_43 = arith.constant 0 : index
    %77 = vector.load %arg5[%c0_42, %c0_43] : memref<128x512xbf16, #tpu.memory_space<vmem>>, vector<128x512xbf16>
    %cst_44 = arith.constant dense<0.000000e+00> : vector<8x512xf32>
    %78 = tpu.matmul %76, %77, %cst_44 {dimension_numbers = #tpu.dot_dimension_numbers<[1], [0], [0], [1], [0, 0, 1, 1], [], []>} : vector<8x128xbf16>, vector<128x512xbf16>, vector<8x512xf32> -> vector<8x512xf32>
    %c0_45 = arith.constant 0 : index
    %c0_46 = arith.constant 0 : index
    %79 = vector.load %arg7[%c0_45, %c0_46] : memref<1x512xf32, #tpu.memory_space<vmem>>, vector<1x512xf32>
    %80 = vector.broadcast %79 : vector<1x512xf32> to vector<8x512xf32>
    %81 = arith.addf %78, %80 : vector<8x512xf32>
    %82 = arith.addf %81, %75 : vector<8x512xf32>
    %83 = vector.extract_strided_slice %82 {offsets = [0, 0], sizes = [8, 128], strides = [1, 1]} : vector<8x512xf32> to vector<8x128xf32>
    %84 = arith.negf %83 : vector<8x128xf32>
    %85 = math.exp %84 : vector<8x128xf32>
    %cst_47 = arith.constant 1.000000e+00 : f32
    %86 = vector.broadcast %cst_47 : f32 to vector<8x128xf32>
    %87 = arith.addf %86, %85 : vector<8x128xf32>
    %88 = arith.divf %86, %87 : vector<8x128xf32>
    %89 = vector.extract_strided_slice %82 {offsets = [0, 128], sizes = [8, 128], strides = [1, 1]} : vector<8x512xf32> to vector<8x128xf32>
    %90 = arith.negf %89 : vector<8x128xf32>
    %91 = math.exp %90 : vector<8x128xf32>
    %cst_48 = arith.constant 1.000000e+00 : f32
    %92 = vector.broadcast %cst_48 : f32 to vector<8x128xf32>
    %93 = arith.addf %92, %91 : vector<8x128xf32>
    %94 = arith.divf %92, %93 : vector<8x128xf32>
    %95 = vector.extract_strided_slice %82 {offsets = [0, 256], sizes = [8, 128], strides = [1, 1]} : vector<8x512xf32> to vector<8x128xf32>
    %96 = math.tanh %95 : vector<8x128xf32>
    %97 = vector.extract_strided_slice %82 {offsets = [0, 384], sizes = [8, 128], strides = [1, 1]} : vector<8x512xf32> to vector<8x128xf32>
    %98 = arith.negf %97 : vector<8x128xf32>
    %99 = math.exp %98 : vector<8x128xf32>
    %cst_49 = arith.constant 1.000000e+00 : f32
    %100 = vector.broadcast %cst_49 : f32 to vector<8x128xf32>
    %101 = arith.addf %100, %99 : vector<8x128xf32>
    %102 = arith.divf %100, %101 : vector<8x128xf32>
    %103 = arith.mulf %94, %20 : vector<8x128xf32>
    %104 = arith.mulf %88, %96 : vector<8x128xf32>
    %105 = arith.addf %103, %104 : vector<8x128xf32>
    %106 = math.tanh %105 : vector<8x128xf32>
    %107 = arith.mulf %102, %106 : vector<8x128xf32>
    %108 = arith.select %70, %107, %16 : vector<8x128xf32>
    %109 = arith.select %70, %105, %20 : vector<8x128xf32>
    %110 = arith.truncf %108 : vector<8x128xf32> to vector<8x128xbf16>
    %111 = arith.index_cast %72 : i32 to index
    %c0_50 = arith.constant 0 : index
    %c0_51 = arith.constant 0 : index
    %112 = vector.load %arg9[%111, %c0_50, %c0_51] : memref<4x8x128xbf16, #tpu.memory_space<vmem>>, vector<1x8x128xbf16>
    %113 = vector.shape_cast %112 : vector<1x8x128xbf16> to vector<8x128xbf16>
    %114 = vector.shape_cast %110 : vector<8x128xbf16> to vector<1x8x128xbf16>
    tpu.vector_store %arg9[%111, %c0_50, %c0_51], %114 {strides = array<i32>} : memref<4x8x128xbf16, #tpu.memory_space<vmem>>, vector<1x8x128xbf16>,
    %c1_i32_52 = arith.constant 1 : i32
    %c0_i32_53 = arith.constant 0 : i32
    %115 = arith.subi %c1_i32_52, %c0_i32_53 : i32
    %c0_i32_54 = arith.constant 0 : i32
    %116 = arith.cmpi sge, %115, %c0_i32_54 : i32
    %c4_i32_55 = arith.constant 4 : i32
    %117 = arith.cmpi slt, %115, %c4_i32_55 : i32
    %118 = arith.andi %116, %117 : i1
    %c0_i32_56 = arith.constant 0 : i32
    %c3_i32_57 = arith.constant 3 : i32
    %119 = arith.maxsi %c0_i32_56, %115 : i32
    %120 = arith.minsi %c3_i32_57, %119 : i32
    %121 = arith.truncf %60 : vector<8x128xf32> to vector<8x128xbf16>
    %c0_58 = arith.constant 0 : index
    %c0_59 = arith.constant 0 : index
    %122 = vector.load %arg3[%c0_58, %c0_59] : memref<128x512xbf16, #tpu.memory_space<vmem>>, vector<128x512xbf16>
    %cst_60 = arith.constant dense<0.000000e+00> : vector<8x512xf32>
    %123 = tpu.matmul %121, %122, %cst_60 {dimension_numbers = #tpu.dot_dimension_numbers<[1], [0], [0], [1], [0, 0, 1, 1], [], []>} : vector<8x128xbf16>, vector<128x512xbf16>, vector<8x512xf32> -> vector<8x512xf32>
    %124 = arith.index_cast %120 : i32 to index
    %c0_61 = arith.constant 0 : index
    %c0_62 = arith.constant 0 : index
    %125 = vector.load %arg12[%124, %c0_61, %c0_62] : memref<4x8x512xbf16, #tpu.memory_space<vmem>>, vector<1x8x512xbf16>
    %126 = vector.shape_cast %125 : vector<1x8x512xbf16> to vector<8x512xbf16>
    %127 = arith.extf %126 : vector<8x512xbf16> to vector<8x512xf32>
    %128 = arith.addf %127, %123 : vector<8x512xf32>
    %129 = vector.extract_strided_slice %128 {offsets = [0, 0], sizes = [8, 128], strides = [1, 1]} : vector<8x512xf32> to vector<8x128xf32>
    %130 = arith.negf %129 : vector<8x128xf32>
    %131 = math.exp %130 : vector<8x128xf32>
    %cst_63 = arith.constant 1.000000e+00 : f32
    %132 = vector.broadcast %cst_63 : f32 to vector<8x128xf32>
    %133 = arith.addf %132, %131 : vector<8x128xf32>
    %134 = arith.divf %132, %133 : vector<8x128xf32>
    %135 = vector.extract_strided_slice %128 {offsets = [0, 128], sizes = [8, 128], strides = [1, 1]} : vector<8x512xf32> to vector<8x128xf32>
    %136 = arith.negf %135 : vector<8x128xf32>
    %137 = math.exp %136 : vector<8x128xf32>
    %cst_64 = arith.constant 1.000000e+00 : f32
    %138 = vector.broadcast %cst_64 : f32 to vector<8x128xf32>
    %139 = arith.addf %138, %137 : vector<8x128xf32>
    %140 = arith.divf %138, %139 : vector<8x128xf32>
    %141 = vector.extract_strided_slice %128 {offsets = [0, 256], sizes = [8, 128], strides = [1, 1]} : vector<8x512xf32> to vector<8x128xf32>
    %142 = math.tanh %141 : vector<8x128xf32>
    %143 = vector.extract_strided_slice %128 {offsets = [0, 384], sizes = [8, 128], strides = [1, 1]} : vector<8x512xf32> to vector<8x128xf32>
    %144 = arith.negf %143 : vector<8x128xf32>
    %145 = math.exp %144 : vector<8x128xf32>
    %cst_65 = arith.constant 1.000000e+00 : f32
    %146 = vector.broadcast %cst_65 : f32 to vector<8x128xf32>
    %147 = arith.addf %146, %145 : vector<8x128xf32>
    %148 = arith.divf %146, %147 : vector<8x128xf32>
    %149 = arith.mulf %140, %61 : vector<8x128xf32>
    %150 = arith.mulf %134, %142 : vector<8x128xf32>
    %151 = arith.addf %149, %150 : vector<8x128xf32>
    %152 = math.tanh %151 : vector<8x128xf32>
    %153 = arith.mulf %148, %152 : vector<8x128xf32>
    %154 = arith.select %118, %153, %60 : vector<8x128xf32>
    %155 = arith.select %118, %151, %61 : vector<8x128xf32>
    %156 = arith.truncf %154 : vector<8x128xf32> to vector<8x128xbf16>
    %157 = arith.index_cast %120 : i32 to index
    %c0_66 = arith.constant 0 : index
    %c0_67 = arith.constant 0 : index
    %158 = vector.load %arg8[%157, %c0_66, %c0_67] : memref<4x8x128xbf16, #tpu.memory_space<vmem>>, vector<1x8x128xbf16>
    %159 = vector.shape_cast %158 : vector<1x8x128xbf16> to vector<8x128xbf16>
    %160 = vector.shape_cast %156 : vector<8x128xbf16> to vector<1x8x128xbf16>
    tpu.vector_store %arg8[%157, %c0_66, %c0_67], %160 {strides = array<i32>} : memref<4x8x128xbf16, #tpu.memory_space<vmem>>, vector<1x8x128xbf16>,
    %c1_i32_68 = arith.constant 1 : i32
    %161 = arith.subi %c1_i32_52, %c1_i32_68 : i32
    %c0_i32_69 = arith.constant 0 : i32
    %162 = arith.cmpi sge, %161, %c0_i32_69 : i32
    %c4_i32_70 = arith.constant 4 : i32
    %163 = arith.cmpi slt, %161, %c4_i32_70 : i32
    %164 = arith.andi %162, %163 : i1
    %c0_i32_71 = arith.constant 0 : i32
    %c3_i32_72 = arith.constant 3 : i32
    %165 = arith.maxsi %c0_i32_71, %161 : i32
    %166 = arith.minsi %c3_i32_72, %165 : i32
    %167 = arith.truncf %108 : vector<8x128xf32> to vector<8x128xbf16>
    %c0_73 = arith.constant 0 : index
    %c0_74 = arith.constant 0 : index
    %168 = vector.load %arg6[%c0_73, %c0_74] : memref<128x512xbf16, #tpu.memory_space<vmem>>, vector<128x512xbf16>
    %cst_75 = arith.constant dense<0.000000e+00> : vector<8x512xf32>
    %169 = tpu.matmul %167, %168, %cst_75 {dimension_numbers = #tpu.dot_dimension_numbers<[1], [0], [0], [1], [0, 0, 1, 1], [], []>} : vector<8x128xbf16>, vector<128x512xbf16>, vector<8x512xf32> -> vector<8x512xf32>
    %170 = arith.truncf %60 : vector<8x128xf32> to vector<8x128xbf16>
    %c0_76 = arith.constant 0 : index
    %c0_77 = arith.constant 0 : index
    %171 = vector.load %arg5[%c0_76, %c0_77] : memref<128x512xbf16, #tpu.memory_space<vmem>>, vector<128x512xbf16>
    %cst_78 = arith.constant dense<0.000000e+00> : vector<8x512xf32>
    %172 = tpu.matmul %170, %171, %cst_78 {dimension_numbers = #tpu.dot_dimension_numbers<[1], [0], [0], [1], [0, 0, 1, 1], [], []>} : vector<8x128xbf16>, vector<128x512xbf16>, vector<8x512xf32> -> vector<8x512xf32>
    %c0_79 = arith.constant 0 : index
    %c0_80 = arith.constant 0 : index
    %173 = vector.load %arg7[%c0_79, %c0_80] : memref<1x512xf32, #tpu.memory_space<vmem>>, vector<1x512xf32>
    %174 = vector.broadcast %173 : vector<1x512xf32> to vector<8x512xf32>
    %175 = arith.addf %172, %174 : vector<8x512xf32>
    %176 = arith.addf %175, %169 : vector<8x512xf32>
    %177 = vector.extract_strided_slice %176 {offsets = [0, 0], sizes = [8, 128], strides = [1, 1]} : vector<8x512xf32> to vector<8x128xf32>
    %178 = arith.negf %177 : vector<8x128xf32>
    %179 = math.exp %178 : vector<8x128xf32>
    %cst_81 = arith.constant 1.000000e+00 : f32
    %180 = vector.broadcast %cst_81 : f32 to vector<8x128xf32>
    %181 = arith.addf %180, %179 : vector<8x128xf32>
    %182 = arith.divf %180, %181 : vector<8x128xf32>
    %183 = vector.extract_strided_slice %176 {offsets = [0, 128], sizes = [8, 128], strides = [1, 1]} : vector<8x512xf32> to vector<8x128xf32>
    %184 = arith.negf %183 : vector<8x128xf32>
    %185 = math.exp %184 : vector<8x128xf32>
    %cst_82 = arith.constant 1.000000e+00 : f32
    %186 = vector.broadcast %cst_82 : f32 to vector<8x128xf32>
    %187 = arith.addf %186, %185 : vector<8x128xf32>
    %188 = arith.divf %186, %187 : vector<8x128xf32>
    %189 = vector.extract_strided_slice %176 {offsets = [0, 256], sizes = [8, 128], strides = [1, 1]} : vector<8x512xf32> to vector<8x128xf32>
    %190 = math.tanh %189 : vector<8x128xf32>
    %191 = vector.extract_strided_slice %176 {offsets = [0, 384], sizes = [8, 128], strides = [1, 1]} : vector<8x512xf32> to vector<8x128xf32>
    %192 = arith.negf %191 : vector<8x128xf32>
    %193 = math.exp %192 : vector<8x128xf32>
    %cst_83 = arith.constant 1.000000e+00 : f32
    %194 = vector.broadcast %cst_83 : f32 to vector<8x128xf32>
    %195 = arith.addf %194, %193 : vector<8x128xf32>
    %196 = arith.divf %194, %195 : vector<8x128xf32>
    %197 = arith.mulf %188, %109 : vector<8x128xf32>
    %198 = arith.mulf %182, %190 : vector<8x128xf32>
    %199 = arith.addf %197, %198 : vector<8x128xf32>
    %200 = math.tanh %199 : vector<8x128xf32>
    %201 = arith.mulf %196, %200 : vector<8x128xf32>
    %202 = arith.select %164, %201, %108 : vector<8x128xf32>
    %203 = arith.select %164, %199, %109 : vector<8x128xf32>
    %204 = arith.truncf %202 : vector<8x128xf32> to vector<8x128xbf16>
    %205 = arith.index_cast %166 : i32 to index
    %c0_84 = arith.constant 0 : index
    %c0_85 = arith.constant 0 : index
    %206 = vector.load %arg9[%205, %c0_84, %c0_85] : memref<4x8x128xbf16, #tpu.memory_space<vmem>>, vector<1x8x128xbf16>
    %207 = vector.shape_cast %206 : vector<1x8x128xbf16> to vector<8x128xbf16>
    %208 = vector.shape_cast %204 : vector<8x128xbf16> to vector<1x8x128xbf16>
    tpu.vector_store %arg9[%205, %c0_84, %c0_85], %208 {strides = array<i32>} : memref<4x8x128xbf16, #tpu.memory_space<vmem>>, vector<1x8x128xbf16>,
    %c2_i32 = arith.constant 2 : i32
    %c0_i32_86 = arith.constant 0 : i32
    %209 = arith.subi %c2_i32, %c0_i32_86 : i32
    %c0_i32_87 = arith.constant 0 : i32
    %210 = arith.cmpi sge, %209, %c0_i32_87 : i32
    %c4_i32_88 = arith.constant 4 : i32
    %211 = arith.cmpi slt, %209, %c4_i32_88 : i32
    %212 = arith.andi %210, %211 : i1
    %c0_i32_89 = arith.constant 0 : i32
    %c3_i32_90 = arith.constant 3 : i32
    %213 = arith.maxsi %c0_i32_89, %209 : i32
    %214 = arith.minsi %c3_i32_90, %213 : i32
    %215 = arith.truncf %154 : vector<8x128xf32> to vector<8x128xbf16>
    %c0_91 = arith.constant 0 : index
    %c0_92 = arith.constant 0 : index
    %216 = vector.load %arg3[%c0_91, %c0_92] : memref<128x512xbf16, #tpu.memory_space<vmem>>, vector<128x512xbf16>
    %cst_93 = arith.constant dense<0.000000e+00> : vector<8x512xf32>
    %217 = tpu.matmul %215, %216, %cst_93 {dimension_numbers = #tpu.dot_dimension_numbers<[1], [0], [0], [1], [0, 0, 1, 1], [], []>} : vector<8x128xbf16>, vector<128x512xbf16>, vector<8x512xf32> -> vector<8x512xf32>
    %218 = arith.index_cast %214 : i32 to index
    %c0_94 = arith.constant 0 : index
    %c0_95 = arith.constant 0 : index
    %219 = vector.load %arg12[%218, %c0_94, %c0_95] : memref<4x8x512xbf16, #tpu.memory_space<vmem>>, vector<1x8x512xbf16>
    %220 = vector.shape_cast %219 : vector<1x8x512xbf16> to vector<8x512xbf16>
    %221 = arith.extf %220 : vector<8x512xbf16> to vector<8x512xf32>
    %222 = arith.addf %221, %217 : vector<8x512xf32>
    %223 = vector.extract_strided_slice %222 {offsets = [0, 0], sizes = [8, 128], strides = [1, 1]} : vector<8x512xf32> to vector<8x128xf32>
    %224 = arith.negf %223 : vector<8x128xf32>
    %225 = math.exp %224 : vector<8x128xf32>
    %cst_96 = arith.constant 1.000000e+00 : f32
    %226 = vector.broadcast %cst_96 : f32 to vector<8x128xf32>
    %227 = arith.addf %226, %225 : vector<8x128xf32>
    %228 = arith.divf %226, %227 : vector<8x128xf32>
    %229 = vector.extract_strided_slice %222 {offsets = [0, 128], sizes = [8, 128], strides = [1, 1]} : vector<8x512xf32> to vector<8x128xf32>
    %230 = arith.negf %229 : vector<8x128xf32>
    %231 = math.exp %230 : vector<8x128xf32>
    %cst_97 = arith.constant 1.000000e+00 : f32
    %232 = vector.broadcast %cst_97 : f32 to vector<8x128xf32>
    %233 = arith.addf %232, %231 : vector<8x128xf32>
    %234 = arith.divf %232, %233 : vector<8x128xf32>
    %235 = vector.extract_strided_slice %222 {offsets = [0, 256], sizes = [8, 128], strides = [1, 1]} : vector<8x512xf32> to vector<8x128xf32>
    %236 = math.tanh %235 : vector<8x128xf32>
    %237 = vector.extract_strided_slice %222 {offsets = [0, 384], sizes = [8, 128], strides = [1, 1]} : vector<8x512xf32> to vector<8x128xf32>
    %238 = arith.negf %237 : vector<8x128xf32>
    %239 = math.exp %238 : vector<8x128xf32>
    %cst_98 = arith.constant 1.000000e+00 : f32
    %240 = vector.broadcast %cst_98 : f32 to vector<8x128xf32>
    %241 = arith.addf %240, %239 : vector<8x128xf32>
    %242 = arith.divf %240, %241 : vector<8x128xf32>
    %243 = arith.mulf %234, %155 : vector<8x128xf32>
    %244 = arith.mulf %228, %236 : vector<8x128xf32>
    %245 = arith.addf %243, %244 : vector<8x128xf32>
    %246 = math.tanh %245 : vector<8x128xf32>
    %247 = arith.mulf %242, %246 : vector<8x128xf32>
    %248 = arith.select %212, %247, %154 : vector<8x128xf32>
    %249 = arith.select %212, %245, %155 : vector<8x128xf32>
    %250 = arith.truncf %248 : vector<8x128xf32> to vector<8x128xbf16>
    %251 = arith.index_cast %214 : i32 to index
    %c0_99 = arith.constant 0 : index
    %c0_100 = arith.constant 0 : index
    %252 = vector.load %arg8[%251, %c0_99, %c0_100] : memref<4x8x128xbf16, #tpu.memory_space<vmem>>, vector<1x8x128xbf16>
    %253 = vector.shape_cast %252 : vector<1x8x128xbf16> to vector<8x128xbf16>
    %254 = vector.shape_cast %250 : vector<8x128xbf16> to vector<1x8x128xbf16>
    tpu.vector_store %arg8[%251, %c0_99, %c0_100], %254 {strides = array<i32>} : memref<4x8x128xbf16, #tpu.memory_space<vmem>>, vector<1x8x128xbf16>,
    %c1_i32_101 = arith.constant 1 : i32
    %255 = arith.subi %c2_i32, %c1_i32_101 : i32
    %c0_i32_102 = arith.constant 0 : i32
    %256 = arith.cmpi sge, %255, %c0_i32_102 : i32
    %c4_i32_103 = arith.constant 4 : i32
    %257 = arith.cmpi slt, %255, %c4_i32_103 : i32
    %258 = arith.andi %256, %257 : i1
    %c0_i32_104 = arith.constant 0 : i32
    %c3_i32_105 = arith.constant 3 : i32
    %259 = arith.maxsi %c0_i32_104, %255 : i32
    %260 = arith.minsi %c3_i32_105, %259 : i32
    %261 = arith.truncf %202 : vector<8x128xf32> to vector<8x128xbf16>
    %c0_106 = arith.constant 0 : index
    %c0_107 = arith.constant 0 : index
    %262 = vector.load %arg6[%c0_106, %c0_107] : memref<128x512xbf16, #tpu.memory_space<vmem>>, vector<128x512xbf16>
    %cst_108 = arith.constant dense<0.000000e+00> : vector<8x512xf32>
    %263 = tpu.matmul %261, %262, %cst_108 {dimension_numbers = #tpu.dot_dimension_numbers<[1], [0], [0], [1], [0, 0, 1, 1], [], []>} : vector<8x128xbf16>, vector<128x512xbf16>, vector<8x512xf32> -> vector<8x512xf32>
    %264 = arith.truncf %154 : vector<8x128xf32> to vector<8x128xbf16>
    %c0_109 = arith.constant 0 : index
    %c0_110 = arith.constant 0 : index
    %265 = vector.load %arg5[%c0_109, %c0_110] : memref<128x512xbf16, #tpu.memory_space<vmem>>, vector<128x512xbf16>
    %cst_111 = arith.constant dense<0.000000e+00> : vector<8x512xf32>
    %266 = tpu.matmul %264, %265, %cst_111 {dimension_numbers = #tpu.dot_dimension_numbers<[1], [0], [0], [1], [0, 0, 1, 1], [], []>} : vector<8x128xbf16>, vector<128x512xbf16>, vector<8x512xf32> -> vector<8x512xf32>
    %c0_112 = arith.constant 0 : index
    %c0_113 = arith.constant 0 : index
    %267 = vector.load %arg7[%c0_112, %c0_113] : memref<1x512xf32, #tpu.memory_space<vmem>>, vector<1x512xf32>
    %268 = vector.broadcast %267 : vector<1x512xf32> to vector<8x512xf32>
    %269 = arith.addf %266, %268 : vector<8x512xf32>
    %270 = arith.addf %269, %263 : vector<8x512xf32>
    %271 = vector.extract_strided_slice %270 {offsets = [0, 0], sizes = [8, 128], strides = [1, 1]} : vector<8x512xf32> to vector<8x128xf32>
    %272 = arith.negf %271 : vector<8x128xf32>
    %273 = math.exp %272 : vector<8x128xf32>
    %cst_114 = arith.constant 1.000000e+00 : f32
    %274 = vector.broadcast %cst_114 : f32 to vector<8x128xf32>
    %275 = arith.addf %274, %273 : vector<8x128xf32>
    %276 = arith.divf %274, %275 : vector<8x128xf32>
    %277 = vector.extract_strided_slice %270 {offsets = [0, 128], sizes = [8, 128], strides = [1, 1]} : vector<8x512xf32> to vector<8x128xf32>
    %278 = arith.negf %277 : vector<8x128xf32>
    %279 = math.exp %278 : vector<8x128xf32>
    %cst_115 = arith.constant 1.000000e+00 : f32
    %280 = vector.broadcast %cst_115 : f32 to vector<8x128xf32>
    %281 = arith.addf %280, %279 : vector<8x128xf32>
    %282 = arith.divf %280, %281 : vector<8x128xf32>
    %283 = vector.extract_strided_slice %270 {offsets = [0, 256], sizes = [8, 128], strides = [1, 1]} : vector<8x512xf32> to vector<8x128xf32>
    %284 = math.tanh %283 : vector<8x128xf32>
    %285 = vector.extract_strided_slice %270 {offsets = [0, 384], sizes = [8, 128], strides = [1, 1]} : vector<8x512xf32> to vector<8x128xf32>
    %286 = arith.negf %285 : vector<8x128xf32>
    %287 = math.exp %286 : vector<8x128xf32>
    %cst_116 = arith.constant 1.000000e+00 : f32
    %288 = vector.broadcast %cst_116 : f32 to vector<8x128xf32>
    %289 = arith.addf %288, %287 : vector<8x128xf32>
    %290 = arith.divf %288, %289 : vector<8x128xf32>
    %291 = arith.mulf %282, %203 : vector<8x128xf32>
    %292 = arith.mulf %276, %284 : vector<8x128xf32>
    %293 = arith.addf %291, %292 : vector<8x128xf32>
    %294 = math.tanh %293 : vector<8x128xf32>
    %295 = arith.mulf %290, %294 : vector<8x128xf32>
    %296 = arith.select %258, %295, %202 : vector<8x128xf32>
    %297 = arith.select %258, %293, %203 : vector<8x128xf32>
    %298 = arith.truncf %296 : vector<8x128xf32> to vector<8x128xbf16>
    %299 = arith.index_cast %260 : i32 to index
    %c0_117 = arith.constant 0 : index
    %c0_118 = arith.constant 0 : index
    %300 = vector.load %arg9[%299, %c0_117, %c0_118] : memref<4x8x128xbf16, #tpu.memory_space<vmem>>, vector<1x8x128xbf16>
    %301 = vector.shape_cast %300 : vector<1x8x128xbf16> to vector<8x128xbf16>
    %302 = vector.shape_cast %298 : vector<8x128xbf16> to vector<1x8x128xbf16>
    tpu.vector_store %arg9[%299, %c0_117, %c0_118], %302 {strides = array<i32>} : memref<4x8x128xbf16, #tpu.memory_space<vmem>>, vector<1x8x128xbf16>,
    %c3_i32_119 = arith.constant 3 : i32
    %c0_i32_120 = arith.constant 0 : i32
    %303 = arith.subi %c3_i32_119, %c0_i32_120 : i32
    %c0_i32_121 = arith.constant 0 : i32
    %304 = arith.cmpi sge, %303, %c0_i32_121 : i32
    %c4_i32_122 = arith.constant 4 : i32
    %305 = arith.cmpi slt, %303, %c4_i32_122 : i32
    %306 = arith.andi %304, %305 : i1
    %c0_i32_123 = arith.constant 0 : i32
    %c3_i32_124 = arith.constant 3 : i32
    %307 = arith.maxsi %c0_i32_123, %303 : i32
    %308 = arith.minsi %c3_i32_124, %307 : i32
    %309 = arith.truncf %248 : vector<8x128xf32> to vector<8x128xbf16>
    %c0_125 = arith.constant 0 : index
    %c0_126 = arith.constant 0 : index
    %310 = vector.load %arg3[%c0_125, %c0_126] : memref<128x512xbf16, #tpu.memory_space<vmem>>, vector<128x512xbf16>
    %cst_127 = arith.constant dense<0.000000e+00> : vector<8x512xf32>
    %311 = tpu.matmul %309, %310, %cst_127 {dimension_numbers = #tpu.dot_dimension_numbers<[1], [0], [0], [1], [0, 0, 1, 1], [], []>} : vector<8x128xbf16>, vector<128x512xbf16>, vector<8x512xf32> -> vector<8x512xf32>
    %312 = arith.index_cast %308 : i32 to index
    %c0_128 = arith.constant 0 : index
    %c0_129 = arith.constant 0 : index
    %313 = vector.load %arg12[%312, %c0_128, %c0_129] : memref<4x8x512xbf16, #tpu.memory_space<vmem>>, vector<1x8x512xbf16>
    %314 = vector.shape_cast %313 : vector<1x8x512xbf16> to vector<8x512xbf16>
    %315 = arith.extf %314 : vector<8x512xbf16> to vector<8x512xf32>
    %316 = arith.addf %315, %311 : vector<8x512xf32>
    %317 = vector.extract_strided_slice %316 {offsets = [0, 0], sizes = [8, 128], strides = [1, 1]} : vector<8x512xf32> to vector<8x128xf32>
    %318 = arith.negf %317 : vector<8x128xf32>
    %319 = math.exp %318 : vector<8x128xf32>
    %cst_130 = arith.constant 1.000000e+00 : f32
    %320 = vector.broadcast %cst_130 : f32 to vector<8x128xf32>
    %321 = arith.addf %320, %319 : vector<8x128xf32>
    %322 = arith.divf %320, %321 : vector<8x128xf32>
    %323 = vector.extract_strided_slice %316 {offsets = [0, 128], sizes = [8, 128], strides = [1, 1]} : vector<8x512xf32> to vector<8x128xf32>
    %324 = arith.negf %323 : vector<8x128xf32>
    %325 = math.exp %324 : vector<8x128xf32>
    %cst_131 = arith.constant 1.000000e+00 : f32
    %326 = vector.broadcast %cst_131 : f32 to vector<8x128xf32>
    %327 = arith.addf %326, %325 : vector<8x128xf32>
    %328 = arith.divf %326, %327 : vector<8x128xf32>
    %329 = vector.extract_strided_slice %316 {offsets = [0, 256], sizes = [8, 128], strides = [1, 1]} : vector<8x512xf32> to vector<8x128xf32>
    %330 = math.tanh %329 : vector<8x128xf32>
    %331 = vector.extract_strided_slice %316 {offsets = [0, 384], sizes = [8, 128], strides = [1, 1]} : vector<8x512xf32> to vector<8x128xf32>
    %332 = arith.negf %331 : vector<8x128xf32>
    %333 = math.exp %332 : vector<8x128xf32>
    %cst_132 = arith.constant 1.000000e+00 : f32
    %334 = vector.broadcast %cst_132 : f32 to vector<8x128xf32>
    %335 = arith.addf %334, %333 : vector<8x128xf32>
    %336 = arith.divf %334, %335 : vector<8x128xf32>
    %337 = arith.mulf %328, %249 : vector<8x128xf32>
    %338 = arith.mulf %322, %330 : vector<8x128xf32>
    %339 = arith.addf %337, %338 : vector<8x128xf32>
    %340 = math.tanh %339 : vector<8x128xf32>
    %341 = arith.mulf %336, %340 : vector<8x128xf32>
    %342 = arith.select %306, %341, %248 : vector<8x128xf32>
    %343 = arith.select %306, %339, %249 : vector<8x128xf32>
    %344 = arith.truncf %342 : vector<8x128xf32> to vector<8x128xbf16>
    %345 = arith.index_cast %308 : i32 to index
    %c0_133 = arith.constant 0 : index
    %c0_134 = arith.constant 0 : index
    %346 = vector.load %arg8[%345, %c0_133, %c0_134] : memref<4x8x128xbf16, #tpu.memory_space<vmem>>, vector<1x8x128xbf16>
    %347 = vector.shape_cast %346 : vector<1x8x128xbf16> to vector<8x128xbf16>
    %348 = vector.shape_cast %344 : vector<8x128xbf16> to vector<1x8x128xbf16>
    tpu.vector_store %arg8[%345, %c0_133, %c0_134], %348 {strides = array<i32>} : memref<4x8x128xbf16, #tpu.memory_space<vmem>>, vector<1x8x128xbf16>,
    %c1_i32_135 = arith.constant 1 : i32
    %349 = arith.subi %c3_i32_119, %c1_i32_135 : i32
    %c0_i32_136 = arith.constant 0 : i32
    %350 = arith.cmpi sge, %349, %c0_i32_136 : i32
    %c4_i32_137 = arith.constant 4 : i32
    %351 = arith.cmpi slt, %349, %c4_i32_137 : i32
    %352 = arith.andi %350, %351 : i1
    %c0_i32_138 = arith.constant 0 : i32
    %c3_i32_139 = arith.constant 3 : i32
    %353 = arith.maxsi %c0_i32_138, %349 : i32
    %354 = arith.minsi %c3_i32_139, %353 : i32
    %355 = arith.truncf %296 : vector<8x128xf32> to vector<8x128xbf16>
    %c0_140 = arith.constant 0 : index
    %c0_141 = arith.constant 0 : index
    %356 = vector.load %arg6[%c0_140, %c0_141] : memref<128x512xbf16, #tpu.memory_space<vmem>>, vector<128x512xbf16>
    %cst_142 = arith.constant dense<0.000000e+00> : vector<8x512xf32>
    %357 = tpu.matmul %355, %356, %cst_142 {dimension_numbers = #tpu.dot_dimension_numbers<[1], [0], [0], [1], [0, 0, 1, 1], [], []>} : vector<8x128xbf16>, vector<128x512xbf16>, vector<8x512xf32> -> vector<8x512xf32>
    %358 = arith.truncf %248 : vector<8x128xf32> to vector<8x128xbf16>
    %c0_143 = arith.constant 0 : index
    %c0_144 = arith.constant 0 : index
    %359 = vector.load %arg5[%c0_143, %c0_144] : memref<128x512xbf16, #tpu.memory_space<vmem>>, vector<128x512xbf16>
    %cst_145 = arith.constant dense<0.000000e+00> : vector<8x512xf32>
    %360 = tpu.matmul %358, %359, %cst_145 {dimension_numbers = #tpu.dot_dimension_numbers<[1], [0], [0], [1], [0, 0, 1, 1], [], []>} : vector<8x128xbf16>, vector<128x512xbf16>, vector<8x512xf32> -> vector<8x512xf32>
    %c0_146 = arith.constant 0 : index
    %c0_147 = arith.constant 0 : index
    %361 = vector.load %arg7[%c0_146, %c0_147] : memref<1x512xf32, #tpu.memory_space<vmem>>, vector<1x512xf32>
    %362 = vector.broadcast %361 : vector<1x512xf32> to vector<8x512xf32>
    %363 = arith.addf %360, %362 : vector<8x512xf32>
    %364 = arith.addf %363, %357 : vector<8x512xf32>
    %365 = vector.extract_strided_slice %364 {offsets = [0, 0], sizes = [8, 128], strides = [1, 1]} : vector<8x512xf32> to vector<8x128xf32>
    %366 = arith.negf %365 : vector<8x128xf32>
    %367 = math.exp %366 : vector<8x128xf32>
    %cst_148 = arith.constant 1.000000e+00 : f32
    %368 = vector.broadcast %cst_148 : f32 to vector<8x128xf32>
    %369 = arith.addf %368, %367 : vector<8x128xf32>
    %370 = arith.divf %368, %369 : vector<8x128xf32>
    %371 = vector.extract_strided_slice %364 {offsets = [0, 128], sizes = [8, 128], strides = [1, 1]} : vector<8x512xf32> to vector<8x128xf32>
    %372 = arith.negf %371 : vector<8x128xf32>
    %373 = math.exp %372 : vector<8x128xf32>
    %cst_149 = arith.constant 1.000000e+00 : f32
    %374 = vector.broadcast %cst_149 : f32 to vector<8x128xf32>
    %375 = arith.addf %374, %373 : vector<8x128xf32>
    %376 = arith.divf %374, %375 : vector<8x128xf32>
    %377 = vector.extract_strided_slice %364 {offsets = [0, 256], sizes = [8, 128], strides = [1, 1]} : vector<8x512xf32> to vector<8x128xf32>
    %378 = math.tanh %377 : vector<8x128xf32>
    %379 = vector.extract_strided_slice %364 {offsets = [0, 384], sizes = [8, 128], strides = [1, 1]} : vector<8x512xf32> to vector<8x128xf32>
    %380 = arith.negf %379 : vector<8x128xf32>
    %381 = math.exp %380 : vector<8x128xf32>
    %cst_150 = arith.constant 1.000000e+00 : f32
    %382 = vector.broadcast %cst_150 : f32 to vector<8x128xf32>
    %383 = arith.addf %382, %381 : vector<8x128xf32>
    %384 = arith.divf %382, %383 : vector<8x128xf32>
    %385 = arith.mulf %376, %297 : vector<8x128xf32>
    %386 = arith.mulf %370, %378 : vector<8x128xf32>
    %387 = arith.addf %385, %386 : vector<8x128xf32>
    %388 = math.tanh %387 : vector<8x128xf32>
    %389 = arith.mulf %384, %388 : vector<8x128xf32>
    %390 = arith.select %352, %389, %296 : vector<8x128xf32>
    %391 = arith.select %352, %387, %297 : vector<8x128xf32>
    %392 = arith.truncf %390 : vector<8x128xf32> to vector<8x128xbf16>
    %393 = arith.index_cast %354 : i32 to index
    %c0_151 = arith.constant 0 : index
    %c0_152 = arith.constant 0 : index
    %394 = vector.load %arg9[%393, %c0_151, %c0_152] : memref<4x8x128xbf16, #tpu.memory_space<vmem>>, vector<1x8x128xbf16>
    %395 = vector.shape_cast %394 : vector<1x8x128xbf16> to vector<8x128xbf16>
    %396 = vector.shape_cast %392 : vector<8x128xbf16> to vector<1x8x128xbf16>
    tpu.vector_store %arg9[%393, %c0_151, %c0_152], %396 {strides = array<i32>} : memref<4x8x128xbf16, #tpu.memory_space<vmem>>, vector<1x8x128xbf16>,
    %c4_i32_153 = arith.constant 4 : i32
    %c0_i32_154 = arith.constant 0 : i32
    %397 = arith.subi %c4_i32_153, %c0_i32_154 : i32
    %c0_i32_155 = arith.constant 0 : i32
    %398 = arith.cmpi sge, %397, %c0_i32_155 : i32
    %c4_i32_156 = arith.constant 4 : i32
    %399 = arith.cmpi slt, %397, %c4_i32_156 : i32
    %400 = arith.andi %398, %399 : i1
    %c0_i32_157 = arith.constant 0 : i32
    %c3_i32_158 = arith.constant 3 : i32
    %401 = arith.maxsi %c0_i32_157, %397 : i32
    %402 = arith.minsi %c3_i32_158, %401 : i32
    %403 = arith.truncf %342 : vector<8x128xf32> to vector<8x128xbf16>
    %c0_159 = arith.constant 0 : index
    %c0_160 = arith.constant 0 : index
    %404 = vector.load %arg3[%c0_159, %c0_160] : memref<128x512xbf16, #tpu.memory_space<vmem>>, vector<128x512xbf16>
    %cst_161 = arith.constant dense<0.000000e+00> : vector<8x512xf32>
    %405 = tpu.matmul %403, %404, %cst_161 {dimension_numbers = #tpu.dot_dimension_numbers<[1], [0], [0], [1], [0, 0, 1, 1], [], []>} : vector<8x128xbf16>, vector<128x512xbf16>, vector<8x512xf32> -> vector<8x512xf32>
    %406 = arith.index_cast %402 : i32 to index
    %c0_162 = arith.constant 0 : index
    %c0_163 = arith.constant 0 : index
    %407 = vector.load %arg12[%406, %c0_162, %c0_163] : memref<4x8x512xbf16, #tpu.memory_space<vmem>>, vector<1x8x512xbf16>
    %408 = vector.shape_cast %407 : vector<1x8x512xbf16> to vector<8x512xbf16>
    %409 = arith.extf %408 : vector<8x512xbf16> to vector<8x512xf32>
    %410 = arith.addf %409, %405 : vector<8x512xf32>
    %411 = vector.extract_strided_slice %410 {offsets = [0, 0], sizes = [8, 128], strides = [1, 1]} : vector<8x512xf32> to vector<8x128xf32>
    %412 = arith.negf %411 : vector<8x128xf32>
    %413 = math.exp %412 : vector<8x128xf32>
    %cst_164 = arith.constant 1.000000e+00 : f32
    %414 = vector.broadcast %cst_164 : f32 to vector<8x128xf32>
    %415 = arith.addf %414, %413 : vector<8x128xf32>
    %416 = arith.divf %414, %415 : vector<8x128xf32>
    %417 = vector.extract_strided_slice %410 {offsets = [0, 128], sizes = [8, 128], strides = [1, 1]} : vector<8x512xf32> to vector<8x128xf32>
    %418 = arith.negf %417 : vector<8x128xf32>
    %419 = math.exp %418 : vector<8x128xf32>
    %cst_165 = arith.constant 1.000000e+00 : f32
    %420 = vector.broadcast %cst_165 : f32 to vector<8x128xf32>
    %421 = arith.addf %420, %419 : vector<8x128xf32>
    %422 = arith.divf %420, %421 : vector<8x128xf32>
    %423 = vector.extract_strided_slice %410 {offsets = [0, 256], sizes = [8, 128], strides = [1, 1]} : vector<8x512xf32> to vector<8x128xf32>
    %424 = math.tanh %423 : vector<8x128xf32>
    %425 = vector.extract_strided_slice %410 {offsets = [0, 384], sizes = [8, 128], strides = [1, 1]} : vector<8x512xf32> to vector<8x128xf32>
    %426 = arith.negf %425 : vector<8x128xf32>
    %427 = math.exp %426 : vector<8x128xf32>
    %cst_166 = arith.constant 1.000000e+00 : f32
    %428 = vector.broadcast %cst_166 : f32 to vector<8x128xf32>
    %429 = arith.addf %428, %427 : vector<8x128xf32>
    %430 = arith.divf %428, %429 : vector<8x128xf32>
    %431 = arith.mulf %422, %343 : vector<8x128xf32>
    %432 = arith.mulf %416, %424 : vector<8x128xf32>
    %433 = arith.addf %431, %432 : vector<8x128xf32>
    %434 = math.tanh %433 : vector<8x128xf32>
    %435 = arith.mulf %430, %434 : vector<8x128xf32>
    %436 = arith.select %400, %435, %342 : vector<8x128xf32>
    %437 = arith.select %400, %433, %343 : vector<8x128xf32>
    %438 = arith.truncf %436 : vector<8x128xf32> to vector<8x128xbf16>
    %439 = arith.index_cast %402 : i32 to index
    %c0_167 = arith.constant 0 : index
    %c0_168 = arith.constant 0 : index
    %440 = vector.load %arg8[%439, %c0_167, %c0_168] : memref<4x8x128xbf16, #tpu.memory_space<vmem>>, vector<1x8x128xbf16>
    %441 = vector.shape_cast %440 : vector<1x8x128xbf16> to vector<8x128xbf16>
    %442 = vector.shape_cast %438 : vector<8x128xbf16> to vector<1x8x128xbf16>
    tpu.vector_store %arg8[%439, %c0_167, %c0_168], %442 {strides = array<i32>} : memref<4x8x128xbf16, #tpu.memory_space<vmem>>, vector<1x8x128xbf16>,
    %c1_i32_169 = arith.constant 1 : i32
    %443 = arith.subi %c4_i32_153, %c1_i32_169 : i32
    %c0_i32_170 = arith.constant 0 : i32
    %444 = arith.cmpi sge, %443, %c0_i32_170 : i32
    %c4_i32_171 = arith.constant 4 : i32
    %445 = arith.cmpi slt, %443, %c4_i32_171 : i32
    %446 = arith.andi %444, %445 : i1
    %c0_i32_172 = arith.constant 0 : i32
    %c3_i32_173 = arith.constant 3 : i32
    %447 = arith.maxsi %c0_i32_172, %443 : i32
    %448 = arith.minsi %c3_i32_173, %447 : i32
    %449 = arith.truncf %390 : vector<8x128xf32> to vector<8x128xbf16>
    %c0_174 = arith.constant 0 : index
    %c0_175 = arith.constant 0 : index
    %450 = vector.load %arg6[%c0_174, %c0_175] : memref<128x512xbf16, #tpu.memory_space<vmem>>, vector<128x512xbf16>
    %cst_176 = arith.constant dense<0.000000e+00> : vector<8x512xf32>
    %451 = tpu.matmul %449, %450, %cst_176 {dimension_numbers = #tpu.dot_dimension_numbers<[1], [0], [0], [1], [0, 0, 1, 1], [], []>} : vector<8x128xbf16>, vector<128x512xbf16>, vector<8x512xf32> -> vector<8x512xf32>
    %452 = arith.truncf %342 : vector<8x128xf32> to vector<8x128xbf16>
    %c0_177 = arith.constant 0 : index
    %c0_178 = arith.constant 0 : index
    %453 = vector.load %arg5[%c0_177, %c0_178] : memref<128x512xbf16, #tpu.memory_space<vmem>>, vector<128x512xbf16>
    %cst_179 = arith.constant dense<0.000000e+00> : vector<8x512xf32>
    %454 = tpu.matmul %452, %453, %cst_179 {dimension_numbers = #tpu.dot_dimension_numbers<[1], [0], [0], [1], [0, 0, 1, 1], [], []>} : vector<8x128xbf16>, vector<128x512xbf16>, vector<8x512xf32> -> vector<8x512xf32>
    %c0_180 = arith.constant 0 : index
    %c0_181 = arith.constant 0 : index
    %455 = vector.load %arg7[%c0_180, %c0_181] : memref<1x512xf32, #tpu.memory_space<vmem>>, vector<1x512xf32>
    %456 = vector.broadcast %455 : vector<1x512xf32> to vector<8x512xf32>
    %457 = arith.addf %454, %456 : vector<8x512xf32>
    %458 = arith.addf %457, %451 : vector<8x512xf32>
    %459 = vector.extract_strided_slice %458 {offsets = [0, 0], sizes = [8, 128], strides = [1, 1]} : vector<8x512xf32> to vector<8x128xf32>
    %460 = arith.negf %459 : vector<8x128xf32>
    %461 = math.exp %460 : vector<8x128xf32>
    %cst_182 = arith.constant 1.000000e+00 : f32
    %462 = vector.broadcast %cst_182 : f32 to vector<8x128xf32>
    %463 = arith.addf %462, %461 : vector<8x128xf32>
    %464 = arith.divf %462, %463 : vector<8x128xf32>
    %465 = vector.extract_strided_slice %458 {offsets = [0, 128], sizes = [8, 128], strides = [1, 1]} : vector<8x512xf32> to vector<8x128xf32>
    %466 = arith.negf %465 : vector<8x128xf32>
    %467 = math.exp %466 : vector<8x128xf32>
    %cst_183 = arith.constant 1.000000e+00 : f32
    %468 = vector.broadcast %cst_183 : f32 to vector<8x128xf32>
    %469 = arith.addf %468, %467 : vector<8x128xf32>
    %470 = arith.divf %468, %469 : vector<8x128xf32>
    %471 = vector.extract_strided_slice %458 {offsets = [0, 256], sizes = [8, 128], strides = [1, 1]} : vector<8x512xf32> to vector<8x128xf32>
    %472 = math.tanh %471 : vector<8x128xf32>
    %473 = vector.extract_strided_slice %458 {offsets = [0, 384], sizes = [8, 128], strides = [1, 1]} : vector<8x512xf32> to vector<8x128xf32>
    %474 = arith.negf %473 : vector<8x128xf32>
    %475 = math.exp %474 : vector<8x128xf32>
    %cst_184 = arith.constant 1.000000e+00 : f32
    %476 = vector.broadcast %cst_184 : f32 to vector<8x128xf32>
    %477 = arith.addf %476, %475 : vector<8x128xf32>
    %478 = arith.divf %476, %477 : vector<8x128xf32>
    %479 = arith.mulf %470, %391 : vector<8x128xf32>
    %480 = arith.mulf %464, %472 : vector<8x128xf32>
    %481 = arith.addf %479, %480 : vector<8x128xf32>
    %482 = math.tanh %481 : vector<8x128xf32>
    %483 = arith.mulf %478, %482 : vector<8x128xf32>
    %484 = arith.select %446, %483, %390 : vector<8x128xf32>
    %485 = arith.select %446, %481, %391 : vector<8x128xf32>
    %486 = arith.truncf %484 : vector<8x128xf32> to vector<8x128xbf16>
    %487 = arith.index_cast %448 : i32 to index
    %c0_185 = arith.constant 0 : index
    %c0_186 = arith.constant 0 : index
    %488 = vector.load %arg9[%487, %c0_185, %c0_186] : memref<4x8x128xbf16, #tpu.memory_space<vmem>>, vector<1x8x128xbf16>
    %489 = vector.shape_cast %488 : vector<1x8x128xbf16> to vector<8x128xbf16>
    %490 = vector.shape_cast %486 : vector<8x128xbf16> to vector<1x8x128xbf16>
    tpu.vector_store %arg9[%487, %c0_185, %c0_186], %490 {strides = array<i32>} : memref<4x8x128xbf16, #tpu.memory_space<vmem>>, vector<1x8x128xbf16>,
    %c5_i32 = arith.constant 5 : i32
    %c0_187 = arith.constant 0 : index
    %c0_188 = arith.constant 0 : index
    %c0_189 = arith.constant 0 : index
    %491 = vector.load %arg10[%c0_187, %c0_188, %c0_189] : memref<2x8x128xf32, #tpu.memory_space<vmem>>, vector<1x8x128xf32>
    %492 = vector.shape_cast %491 : vector<1x8x128xf32> to vector<8x128xf32>
    %493 = vector.shape_cast %436 : vector<8x128xf32> to vector<1x8x128xf32>
    tpu.vector_store %arg10[%c0_187, %c0_188, %c0_189], %493 {strides = array<i32>} : memref<2x8x128xf32, #tpu.memory_space<vmem>>, vector<1x8x128xf32>,
    %c0_190 = arith.constant 0 : index
    %c0_191 = arith.constant 0 : index
    %c0_192 = arith.constant 0 : index
    %494 = vector.load %arg11[%c0_190, %c0_191, %c0_192] : memref<2x8x128xf32, #tpu.memory_space<vmem>>, vector<1x8x128xf32>
    %495 = vector.shape_cast %494 : vector<1x8x128xf32> to vector<8x128xf32>
    %496 = vector.shape_cast %437 : vector<8x128xf32> to vector<1x8x128xf32>
    tpu.vector_store %arg11[%c0_190, %c0_191, %c0_192], %496 {strides = array<i32>} : memref<2x8x128xf32, #tpu.memory_space<vmem>>, vector<1x8x128xf32>,
    %c1_193 = arith.constant 1 : index
    %c0_194 = arith.constant 0 : index
    %c0_195 = arith.constant 0 : index
    %497 = vector.load %arg10[%c1_193, %c0_194, %c0_195] : memref<2x8x128xf32, #tpu.memory_space<vmem>>, vector<1x8x128xf32>
    %498 = vector.shape_cast %497 : vector<1x8x128xf32> to vector<8x128xf32>
    %499 = vector.shape_cast %484 : vector<8x128xf32> to vector<1x8x128xf32>
    tpu.vector_store %arg10[%c1_193, %c0_194, %c0_195], %499 {strides = array<i32>} : memref<2x8x128xf32, #tpu.memory_space<vmem>>, vector<1x8x128xf32>,
    %c1_196 = arith.constant 1 : index
    %c0_197 = arith.constant 0 : index
    %c0_198 = arith.constant 0 : index
    %500 = vector.load %arg11[%c1_196, %c0_197, %c0_198] : memref<2x8x128xf32, #tpu.memory_space<vmem>>, vector<1x8x128xf32>
    %501 = vector.shape_cast %500 : vector<1x8x128xf32> to vector<8x128xf32>
    %502 = vector.shape_cast %485 : vector<8x128xf32> to vector<1x8x128xf32>
    tpu.vector_store %arg11[%c1_196, %c0_197, %c0_198], %502 {strides = array<i32>} : memref<2x8x128xf32, #tpu.memory_space<vmem>>, vector<1x8x128xf32>,
    return
  }
  func.func @transform_0(%arg0: i32) -> (i32, i32, i32) {
    %c0_i32 = arith.constant 0 : i32
    %c0_i32_0 = arith.constant 0 : i32
    %c0_i32_1 = arith.constant 0 : i32
    return %arg0, %c0_i32, %c0_i32_0 : i32, i32, i32
  }
  func.func @transform_1(%arg0: i32) -> (i32, i32) {
    %c0_i32 = arith.constant 0 : i32
    %c0_i32_0 = arith.constant 0 : i32
    %c0_i32_1 = arith.constant 0 : i32
    return %c0_i32, %c0_i32_0 : i32, i32
  }
  func.func @transform_2(%arg0: i32) -> (i32, i32) {
    %c0_i32 = arith.constant 0 : i32
    %c0_i32_0 = arith.constant 0 : i32
    %c0_i32_1 = arith.constant 0 : i32
    return %c0_i32, %c0_i32_0 : i32, i32
  }
  func.func @transform_3(%arg0: i32) -> (i32, i32) {
    %c0_i32 = arith.constant 0 : i32
    %c0_i32_0 = arith.constant 0 : i32
    %c0_i32_1 = arith.constant 0 : i32
    return %c0_i32, %c0_i32_0 : i32, i32
  }
  func.func @transform_4(%arg0: i32) -> (i32, i32) {
    %c0_i32 = arith.constant 0 : i32
    %c0_i32_0 = arith.constant 0 : i32
    %c0_i32_1 = arith.constant 0 : i32
    return %c0_i32, %c0_i32_0 : i32, i32
  }
  func.func @transform_5(%arg0: i32) -> (i32, i32) {
    %c0_i32 = arith.constant 0 : i32
    %c0_i32_0 = arith.constant 0 : i32
    %c0_i32_1 = arith.constant 0 : i32
    return %c0_i32, %c0_i32_0 : i32, i32
  }
  func.func @transform_6(%arg0: i32) -> (i32, i32) {
    %c0_i32 = arith.constant 0 : i32
    %c0_i32_0 = arith.constant 0 : i32
    %c0_i32_1 = arith.constant 0 : i32
    return %c0_i32, %c0_i32_0 : i32, i32
  }
  func.func @transform_7(%arg0: i32) -> (i32, i32, i32) {
    %c0_i32 = arith.constant 0 : i32
    %c0_i32_0 = arith.constant 0 : i32
    %c0_i32_1 = arith.constant 0 : i32
    return %arg0, %c0_i32, %c0_i32_0 : i32, i32, i32
  }
  func.func @transform_8(%arg0: i32) -> (i32, i32, i32) {
    %c0_i32 = arith.constant 0 : i32
    %c0_i32_0 = arith.constant 0 : i32
    %c0_i32_1 = arith.constant 0 : i32
    return %arg0, %c0_i32, %c0_i32_0 : i32, i32, i32
  }
}

</mosaic_0001>

<llo_original>
// kernel: _fused_forward.1
$region0: #{_fused_forward.1}
  #allocation0 [shape = 'u32[]', space=smem, size = 0x4, offset = 0x4, fixed_abs, tag = 'smem constant byte address 0x4 - core index']
  #allocation1 [shape = 'u32[144,128]{1,0:T(1,128)}', space=vmem, size = 0x12000, scoped, tag = 'internal scratch']
  #allocation2 [shape = 'f32[2,8,128]{2,1,0:T(8,128)}', space=vmem, size = 0x2000, scoped, tag = 'scratch operand']
  #allocation3 [shape = 'f32[2,8,128]{2,1,0:T(8,128)}', space=vmem, size = 0x2000, scoped, tag = 'scratch operand']
  #allocation4 [shape = 'bf16[4,8,512]{2,1,0:T(8,128)(2,1)}', space=vmem, size = 0x8000, scoped, tag = 'scratch operand']
  %s0 = inlined_call_operand.vmem [shape: bf16[8,8,128], index: 0, kind: input, shape index: {}]
  %s1 = inlined_call_operand.vmem [shape: bf16[128,512], index: 1, kind: input, shape index: {}]
  %s2 = inlined_call_operand.hbm [shape: bf16[128,512], index: 2, kind: input, shape index: {}]
  %s3 = inlined_call_operand.vmem [shape: f32[1,512], index: 3, kind: input, shape index: {}]
  %s4 = inlined_call_operand.hbm [shape: bf16[128,512], index: 4, kind: input, shape index: {}]
  %s5 = inlined_call_operand.hbm [shape: bf16[128,512], index: 5, kind: input, shape index: {}]
  %s6 = inlined_call_operand.vmem [shape: f32[1,512], index: 6, kind: input, shape index: {}]
  %s7 = inlined_call_operand.vmem [shape: bf16[8,8,128], index: 7, kind: output, shape index: {0}]
  %s8 = inlined_call_operand.vmem [shape: bf16[8,8,128], index: 8, kind: output, shape index: {1}]
  %9 = xla_tuple %s7, %s8
  %s10 = sld [smem:[#allocation0]]
  $region85: #{_fused_forward.1} parent=0
    _
  %s12 = ssub.s32 1, %s10
  %s13 = scalar_select 0, %s12, %s10
  $region1: #{_fused_forward.1} parent=0
    #allocation5 [shape = 'u8[131072]{0}', space=vmem, size = 0x20000, scoped, tag = 'input window, operand 2, single buffered']
    #allocation6 [shape = 's32[2]{0}', space=sflag, size = 0x8, scoped, tag = 'scoped memory for _fused_forward.1']
    #allocation7 [shape = 'u8[131072]{0}', space=vmem, size = 0x20000, scoped, tag = 'input window, operand 4, single buffered']
    #allocation8 [shape = 's32[1]{0}', space=sflag, size = 0x4, scoped, tag = 'scoped memory for _fused_forward.1']
    #allocation9 [shape = 'u8[131072]{0}', space=vmem, size = 0x20000, scoped, tag = 'input window, operand 5, single buffered']
    %14 = vsyncpa [#allocation6], 0
    %15 = vsyncpa [#allocation8], 0
    loop: start=0, step=1, limit=4
    $region2: #{_fused_forward.1} parent=1 // loop_pre_header
      _
    $region3: #{_fused_forward.1} parent=1 // loop_header
      %s17 = sphi 0, %s21
      %p18 = scmp.ge.s32.totalorder %s17, 4
      %s27 = sphi 0, %s29
      %s30 = sphi 0, %s27
      %s31 = sphi 0, %s30
      %s47 = sphi 0, %s31
      %s51 = sphi 0, %s51
      %s53 = sphi 0, %s51
      %s54 = sphi 0, %s53
      %s68 = sphi 0, %s54
      %s72 = sphi 0, %s72
      %s74 = sphi 0, %s72
      %s75 = sphi 0, %s74
      %s89 = sphi 0, %s75
      %s93 = sphi 0, %s93
      %s95 = sphi 0, %s93
      %s96 = sphi 0, %s95
      %s110 = sphi 0, %s96
      %s114 = sphi 0, %s114
      %s116 = sphi 0, %s114
      %s117 = sphi 0, %s116
      %s131 = sphi 0, %s117
      %s135 = sphi 0, %s135
      %s137 = sphi 0, %s135
      %s138 = sphi 0, %s137
      %s152 = sphi 0, %s138
      %s156 = sphi 0, %s156
      %s158 = sphi 0, %s156
      %s159 = sphi 0, %s158
      %s173 = sphi 0, %s159
      %s179 = sphi 0, %s181
      %s182 = sphi 0, %s179
      %s183 = sphi 0, %s182
      %s199 = sphi 0, %s183
      %s205 = sphi 0, %s207
      %s208 = sphi 0, %s205
      %s209 = sphi 0, %s208
      %s225 = sphi 0, %s209
    $region4: #{_fused_forward.1} parent=1 // loop_header_branch
      %20 = sbr.rel (%p18) target = $region8
    $region5: #{_fused_forward.1} parent=1 // loop_body
      %s22 = ssub.s32 %s17, 1
      %s23 = ssub.s32 %s17, 2
      %s24 = sadd.s32 %s17, 1
      %s25 = ssub.s32 %s17, %s24
      %p26 = scmp.eq.s32.totalorder %s25, 0
      %s28 = sadd.s32 %s27, 1
      %s29 = scalar_select %p26, %s27, %s28
      %p32 = pneg %p26
      %p33 = scmp.eq.s32.totalorder %s17, 1
      %p34 = por %p32, %p33
      %p35 = scmp.ne.s32.totalorder %s27, %s30
      %p36 = scmp.eq.s32.totalorder %s17, 0
      %p37 = por %p35, %p36
      %p38 = scmp.ne.s32.totalorder %s27, %s30
      %p39 = scmp.eq.s32.totalorder %s22, 1
      %p40 = por %p38, %p39
      %p41 = scmp.ne.s32.totalorder %s30, %s31
      %p42 = scmp.eq.s32.totalorder %s22, 0
      %p43 = por %p41, %p42
      %p44 = scmp.ne.s32.totalorder %s30, %s31
      %p45 = scmp.eq.s32.totalorder %s23, 1
      %p46 = por %p44, %p45
      %p48 = scmp.ne.s32.totalorder %s31, %s47
      %p49 = scmp.eq.s32.totalorder %s23, 0
      %p50 = por %p48, %p49
      %s52 = sadd.s32 %s51, 1
      %p55 = scmp.eq.s32.totalorder %s17, 1
      %p56 = scmp.ne.s32.totalorder %s51, %s53
      %p57 = scmp.eq.s32.totalorder %s17, 0
      %p58 = por %p56, %p57
      %p59 = scmp.ne.s32.totalorder %s51, %s53
      %p60 = scmp.eq.s32.totalorder %s22, 1
      %p61 = por %p59, %p60
      %p62 = scmp.ne.s32.totalorder %s53, %s54
      %p63 = scmp.eq.s32.totalorder %s22, 0
      %p64 = por %p62, %p63
      %p65 = scmp.ne.s32.totalorder %s53, %s54
      %p66 = scmp.eq.s32.totalorder %s23, 1
      %p67 = por %p65, %p66
      %p69 = scmp.ne.s32.totalorder %s54, %s68
      %p70 = scmp.eq.s32.totalorder %s23, 0
      %p71 = por %p69, %p70
      %s73 = sadd.s32 %s72, 1
      %p76 = scmp.eq.s32.totalorder %s17, 1
      %p77 = scmp.ne.s32.totalorder %s72, %s74
      %p78 = scmp.eq.s32.totalorder %s17, 0
      %p79 = por %p77, %p78
      %p80 = scmp.ne.s32.totalorder %s72, %s74
      %p81 = scmp.eq.s32.totalorder %s22, 1
      %p82 = por %p80, %p81
      %p83 = scmp.ne.s32.totalorder %s74, %s75
      %p84 = scmp.eq.s32.totalorder %s22, 0
      %p85 = por %p83, %p84
      %p86 = scmp.ne.s32.totalorder %s74, %s75
      %p87 = scmp.eq.s32.totalorder %s23, 1
      %p88 = por %p86, %p87
      %p90 = scmp.ne.s32.totalorder %s75, %s89
      %p91 = scmp.eq.s32.totalorder %s23, 0
      %p92 = por %p90, %p91
      %s94 = sadd.s32 %s93, 1
      %p97 = scmp.eq.s32.totalorder %s17, 1
      %p98 = scmp.ne.s32.totalorder %s93, %s95
      %p99 = scmp.eq.s32.totalorder %s17, 0
      %p100 = por %p98, %p99
      %p101 = scmp.ne.s32.totalorder %s93, %s95
      %p102 = scmp.eq.s32.totalorder %s22, 1
      %p103 = por %p101, %p102
      %p104 = scmp.ne.s32.totalorder %s95, %s96
      %p105 = scmp.eq.s32.totalorder %s22, 0
      %p106 = por %p104, %p105
      %p107 = scmp.ne.s32.totalorder %s95, %s96
      %p108 = scmp.eq.s32.totalorder %s23, 1
      %p109 = por %p107, %p108
      %p111 = scmp.ne.s32.totalorder %s96, %s110
      %p112 = scmp.eq.s32.totalorder %s23, 0
      %p113 = por %p111, %p112
      %s115 = sadd.s32 %s114, 1
      %p118 = scmp.eq.s32.totalorder %s17, 1
      %p119 = scmp.ne.s32.totalorder %s114, %s116
      %p120 = scmp.eq.s32.totalorder %s17, 0
      %p121 = por %p119, %p120
      %p122 = scmp.ne.s32.totalorder %s114, %s116
      %p123 = scmp.eq.s32.totalorder %s22, 1
      %p124 = por %p122, %p123
      %p125 = scmp.ne.s32.totalorder %s116, %s117
      %p126 = scmp.eq.s32.totalorder %s22, 0
      %p127 = por %p125, %p126
      %p128 = scmp.ne.s32.totalorder %s116, %s117
      %p129 = scmp.eq.s32.totalorder %s23, 1
      %p130 = por %p128, %p129
      %p132 = scmp.ne.s32.totalorder %s117, %s131
      %p133 = scmp.eq.s32.totalorder %s23, 0
      %p134 = por %p132, %p133
      %s136 = sadd.s32 %s135, 1
      %p139 = scmp.eq.s32.totalorder %s17, 1
      %p140 = scmp.ne.s32.totalorder %s135, %s137
      %p141 = scmp.eq.s32.totalorder %s17, 0
      %p142 = por %p140, %p141
      %p143 = scmp.ne.s32.totalorder %s135, %s137
      %p144 = scmp.eq.s32.totalorder %s22, 1
      %p145 = por %p143, %p144
      %p146 = scmp.ne.s32.totalorder %s137, %s138
      %p147 = scmp.eq.s32.totalorder %s22, 0
      %p148 = por %p146, %p147
      %p149 = scmp.ne.s32.totalorder %s137, %s138
      %p150 = scmp.eq.s32.totalorder %s23, 1
      %p151 = por %p149, %p150
      %p153 = scmp.ne.s32.totalorder %s138, %s152
      %p154 = scmp.eq.s32.totalorder %s23, 0
      %p155 = por %p153, %p154
      %s157 = sadd.s32 %s156, 1
      %p160 = scmp.eq.s32.totalorder %s17, 1
      %p161 = scmp.ne.s32.totalorder %s156, %s158
      %p162 = scmp.eq.s32.totalorder %s17, 0
      %p163 = por %p161, %p162
      %p164 = scmp.ne.s32.totalorder %s156, %s158
      %p165 = scmp.eq.s32.totalorder %s22, 1
      %p166 = por %p164, %p165
      %p167 = scmp.ne.s32.totalorder %s158, %s159
      %p168 = scmp.eq.s32.totalorder %s22, 0
      %p169 = por %p167, %p168
      %p170 = scmp.ne.s32.totalorder %s158, %s159
      %p171 = scmp.eq.s32.totalorder %s23, 1
      %p172 = por %p170, %p171
      %p174 = scmp.ne.s32.totalorder %s159, %s173
      %p175 = scmp.eq.s32.totalorder %s23, 0
      %p176 = por %p174, %p175
      %s177 = ssub.s32 %s17, %s24
      %p178 = scmp.eq.s32.totalorder %s177, 0
      %s180 = sadd.s32 %s179, 1
      %s181 = scalar_select %p178, %s179, %s180
      %p184 = pneg %p178
      %p185 = scmp.eq.s32.totalorder %s17, 1
      %p186 = por %p184, %p185
      %p187 = scmp.ne.s32.totalorder %s179, %s182
      %p188 = scmp.eq.s32.totalorder %s17, 0
      %p189 = por %p187, %p188
      %p190 = scmp.ne.s32.totalorder %s179, %s182
      %p191 = scmp.eq.s32.totalorder %s22, 1
      %p192 = por %p190, %p191
      %p193 = scmp.ne.s32.totalorder %s182, %s183
      %p194 = scmp.eq.s32.totalorder %s22, 0
      %p195 = por %p193, %p194
      %p196 = scmp.ne.s32.totalorder %s182, %s183
      %p197 = scmp.eq.s32.totalorder %s23, 1
      %p198 = por %p196, %p197
      %p200 = scmp.ne.s32.totalorder %s183, %s199
      %p201 = scmp.eq.s32.totalorder %s23, 0
      %p202 = por %p200, %p201
      %s203 = ssub.s32 %s17, %s24
      %p204 = scmp.eq.s32.totalorder %s203, 0
      %s206 = sadd.s32 %s205, 1
      %s207 = scalar_select %p204, %s205, %s206
      %p210 = pneg %p204
      %p211 = scmp.eq.s32.totalorder %s17, 1
      %p212 = por %p210, %p211
      %p213 = scmp.ne.s32.totalorder %s205, %s208
      %p214 = scmp.eq.s32.totalorder %s17, 0
      %p215 = por %p213, %p214
      %p216 = scmp.ne.s32.totalorder %s205, %s208
      %p217 = scmp.eq.s32.totalorder %s22, 1
      %p218 = por %p216, %p217
      %p219 = scmp.ne.s32.totalorder %s208, %s209
      %p220 = scmp.eq.s32.totalorder %s22, 0
      %p221 = por %p219, %p220
      %p222 = scmp.ne.s32.totalorder %s208, %s209
      %p223 = scmp.eq.s32.totalorder %s23, 1
      %p224 = por %p222, %p223
      %p226 = scmp.ne.s32.totalorder %s209, %s225
      %p227 = scmp.eq.s32.totalorder %s23, 0
      %p228 = por %p226, %p227
      %p229 = scmp.le.s32.totalorder 1, %s17
      %p230 = scmp.lt.s32.totalorder %s17, 3
      %p231 = pnand %p229, %p230
      %p232 = pneg %p231
      // Predicated region
      $region9: #{_fused_forward.1} parent=5 // pred_check
        _
      $region10: #{_fused_forward.1} parent=5 // pred_check_branch
        %234 = sbr.rel (%p231) target = $region12
      $region11: #{_fused_forward.1} parent=5 // pred_region
        %s235 = ssub.s32 %s17, 1
        // Predicated region
        $region13: #{_fused_forward.1} parent=11 // pred_check
          %p236 = pneg %p64
        $region14: #{_fused_forward.1} parent=11 // pred_check_branch
          %238 = sbr.rel (%p236) target = $region16
        $region15: #{_fused_forward.1} parent=11 // pred_region
          _
        $region16: #{_fused_forward.1} parent=11 // pred_fallthru
          _
        // Predicated region
        $region17: #{_fused_forward.1} parent=11 // pred_check
          %p239 = pneg %p85
        $region18: #{_fused_forward.1} parent=11 // pred_check_branch
          %241 = sbr.rel (%p239) target = $region20
        $region19: #{_fused_forward.1} parent=11 // pred_region
          %s243 = ssub.s32 4096, 4096
          %244 = vsyncadd [#allocation6], %s243
          %s245 = sshll.u32 [#allocation5], 4
          %s246 = int_to_ptr.vmem [resolvable:$true] %s245
          %251 = dma.hbm_to_vmem [thread:$0]  %s2, 4096, %s246, [#allocation6], 256, 256, 16
        $region20: #{_fused_forward.1} parent=11 // pred_fallthru
          _
        // Predicated region
        $region21: #{_fused_forward.1} parent=11 // pred_check
          %p252 = pneg %p106
        $region22: #{_fused_forward.1} parent=11 // pred_check_branch
          %254 = sbr.rel (%p252) target = $region24
        $region23: #{_fused_forward.1} parent=11 // pred_region
          _
        $region24: #{_fused_forward.1} parent=11 // pred_fallthru
          _
        // Predicated region
        $region25: #{_fused_forward.1} parent=11 // pred_check
          %p255 = pneg %p127
        $region26: #{_fused_forward.1} parent=11 // pred_check_branch
          %257 = sbr.rel (%p255) target = $region28
        $region27: #{_fused_forward.1} parent=11 // pred_region
          %s259 = ssub.s32 4096, 4096
          %260 = vsyncadd [#allocation8], %s259
          %s261 = sshll.u32 [#allocation7], 4
          %s262 = int_to_ptr.vmem [resolvable:$true] %s261
          %267 = dma.hbm_to_vmem [thread:$0]  %s4, 4096, %s262, [#allocation8], 256, 256, 16
        $region28: #{_fused_forward.1} parent=11 // pred_fallthru
          _
        // Predicated region
        $region29: #{_fused_forward.1} parent=11 // pred_check
          %p268 = pneg %p148
        $region30: #{_fused_forward.1} parent=11 // pred_check_branch
          %270 = sbr.rel (%p268) target = $region32
        $region31: #{_fused_forward.1} parent=11 // pred_region
          %s272 = ssub.s32 4096, 4096
          %273 = vsyncadd [#allocation8], %s272
          %s274 = sshll.u32 [#allocation9], 4
          %s275 = int_to_ptr.vmem [resolvable:$true] %s274
          %280 = dma.hbm_to_vmem [thread:$0]  %s5, 4096, %s275, [#allocation8], 256, 256, 16
        $region32: #{_fused_forward.1} parent=11 // pred_fallthru
          _
        // Predicated region
        $region33: #{_fused_forward.1} parent=11 // pred_check
          %p281 = pneg %p169
        $region34: #{_fused_forward.1} parent=11 // pred_check_branch
          %283 = sbr.rel (%p281) target = $region36
        $region35: #{_fused_forward.1} parent=11 // pred_region
          _
        $region36: #{_fused_forward.1} parent=11 // pred_fallthru
          _
      $region12: #{_fused_forward.1} parent=5 // pred_fallthru
        _
      %p284 = scmp.lt.s32.totalorder %s17, 2
      // Predicated region
      $region37: #{_fused_forward.1} parent=5 // pred_check
        %p285 = pneg %p284
      $region38: #{_fused_forward.1} parent=5 // pred_check_branch
        %287 = sbr.rel (%p285) target = $region40
      $region39: #{_fused_forward.1} parent=5 // pred_region
        // Predicated region
        $region41: #{_fused_forward.1} parent=39 // pred_check
          %p288 = pneg %p37
        $region42: #{_fused_forward.1} parent=39 // pred_check_branch
          %290 = sbr.rel (%p288) target = $region44
        $region43: #{_fused_forward.1} parent=39 // pred_region
          %s291 = smul.u32 4, %s17
          %p292 = scmp.lt.s32.totalorder %s291, 7
          %s293 = scalar_select %p292, %s291, 7
          %s294 = smul.addr %s293, 4
          %s295 = scalar_lea.vmem %s0, %s294
          %s296 = smul.u32 4, %s17
        $region44: #{_fused_forward.1} parent=39 // pred_fallthru
          _
      $region40: #{_fused_forward.1} parent=5 // pred_fallthru
        _
      %p297 = scmp.le.s32.totalorder 1, %s17
      %p298 = scmp.lt.s32.totalorder %s17, 3
      %p299 = pnand %p297, %p298
      %p300 = pneg %p299
      // Predicated region
      $region45: #{_fused_forward.1} parent=5 // pred_check
        _
      $region46: #{_fused_forward.1} parent=5 // pred_check_branch
        %302 = sbr.rel (%p299) target = $region48
      $region47: #{_fused_forward.1} parent=5 // pred_region
        %s303 = ssub.s32 %s17, 1
        // Predicated region
        $region49: #{_fused_forward.1} parent=47 // pred_check
          %p304 = pneg %p85
        $region50: #{_fused_forward.1} parent=47 // pred_check_branch
          %306 = sbr.rel (%p304) target = $region52
        $region51: #{_fused_forward.1} parent=47 // pred_region
          %307 = dma.done [#allocation6], 4096
        $region52: #{_fused_forward.1} parent=47 // pred_fallthru
          _
        // Predicated region
        $region53: #{_fused_forward.1} parent=47 // pred_check
          %p308 = pneg %p127
        $region54: #{_fused_forward.1} parent=47 // pred_check_branch
          %310 = sbr.rel (%p308) target = $region56
        $region55: #{_fused_forward.1} parent=47 // pred_region
          %311 = dma.done [#allocation8], 4096
        $region56: #{_fused_forward.1} parent=47 // pred_fallthru
          _
        // Predicated region
        $region57: #{_fused_forward.1} parent=47 // pred_check
          %p312 = pneg %p148
        $region58: #{_fused_forward.1} parent=47 // pred_check_branch
          %314 = sbr.rel (%p312) target = $region60
        $region59: #{_fused_forward.1} parent=47 // pred_region
          %315 = dma.done [#allocation8], 4096
        $region60: #{_fused_forward.1} parent=47 // pred_fallthru
          _
        %s316 = smul.u32 4, %s22
        %p317 = scmp.lt.s32.totalorder %s316, 7
        %s318 = scalar_select %p317, %s316, 7
        %s319 = smul.addr %s318, 4
        %s320 = scalar_lea.vmem %s0, %s319
        %p321 = pneg %p43
        %p322 = pneg %p40
        %p323 = pneg %p64
        %p324 = pneg %p61
        %p325 = pneg %p85
        %p326 = pneg %p82
        %p327 = pneg %p106
        %p328 = pneg %p103
        %p329 = pneg %p127
        %p330 = pneg %p124
        %p331 = pneg %p148
        %p332 = pneg %p145
        %p333 = pneg %p169
        %p334 = pneg %p166
        %p335 = pneg %p195
        %p336 = pneg %p192
        %s337 = smul.u32 4, %s22
        %p338 = scmp.lt.s32.totalorder %s337, 7
        %s339 = scalar_select %p338, %s337, 7
        %s340 = smul.addr %s339, 4
        %s341 = scalar_lea.vmem %s7, %s340
        %p342 = pneg %p221
        %p343 = pneg %p218
        %s344 = smul.u32 4, %s22
        %p345 = scmp.lt.s32.totalorder %s344, 7
        %s346 = scalar_select %p345, %s344, 7
        %s347 = smul.addr %s346, 4
        %s348 = scalar_lea.vmem %s8, %s347
        %s349 = smul.u32 4, %s22
        %p350 = scmp.lt.s32.totalorder %s349, 7
        %s351 = scalar_select %p350, %s349, 7
        %s352 = smul.addr %s351, 4
        %s353 = scalar_lea.vmem %s0, %s352
        %s354 = smul.u32 4, %s22
        %s355 = smul.u32 4, %s22
        %p356 = scmp.lt.s32.totalorder %s355, 7
        %s357 = scalar_select %p356, %s355, 7
        %s358 = smul.addr %s357, 4
        %s359 = scalar_lea.vmem %s7, %s358
        %s360 = smul.u32 4, %s22
        %s361 = smul.u32 4, %s22
        %p362 = scmp.lt.s32.totalorder %s361, 7
        %s363 = scalar_select %p362, %s361, 7
        %s364 = smul.addr %s363, 4
        %s365 = scalar_lea.vmem %s8, %s364
        %s366 = smul.u32 4, %s22
        %p368 = scmp.eq.s32.totalorder %s22, 0
        // Predicated region
        $region61: #{_fused_forward.1} parent=47 // pred_check
          %p369 = pneg %p368
        $region62: #{_fused_forward.1} parent=47 // pred_check_branch
          %371 = sbr.rel (%p369) target = $region64
        $region63: #{_fused_forward.1} parent=47 // pred_region
          %372 = vst [vmem:[#allocation2] sm:$0xff] 0.0
          %373 = vst [vmem:[#allocation2 + $0x8] sm:$0xff] 0.0
          %374 = vst [vmem:[#allocation3] sm:$0xff] 0.0
          %375 = vst [vmem:[#allocation3 + $0x8] sm:$0xff] 0.0
        $region64: #{_fused_forward.1} parent=47 // pred_fallthru
          _
        %v376 = vld [vmem:[%s353] sm:$0xf]
        %v377 = vld [vmem:[%s353 + $0x4] sm:$0xf]
        %v378 = vld [vmem:[%s353 + $0x8] sm:$0xf]
        %v379 = vld [vmem:[%s353 + $0xc] sm:$0xf]
        %v380 = vld [vmem:[%s1] sm:$0xff]
        %v381 = vld [vmem:[%s1 + $0x8] sm:$0xff]
        %v382 = vld [vmem:[%s1 + $0x10] sm:$0xff]
        %v383 = vld [vmem:[%s1 + $0x18] sm:$0xff]
        %v384 = vld [vmem:[%s1 + $0x20] sm:$0xff]
        %v385 = vld [vmem:[%s1 + $0x28] sm:$0xff]
        %v386 = vld [vmem:[%s1 + $0x30] sm:$0xff]
        %v387 = vld [vmem:[%s1 + $0x38] sm:$0xff]
        %v388 = vld [vmem:[%s1 + $0x40] sm:$0xff]
        %v389 = vld [vmem:[%s1 + $0x48] sm:$0xff]
        %v390 = vld [vmem:[%s1 + $0x50] sm:$0xff]
        %v391 = vld [vmem:[%s1 + $0x58] sm:$0xff]
        %v392 = vld [vmem:[%s1 + $0x60] sm:$0xff]
        %v393 = vld [vmem:[%s1 + $0x68] sm:$0xff]
        %v394 = vld [vmem:[%s1 + $0x70] sm:$0xff]
        %v395 = vld [vmem:[%s1 + $0x78] sm:$0xff]
        %v396 = vld [vmem:[%s1 + $0x80] sm:$0xff]
        %v397 = vld [vmem:[%s1 + $0x88] sm:$0xff]
        %v398 = vld [vmem:[%s1 + $0x90] sm:$0xff]
        %v399 = vld [vmem:[%s1 + $0x98] sm:$0xff]
        %v400 = vld [vmem:[%s1 + $0xa0] sm:$0xff]
        %v401 = vld [vmem:[%s1 + $0xa8] sm:$0xff]
        %v402 = vld [vmem:[%s1 + $0xb0] sm:$0xff]
        %v403 = vld [vmem:[%s1 + $0xb8] sm:$0xff]
        %v404 = vld [vmem:[%s1 + $0xc0] sm:$0xff]
        %v405 = vld [vmem:[%s1 + $0xc8] sm:$0xff]
        %v406 = vld [vmem:[%s1 + $0xd0] sm:$0xff]
        %v407 = vld [vmem:[%s1 + $0xd8] sm:$0xff]
        %v408 = vld [vmem:[%s1 + $0xe0] sm:$0xff]
        %v409 = vld [vmem:[%s1 + $0xe8] sm:$0xff]
        %v410 = vld [vmem:[%s1 + $0xf0] sm:$0xff]
        %v411 = vld [vmem:[%s1 + $0xf8] sm:$0xff]
        %v412 = vld [vmem:[%s3] sm:$0xf]
        %v414 = vlaneseq
        %v415 = vshrl.u32 %v414, 7
        %v416 = vsub.s32 0, %v415
        %v417 = vrot.slane %v412, %v416
        %v418 = vlaneseq
        %v419 = vshrl.u32 %v418, 7
        %v420 = vsub.s32 1, %v419
        %v421 = vrot.slane %v412, %v420
        %v422 = vlaneseq
        %v423 = vshrl.u32 %v422, 7
        %v424 = vsub.s32 2, %v423
        %v425 = vrot.slane %v412, %v424
        %v426 = vlaneseq
        %v427 = vshrl.u32 %v426, 7
        %v428 = vsub.s32 3, %v427
        %v429 = vrot.slane %v412, %v428
        %v438 = vunpack.c.l.b16 %v376
        %v439 = vunpack.c.l.b16 %v377
        %v440 = vunpack.c.l.b16 %v378
        %v441 = vunpack.c.l.b16 %v379
        %v442 = vpack.c.b16 %v439, %v438
        %v443 = vpack.c.b16 %v441, %v440
        %v478 = vunpack.c.l.b16 %v380
        %v479 = vunpack.c.h.b16 %v380
        %v480 = vunpack.c.l.b16 %v381
        %v481 = vunpack.c.h.b16 %v381
        %v482 = vunpack.c.l.b16 %v382
        %v483 = vunpack.c.h.b16 %v382
        %v484 = vunpack.c.l.b16 %v383
        %v485 = vunpack.c.h.b16 %v383
        %v486 = vunpack.c.l.b16 %v384
        %v487 = vunpack.c.h.b16 %v384
        %v488 = vunpack.c.l.b16 %v385
        %v489 = vunpack.c.h.b16 %v385
        %v490 = vunpack.c.l.b16 %v386
        %v491 = vunpack.c.h.b16 %v386
        %v492 = vunpack.c.l.b16 %v387
        %v493 = vunpack.c.h.b16 %v387
        %v494 = vunpack.c.l.b16 %v388
        %v495 = vunpack.c.h.b16 %v388
        %v496 = vunpack.c.l.b16 %v389
        %v497 = vunpack.c.h.b16 %v389
        %v498 = vunpack.c.l.b16 %v390
        %v499 = vunpack.c.h.b16 %v390
        %v500 = vunpack.c.l.b16 %v391
        %v501 = vunpack.c.h.b16 %v391
        %v502 = vunpack.c.l.b16 %v392
        %v503 = vunpack.c.h.b16 %v392
        %v504 = vunpack.c.l.b16 %v393
        %v505 = vunpack.c.h.b16 %v393
        %v506 = vunpack.c.l.b16 %v394
        %v507 = vunpack.c.h.b16 %v394
        %v508 = vunpack.c.l.b16 %v395
        %v509 = vunpack.c.h.b16 %v395
        %v510 = vunpack.c.l.b16 %v396
        %v511 = vunpack.c.h.b16 %v396
        %v512 = vunpack.c.l.b16 %v397
        %v513 = vunpack.c.h.b16 %v397
        %v514 = vunpack.c.l.b16 %v398
        %v515 = vunpack.c.h.b16 %v398
        %v516 = vunpack.c.l.b16 %v399
        %v517 = vunpack.c.h.b16 %v399
        %v518 = vunpack.c.l.b16 %v400
        %v519 = vunpack.c.h.b16 %v400
        %v520 = vunpack.c.l.b16 %v401
        %v521 = vunpack.c.h.b16 %v401
        %v522 = vunpack.c.l.b16 %v402
        %v523 = vunpack.c.h.b16 %v402
        %v524 = vunpack.c.l.b16 %v403
        %v525 = vunpack.c.h.b16 %v403
        %v526 = vunpack.c.l.b16 %v404
        %v527 = vunpack.c.h.b16 %v404
        %v528 = vunpack.c.l.b16 %v405
        %v529 = vunpack.c.h.b16 %v405
        %v530 = vunpack.c.l.b16 %v406
        %v531 = vunpack.c.h.b16 %v406
        %v532 = vunpack.c.l.b16 %v407
        %v533 = vunpack.c.h.b16 %v407
        %v534 = vunpack.c.l.b16 %v408
        %v535 = vunpack.c.h.b16 %v408
        %v536 = vunpack.c.l.b16 %v409
        %v537 = vunpack.c.h.b16 %v409
        %v538 = vunpack.c.l.b16 %v410
        %v539 = vunpack.c.h.b16 %v410
        %v540 = vunpack.c.l.b16 %v411
        %v541 = vunpack.c.h.b16 %v411
        %v542 = vpack.c.b16 %v482, %v478
        %v543 = vpack.c.b16 %v483, %v479
        %v544 = vpack.c.b16 %v484, %v480
        %v545 = vpack.c.b16 %v485, %v481
        %v546 = vpack.c.b16 %v490, %v486
        %v547 = vpack.c.b16 %v491, %v487
        %v548 = vpack.c.b16 %v492, %v488
        %v549 = vpack.c.b16 %v493, %v489
        %v550 = vpack.c.b16 %v498, %v494
        %v551 = vpack.c.b16 %v499, %v495
        %v552 = vpack.c.b16 %v500, %v496
        %v553 = vpack.c.b16 %v501, %v497
        %v554 = vpack.c.b16 %v506, %v502
        %v555 = vpack.c.b16 %v507, %v503
        %v556 = vpack.c.b16 %v508, %v504
        %v557 = vpack.c.b16 %v509, %v505
        %v558 = vpack.c.b16 %v514, %v510
        %v559 = vpack.c.b16 %v515, %v511
        %v560 = vpack.c.b16 %v516, %v512
        %v561 = vpack.c.b16 %v517, %v513
        %v562 = vpack.c.b16 %v522, %v518
        %v563 = vpack.c.b16 %v523, %v519
        %v564 = vpack.c.b16 %v524, %v520
        %v565 = vpack.c.b16 %v525, %v521
        %v566 = vpack.c.b16 %v530, %v526
        %v567 = vpack.c.b16 %v531, %v527
        %v568 = vpack.c.b16 %v532, %v528
        %v569 = vpack.c.b16 %v533, %v529
        %v570 = vpack.c.b16 %v538, %v534
        %v571 = vpack.c.b16 %v539, %v535
        %v572 = vpack.c.b16 %v540, %v536
        %v573 = vpack.c.b16 %v541, %v537
        %606 = vmatprep.subr.bf16.mxu0 %v543
        %607 = vmatpush1.bf16.msra.mxu0 %v542
        %608 = vmatprep.subr.bf16.mxu0 %v547
        %609 = vmatpush1.bf16.msra.mxu0 %v546
        %610 = vmatprep.subr.bf16.mxu0 %v551
        %611 = vmatpush1.bf16.msra.mxu0 %v550
        %612 = vmatprep.subr.bf16.mxu0 %v555
        %613 = vmatpush1.bf16.msra.mxu0 %v554
        %614 = vmatprep.subr.bf16.mxu0 %v559
        %615 = vmatpush1.bf16.msra.mxu0 %v558
        %616 = vmatprep.subr.bf16.mxu0 %v563
        %617 = vmatpush1.bf16.msra.mxu0 %v562
        %618 = vmatprep.subr.bf16.mxu0 %v567
        %619 = vmatpush1.bf16.msra.mxu0 %v566
        %620 = vmatprep.subr.bf16.mxu0 %v571
        %621 = vmatpush1.bf16.msra.mxu0 %v570
        %622 = vmatprep.subr.bf16.mxu0 0
        %623 = vmatpush1.bf16.msra.mxu0 0
        %624 = vmatprep.subr.bf16.mxu0 0
        %625 = vmatpush1.bf16.msra.mxu0 0
        %626 = vmatprep.subr.bf16.mxu0 0
        %627 = vmatpush1.bf16.msra.mxu0 0
        %628 = vmatprep.subr.bf16.mxu0 0
        %629 = vmatpush1.bf16.msra.mxu0 0
        %630 = vmatprep.subr.bf16.mxu0 0
        %631 = vmatpush1.bf16.msra.mxu0 0
        %632 = vmatprep.subr.bf16.mxu0 0
        %633 = vmatpush1.bf16.msra.mxu0 0
        %634 = vmatprep.subr.bf16.mxu0 0
        %635 = vmatpush1.bf16.msra.mxu0 0
        %636 = vmatprep.subr.bf16.mxu0 0
        %637 = vmatpush1.bf16.msra.mxu0 0
        %638 = vmatprep.mubr.bf16.mxu0 0
        %639 = vmatmul.mubr.bf16.gmra.mrb[0].mxu0 %v442
        %v640 = vpop.f32.mrb[0].mxu0
        %v641 = vadd.f32 %v417, %v640
        %v642 = vpop.f32.mrb[0].mxu0
        %v643 = vadd.f32 %v421, %v642
        %v644 = vpop.f32.mrb[0].mxu0
        %v645 = vadd.f32 %v417, %v644
        %v646 = vpop.f32.mrb[0].mxu0
        %v647 = vadd.f32 %v421, %v646
        %648 = vmatprep.mubr.bf16.mxu0 0
        %649 = vmatmul.mubr.bf16.gmra.mrb[0].mxu0 %v443
        %v650 = vpop.f32.mrb[0].mxu0
        %v651 = vadd.f32 %v417, %v650
        %v652 = vpop.f32.mrb[0].mxu0
        %v653 = vadd.f32 %v421, %v652
        %v654 = vpop.f32.mrb[0].mxu0
        %v655 = vadd.f32 %v417, %v654
        %v656 = vpop.f32.mrb[0].mxu0
        %v657 = vadd.f32 %v421, %v656
        %658 = vdwg.mxu0
        %659 = vmatprep.subr.bf16.mxu0 %v545
        %660 = vmatpush1.bf16.msra.mxu0 %v544
        %661 = vmatprep.subr.bf16.mxu0 %v549
        %662 = vmatpush1.bf16.msra.mxu0 %v548
        %663 = vmatprep.subr.bf16.mxu0 %v553
        %664 = vmatpush1.bf16.msra.mxu0 %v552
        %665 = vmatprep.subr.bf16.mxu0 %v557
        %666 = vmatpush1.bf16.msra.mxu0 %v556
        %667 = vmatprep.subr.bf16.mxu0 %v561
        %668 = vmatpush1.bf16.msra.mxu0 %v560
        %669 = vmatprep.subr.bf16.mxu0 %v565
        %670 = vmatpush1.bf16.msra.mxu0 %v564
        %671 = vmatprep.subr.bf16.mxu0 %v569
        %672 = vmatpush1.bf16.msra.mxu0 %v568
        %673 = vmatprep.subr.bf16.mxu0 %v573
        %674 = vmatpush1.bf16.msra.mxu0 %v572
        %675 = vmatprep.subr.bf16.mxu0 0
        %676 = vmatpush1.bf16.msra.mxu0 0
        %677 = vmatprep.subr.bf16.mxu0 0
        %678 = vmatpush1.bf16.msra.mxu0 0
        %679 = vmatprep.subr.bf16.mxu0 0
        %680 = vmatpush1.bf16.msra.mxu0 0
        %681 = vmatprep.subr.bf16.mxu0 0
        %682 = vmatpush1.bf16.msra.mxu0 0
        %683 = vmatprep.subr.bf16.mxu0 0
        %684 = vmatpush1.bf16.msra.mxu0 0
        %685 = vmatprep.subr.bf16.mxu0 0
        %686 = vmatpush1.bf16.msra.mxu0 0
        %687 = vmatprep.subr.bf16.mxu0 0
        %688 = vmatpush1.bf16.msra.mxu0 0
        %689 = vmatprep.subr.bf16.mxu0 0
        %690 = vmatpush1.bf16.msra.mxu0 0
        %691 = vmatprep.mubr.bf16.mxu0 0
        %692 = vmatmul.mubr.bf16.gmra.mrb[0].mxu0 %v442
        %v693 = vpop.f32.mrb[0].mxu0
        %v694 = vadd.f32 %v425, %v693
        %v695 = vpop.f32.mrb[0].mxu0
        %v696 = vadd.f32 %v429, %v695
        %v697 = vpop.f32.mrb[0].mxu0
        %v698 = vadd.f32 %v425, %v697
        %v699 = vpop.f32.mrb[0].mxu0
        %v700 = vadd.f32 %v429, %v699
        %701 = vmatprep.mubr.bf16.mxu0 0
        %702 = vmatmul.mubr.bf16.gmra.mrb[0].mxu0 %v443
        %v703 = vpop.f32.mrb[0].mxu0
        %v704 = vadd.f32 %v425, %v703
        %v705 = vpop.f32.mrb[0].mxu0
        %v706 = vadd.f32 %v429, %v705
        %v707 = vpop.f32.mrb[0].mxu0
        %v708 = vadd.f32 %v425, %v707
        %v709 = vpop.f32.mrb[0].mxu0
        %v710 = vadd.f32 %v429, %v709
        %711 = vdwg.mxu0
        %v712 = vpack.c.bf16 %v641, %v641
        %v713 = vpack.c.bf16 %v643, %v643
        %v714 = vpack.c.bf16 %v694, %v694
        %v715 = vpack.c.bf16 %v696, %v696
        %v716 = vpack.c.bf16 %v645, %v645
        %v717 = vpack.c.bf16 %v647, %v647
        %v718 = vpack.c.bf16 %v698, %v698
        %v719 = vpack.c.bf16 %v700, %v700
        %v720 = vpack.c.bf16 %v651, %v651
        %v721 = vpack.c.bf16 %v653, %v653
        %v722 = vpack.c.bf16 %v704, %v704
        %v723 = vpack.c.bf16 %v706, %v706
        %v724 = vpack.c.bf16 %v655, %v655
        %v725 = vpack.c.bf16 %v657, %v657
        %v726 = vpack.c.bf16 %v708, %v708
        %v727 = vpack.c.bf16 %v710, %v710
        %v744 = vunpack.c.l.b16 %v712
        %v745 = vunpack.c.l.b16 %v713
        %v746 = vunpack.c.l.b16 %v714
        %v747 = vunpack.c.l.b16 %v715
        %v748 = vunpack.c.l.b16 %v716
        %v749 = vunpack.c.l.b16 %v717
        %v750 = vunpack.c.l.b16 %v718
        %v751 = vunpack.c.l.b16 %v719
        %v752 = vunpack.c.l.b16 %v720
        %v753 = vunpack.c.l.b16 %v721
        %v754 = vunpack.c.l.b16 %v722
        %v755 = vunpack.c.l.b16 %v723
        %v756 = vunpack.c.l.b16 %v724
        %v757 = vunpack.c.l.b16 %v725
        %v758 = vunpack.c.l.b16 %v726
        %v759 = vunpack.c.l.b16 %v727
        %v760 = vpack.c.b16 %v745, %v744
        %v761 = vpack.c.b16 %v747, %v746
        %v762 = vpack.c.b16 %v749, %v748
        %v763 = vpack.c.b16 %v751, %v750
        %v764 = vpack.c.b16 %v753, %v752
        %v765 = vpack.c.b16 %v755, %v754
        %v766 = vpack.c.b16 %v757, %v756
        %v767 = vpack.c.b16 %v759, %v758
        %776 = vst [vmem:[#allocation4] sm:$0xff] %v760
        %777 = vst [vmem:[#allocation4 + $0x8] sm:$0xff] %v761
        %778 = vst [vmem:[#allocation4 + $0x10] sm:$0xff] %v762
        %779 = vst [vmem:[#allocation4 + $0x18] sm:$0xff] %v763
        %780 = vst [vmem:[#allocation4 + $0x20] sm:$0xff] %v764
        %781 = vst [vmem:[#allocation4 + $0x28] sm:$0xff] %v765
        %782 = vst [vmem:[#allocation4 + $0x30] sm:$0xff] %v766
        %783 = vst [vmem:[#allocation4 + $0x38] sm:$0xff] %v767
        %v784 = vld [vmem:[#allocation2] sm:$0xff]
        %s785 = scalar_lea.vmem [#allocation2], 8
        %v786 = vld [vmem:[%s785] sm:$0xff]
        %v787 = vld [vmem:[#allocation3] sm:$0xff]
        %s788 = scalar_lea.vmem [#allocation3], 8
        %v789 = vld [vmem:[%s788] sm:$0xff]
        %v790 = vpack.c.bf16 %v784, %v784
        %v791 = vld [vmem:[#allocation5] sm:$0xff]
        %v792 = vld [vmem:[#allocation5 + $0x8] sm:$0xff]
        %v793 = vld [vmem:[#allocation5 + $0x10] sm:$0xff]
        %v794 = vld [vmem:[#allocation5 + $0x18] sm:$0xff]
        %v795 = vld [vmem:[#allocation5 + $0x20] sm:$0xff]
        %v796 = vld [vmem:[#allocation5 + $0x28] sm:$0xff]
        %v797 = vld [vmem:[#allocation5 + $0x30] sm:$0xff]
        %v798 = vld [vmem:[#allocation5 + $0x38] sm:$0xff]
        %v799 = vld [vmem:[#allocation5 + $0x40] sm:$0xff]
        %v800 = vld [vmem:[#allocation5 + $0x48] sm:$0xff]
        %v801 = vld [vmem:[#allocation5 + $0x50] sm:$0xff]
        %v802 = vld [vmem:[#allocation5 + $0x58] sm:$0xff]
        %v803 = vld [vmem:[#allocation5 + $0x60] sm:$0xff]
        %v804 = vld [vmem:[#allocation5 + $0x68] sm:$0xff]
        %v805 = vld [vmem:[#allocation5 + $0x70] sm:$0xff]
        %v806 = vld [vmem:[#allocation5 + $0x78] sm:$0xff]
        %v807 = vld [vmem:[#allocation5 + $0x80] sm:$0xff]
        %v808 = vld [vmem:[#allocation5 + $0x88] sm:$0xff]
        %v809 = vld [vmem:[#allocation5 + $0x90] sm:$0xff]
        %v810 = vld [vmem:[#allocation5 + $0x98] sm:$0xff]
        %v811 = vld [vmem:[#allocation5 + $0xa0] sm:$0xff]
        %v812 = vld [vmem:[#allocation5 + $0xa8] sm:$0xff]
        %v813 = vld [vmem:[#allocation5 + $0xb0] sm:$0xff]
        %v814 = vld [vmem:[#allocation5 + $0xb8] sm:$0xff]
        %v815 = vld [vmem:[#allocation5 + $0xc0] sm:$0xff]
        %v816 = vld [vmem:[#allocation5 + $0xc8] sm:$0xff]
        %v817 = vld [vmem:[#allocation5 + $0xd0] sm:$0xff]
        %v818 = vld [vmem:[#allocation5 + $0xd8] sm:$0xff]
        %v819 = vld [vmem:[#allocation5 + $0xe0] sm:$0xff]
        %v820 = vld [vmem:[#allocation5 + $0xe8] sm:$0xff]
        %v821 = vld [vmem:[#allocation5 + $0xf0] sm:$0xff]
        %v822 = vld [vmem:[#allocation5 + $0xf8] sm:$0xff]
        %v855 = vunpack.c.l.b16 %v791
        %v856 = vunpack.c.h.b16 %v791
        %v857 = vunpack.c.l.b16 %v792
        %v858 = vunpack.c.h.b16 %v792
        %v859 = vunpack.c.l.b16 %v793
        %v860 = vunpack.c.h.b16 %v793
        %v861 = vunpack.c.l.b16 %v794
        %v862 = vunpack.c.h.b16 %v794
        %v863 = vunpack.c.l.b16 %v795
        %v864 = vunpack.c.h.b16 %v795
        %v865 = vunpack.c.l.b16 %v796
        %v866 = vunpack.c.h.b16 %v796
        %v867 = vunpack.c.l.b16 %v797
        %v868 = vunpack.c.h.b16 %v797
        %v869 = vunpack.c.l.b16 %v798
        %v870 = vunpack.c.h.b16 %v798
        %v871 = vunpack.c.l.b16 %v799
        %v872 = vunpack.c.h.b16 %v799
        %v873 = vunpack.c.l.b16 %v800
        %v874 = vunpack.c.h.b16 %v800
        %v875 = vunpack.c.l.b16 %v801
        %v876 = vunpack.c.h.b16 %v801
        %v877 = vunpack.c.l.b16 %v802
        %v878 = vunpack.c.h.b16 %v802
        %v879 = vunpack.c.l.b16 %v803
        %v880 = vunpack.c.h.b16 %v803
        %v881 = vunpack.c.l.b16 %v804
        %v882 = vunpack.c.h.b16 %v804
        %v883 = vunpack.c.l.b16 %v805
        %v884 = vunpack.c.h.b16 %v805
        %v885 = vunpack.c.l.b16 %v806
        %v886 = vunpack.c.h.b16 %v806
        %v887 = vunpack.c.l.b16 %v807
        %v888 = vunpack.c.h.b16 %v807
        %v889 = vunpack.c.l.b16 %v808
        %v890 = vunpack.c.h.b16 %v808
        %v891 = vunpack.c.l.b16 %v809
        %v892 = vunpack.c.h.b16 %v809
        %v893 = vunpack.c.l.b16 %v810
        %v894 = vunpack.c.h.b16 %v810
        %v895 = vunpack.c.l.b16 %v811
        %v896 = vunpack.c.h.b16 %v811
        %v897 = vunpack.c.l.b16 %v812
        %v898 = vunpack.c.h.b16 %v812
        %v899 = vunpack.c.l.b16 %v813
        %v900 = vunpack.c.h.b16 %v813
        %v901 = vunpack.c.l.b16 %v814
        %v902 = vunpack.c.h.b16 %v814
        %v903 = vunpack.c.l.b16 %v815
        %v904 = vunpack.c.h.b16 %v815
        %v905 = vunpack.c.l.b16 %v816
        %v906 = vunpack.c.h.b16 %v816
        %v907 = vunpack.c.l.b16 %v817
        %v908 = vunpack.c.h.b16 %v817
        %v909 = vunpack.c.l.b16 %v818
        %v910 = vunpack.c.h.b16 %v818
        %v911 = vunpack.c.l.b16 %v819
        %v912 = vunpack.c.h.b16 %v819
        %v913 = vunpack.c.l.b16 %v820
        %v914 = vunpack.c.h.b16 %v820
        %v915 = vunpack.c.l.b16 %v821
        %v916 = vunpack.c.h.b16 %v821
        %v917 = vunpack.c.l.b16 %v822
        %v918 = vunpack.c.h.b16 %v822
        %v919 = vpack.c.b16 %v859, %v855
        %v920 = vpack.c.b16 %v860, %v856
        %v921 = vpack.c.b16 %v861, %v857
        %v922 = vpack.c.b16 %v862, %v858
        %v923 = vpack.c.b16 %v867, %v863
        %v924 = vpack.c.b16 %v868, %v864
        %v925 = vpack.c.b16 %v869, %v865
        %v926 = vpack.c.b16 %v870, %v866
        %v927 = vpack.c.b16 %v875, %v871
        %v928 = vpack.c.b16 %v876, %v872
        %v929 = vpack.c.b16 %v877, %v873
        %v930 = vpack.c.b16 %v878, %v874
        %v931 = vpack.c.b16 %v883, %v879
        %v932 = vpack.c.b16 %v884, %v880
        %v933 = vpack.c.b16 %v885, %v881
        %v934 = vpack.c.b16 %v886, %v882
        %v935 = vpack.c.b16 %v891, %v887
        %v936 = vpack.c.b16 %v892, %v888
        %v937 = vpack.c.b16 %v893, %v889
        %v938 = vpack.c.b16 %v894, %v890
        %v939 = vpack.c.b16 %v899, %v895
        %v940 = vpack.c.b16 %v900, %v896
        %v941 = vpack.c.b16 %v901, %v897
        %v942 = vpack.c.b16 %v902, %v898
        %v943 = vpack.c.b16 %v907, %v903
        %v944 = vpack.c.b16 %v908, %v904
        %v945 = vpack.c.b16 %v909, %v905
        %v946 = vpack.c.b16 %v910, %v906
        %v947 = vpack.c.b16 %v915, %v911
        %v948 = vpack.c.b16 %v916, %v912
        %v949 = vpack.c.b16 %v917, %v913
        %v950 = vpack.c.b16 %v918, %v914
        %983 = vmatprep.subr.bf16.mxu0 %v920
        %984 = vmatpush1.bf16.msra.mxu0 %v919
        %985 = vmatprep.subr.bf16.mxu0 %v924
        %986 = vmatpush1.bf16.msra.mxu0 %v923
        %987 = vmatprep.subr.bf16.mxu0 %v928
        %988 = vmatpush1.bf16.msra.mxu0 %v927
        %989 = vmatprep.subr.bf16.mxu0 %v932
        %990 = vmatpush1.bf16.msra.mxu0 %v931
        %991 = vmatprep.subr.bf16.mxu0 %v936
        %992 = vmatpush1.bf16.msra.mxu0 %v935
        %993 = vmatprep.subr.bf16.mxu0 %v940
        %994 = vmatpush1.bf16.msra.mxu0 %v939
        %995 = vmatprep.subr.bf16.mxu0 %v944
        %996 = vmatpush1.bf16.msra.mxu0 %v943
        %997 = vmatprep.subr.bf16.mxu0 %v948
        %998 = vmatpush1.bf16.msra.mxu0 %v947
        %999 = vmatprep.subr.bf16.mxu0 0
        %1000 = vmatpush1.bf16.msra.mxu0 0
        %1001 = vmatprep.subr.bf16.mxu0 0
        %1002 = vmatpush1.bf16.msra.mxu0 0
        %1003 = vmatprep.subr.bf16.mxu0 0
        %1004 = vmatpush1.bf16.msra.mxu0 0
        %1005 = vmatprep.subr.bf16.mxu0 0
        %1006 = vmatpush1.bf16.msra.mxu0 0
        %1007 = vmatprep.subr.bf16.mxu0 0
        %1008 = vmatpush1.bf16.msra.mxu0 0
        %1009 = vmatprep.subr.bf16.mxu0 0
        %1010 = vmatpush1.bf16.msra.mxu0 0
        %1011 = vmatprep.subr.bf16.mxu0 0
        %1012 = vmatpush1.bf16.msra.mxu0 0
        %1013 = vmatprep.subr.bf16.mxu0 0
        %1014 = vmatpush1.bf16.msra.mxu0 0
        %1015 = vmatprep.mubr.bf16.mxu0 0
        %1016 = vmatmul.mubr.bf16.gmra.mrb[0].mxu0 %v790
        %v1017 = vpop.f32.mrb[0].mxu0
        %v1018 = vadd.f32 0.0, %v1017
        %v1019 = vpop.f32.mrb[0].mxu0
        %v1020 = vadd.f32 0.0, %v1019
        %v1021 = vpop.f32.mrb[0].mxu0
        %v1022 = vpop.f32.mrb[0].mxu0
        %1023 = vdwg.mxu0
        %1024 = vmatprep.subr.bf16.mxu0 %v922
        %1025 = vmatpush1.bf16.msra.mxu0 %v921
        %1026 = vmatprep.subr.bf16.mxu0 %v926
        %1027 = vmatpush1.bf16.msra.mxu0 %v925
        %1028 = vmatprep.subr.bf16.mxu0 %v930
        %1029 = vmatpush1.bf16.msra.mxu0 %v929
        %1030 = vmatprep.subr.bf16.mxu0 %v934
        %1031 = vmatpush1.bf16.msra.mxu0 %v933
        %1032 = vmatprep.subr.bf16.mxu0 %v938
        %1033 = vmatpush1.bf16.msra.mxu0 %v937
        %1034 = vmatprep.subr.bf16.mxu0 %v942
        %1035 = vmatpush1.bf16.msra.mxu0 %v941
        %1036 = vmatprep.subr.bf16.mxu0 %v946
        %1037 = vmatpush1.bf16.msra.mxu0 %v945
        %1038 = vmatprep.subr.bf16.mxu0 %v950
        %1039 = vmatpush1.bf16.msra.mxu0 %v949
        %1040 = vmatprep.subr.bf16.mxu0 0
        %1041 = vmatpush1.bf16.msra.mxu0 0
        %1042 = vmatprep.subr.bf16.mxu0 0
        %1043 = vmatpush1.bf16.msra.mxu0 0
        %1044 = vmatprep.subr.bf16.mxu0 0
        %1045 = vmatpush1.bf16.msra.mxu0 0
        %1046 = vmatprep.subr.bf16.mxu0 0
        %1047 = vmatpush1.bf16.msra.mxu0 0
        %1048 = vmatprep.subr.bf16.mxu0 0
        %1049 = vmatpush1.bf16.msra.mxu0 0
        %1050 = vmatprep.subr.bf16.mxu0 0
        %1051 = vmatpush1.bf16.msra.mxu0 0
        %1052 = vmatprep.subr.bf16.mxu0 0
        %1053 = vmatpush1.bf16.msra.mxu0 0
        %1054 = vmatprep.subr.bf16.mxu0 0
        %1055 = vmatpush1.bf16.msra.mxu0 0
        %1056 = vmatprep.mubr.bf16.mxu0 0
        %1057 = vmatmul.mubr.bf16.gmra.mrb[0].mxu0 %v790
        %v1058 = vpop.f32.mrb[0].mxu0
        %v1059 = vadd.f32 0.0, %v1058
        %v1060 = vpop.f32.mrb[0].mxu0
        %v1061 = vadd.f32 0.0, %v1060
        %v1062 = vpop.f32.mrb[0].mxu0
        %v1063 = vpop.f32.mrb[0].mxu0
        %1064 = vdwg.mxu0
        %v1065 = vld [vmem:[#allocation4] sm:$0xff]
        %v1066 = vld [vmem:[#allocation4 + $0x8] sm:$0xff]
        %v1067 = vunpack.c.l.bf16 %v1065
        %v1068 = vunpack.c.h.bf16 %v1065
        %v1069 = vunpack.c.l.bf16 %v1066
        %v1070 = vunpack.c.h.bf16 %v1066
        %v1071 = vadd.f32 %v1067, %v1018
        %v1072 = vadd.f32 %v1068, %v1020
        %v1073 = vadd.f32 %v1069, %v1059
        %v1074 = vadd.f32 %v1070, %v1061
        %v1075 = vxor.u32 %v1071, 2147483648
        %v1076 = vmul.f32 %v1075, 1.442695
        %v1077 = vpow.pop %v1076
        %v1078 = vadd.f32 %v1077, 1.0
        %v1079 = vrcp.pop %v1078
        %v1080 = vmul.f32 1.0, %v1079
        %v1081 = vxor.u32 %v1072, 2147483648
        %v1082 = vmul.f32 %v1081, 1.442695
        %v1083 = vpow.pop %v1082
        %v1084 = vadd.f32 %v1083, 1.0
        %v1085 = vrcp.pop %v1084
        %v1086 = vmul.f32 1.0, %v1085
        %v1087 = vtanh.pop %v1073
        %v1088 = vxor.u32 %v1074, 2147483648
        %v1089 = vmul.f32 %v1088, 1.442695
        %v1090 = vpow.pop %v1089
        %v1091 = vadd.f32 %v1090, 1.0
        %v1092 = vrcp.pop %v1091
        %v1093 = vmul.f32 1.0, %v1092
        %v1094 = vmul.f32 %v1086, %v787
        %v1095 = vmul.f32 %v1080, %v1087
        %v1096 = vadd.f32 %v1094, %v1095
        %v1097 = vtanh.pop %v1096
        %v1098 = vmul.f32 %v1093, %v1097
        %v1099 = vpack.c.bf16 %v1098, %v1098
        %1100 = vst [vmem:[%s359] sm:$0xf] %v1099
        %v1101 = vpack.c.bf16 %v786, %v786
        %1102 = vst [vmem:[%s365] sm:$0xf] %v1101
        %v1103 = vld [vmem:[#allocation5] sm:$0xff]
        %v1104 = vld [vmem:[#allocation5 + $0x8] sm:$0xff]
        %v1105 = vld [vmem:[#allocation5 + $0x10] sm:$0xff]
        %v1106 = vld [vmem:[#allocation5 + $0x18] sm:$0xff]
        %v1107 = vld [vmem:[#allocation5 + $0x20] sm:$0xff]
        %v1108 = vld [vmem:[#allocation5 + $0x28] sm:$0xff]
        %v1109 = vld [vmem:[#allocation5 + $0x30] sm:$0xff]
        %v1110 = vld [vmem:[#allocation5 + $0x38] sm:$0xff]
        %v1111 = vld [vmem:[#allocation5 + $0x40] sm:$0xff]
        %v1112 = vld [vmem:[#allocation5 + $0x48] sm:$0xff]
        %v1113 = vld [vmem:[#allocation5 + $0x50] sm:$0xff]
        %v1114 = vld [vmem:[#allocation5 + $0x58] sm:$0xff]
        %v1115 = vld [vmem:[#allocation5 + $0x60] sm:$0xff]
        %v1116 = vld [vmem:[#allocation5 + $0x68] sm:$0xff]
        %v1117 = vld [vmem:[#allocation5 + $0x70] sm:$0xff]
        %v1118 = vld [vmem:[#allocation5 + $0x78] sm:$0xff]
        %v1119 = vld [vmem:[#allocation5 + $0x80] sm:$0xff]
        %v1120 = vld [vmem:[#allocation5 + $0x88] sm:$0xff]
        %v1121 = vld [vmem:[#allocation5 + $0x90] sm:$0xff]
        %v1122 = vld [vmem:[#allocation5 + $0x98] sm:$0xff]
        %v1123 = vld [vmem:[#allocation5 + $0xa0] sm:$0xff]
        %v1124 = vld [vmem:[#allocation5 + $0xa8] sm:$0xff]
        %v1125 = vld [vmem:[#allocation5 + $0xb0] sm:$0xff]
        %v1126 = vld [vmem:[#allocation5 + $0xb8] sm:$0xff]
        %v1127 = vld [vmem:[#allocation5 + $0xc0] sm:$0xff]
        %v1128 = vld [vmem:[#allocation5 + $0xc8] sm:$0xff]
        %v1129 = vld [vmem:[#allocation5 + $0xd0] sm:$0xff]
        %v1130 = vld [vmem:[#allocation5 + $0xd8] sm:$0xff]
        %v1131 = vld [vmem:[#allocation5 + $0xe0] sm:$0xff]
        %v1132 = vld [vmem:[#allocation5 + $0xe8] sm:$0xff]
        %v1133 = vld [vmem:[#allocation5 + $0xf0] sm:$0xff]
        %v1134 = vld [vmem:[#allocation5 + $0xf8] sm:$0xff]
        %v1167 = vunpack.c.l.b16 %v1103
        %v1168 = vunpack.c.h.b16 %v1103
        %v1169 = vunpack.c.l.b16 %v1104
        %v1170 = vunpack.c.h.b16 %v1104
        %v1171 = vunpack.c.l.b16 %v1105
        %v1172 = vunpack.c.h.b16 %v1105
        %v1173 = vunpack.c.l.b16 %v1106
        %v1174 = vunpack.c.h.b16 %v1106
        %v1175 = vunpack.c.l.b16 %v1107
        %v1176 = vunpack.c.h.b16 %v1107
        %v1177 = vunpack.c.l.b16 %v1108
        %v1178 = vunpack.c.h.b16 %v1108
        %v1179 = vunpack.c.l.b16 %v1109
        %v1180 = vunpack.c.h.b16 %v1109
        %v1181 = vunpack.c.l.b16 %v1110
        %v1182 = vunpack.c.h.b16 %v1110
        %v1183 = vunpack.c.l.b16 %v1111
        %v1184 = vunpack.c.h.b16 %v1111
        %v1185 = vunpack.c.l.b16 %v1112
        %v1186 = vunpack.c.h.b16 %v1112
        %v1187 = vunpack.c.l.b16 %v1113
        %v1188 = vunpack.c.h.b16 %v1113
        %v1189 = vunpack.c.l.b16 %v1114
        %v1190 = vunpack.c.h.b16 %v1114
        %v1191 = vunpack.c.l.b16 %v1115
        %v1192 = vunpack.c.h.b16 %v1115
        %v1193 = vunpack.c.l.b16 %v1116
        %v1194 = vunpack.c.h.b16 %v1116
        %v1195 = vunpack.c.l.b16 %v1117
        %v1196 = vunpack.c.h.b16 %v1117
        %v1197 = vunpack.c.l.b16 %v1118
        %v1198 = vunpack.c.h.b16 %v1118
        %v1199 = vunpack.c.l.b16 %v1119
        %v1200 = vunpack.c.h.b16 %v1119
        %v1201 = vunpack.c.l.b16 %v1120
        %v1202 = vunpack.c.h.b16 %v1120
        %v1203 = vunpack.c.l.b16 %v1121
        %v1204 = vunpack.c.h.b16 %v1121
        %v1205 = vunpack.c.l.b16 %v1122
        %v1206 = vunpack.c.h.b16 %v1122
        %v1207 = vunpack.c.l.b16 %v1123
        %v1208 = vunpack.c.h.b16 %v1123
        %v1209 = vunpack.c.l.b16 %v1124
        %v1210 = vunpack.c.h.b16 %v1124
        %v1211 = vunpack.c.l.b16 %v1125
        %v1212 = vunpack.c.h.b16 %v1125
        %v1213 = vunpack.c.l.b16 %v1126
        %v1214 = vunpack.c.h.b16 %v1126
        %v1215 = vunpack.c.l.b16 %v1127
        %v1216 = vunpack.c.h.b16 %v1127
        %v1217 = vunpack.c.l.b16 %v1128
        %v1218 = vunpack.c.h.b16 %v1128
        %v1219 = vunpack.c.l.b16 %v1129
        %v1220 = vunpack.c.h.b16 %v1129
        %v1221 = vunpack.c.l.b16 %v1130
        %v1222 = vunpack.c.h.b16 %v1130
        %v1223 = vunpack.c.l.b16 %v1131
        %v1224 = vunpack.c.h.b16 %v1131
        %v1225 = vunpack.c.l.b16 %v1132
        %v1226 = vunpack.c.h.b16 %v1132
        %v1227 = vunpack.c.l.b16 %v1133
        %v1228 = vunpack.c.h.b16 %v1133
        %v1229 = vunpack.c.l.b16 %v1134
        %v1230 = vunpack.c.h.b16 %v1134
        %v1231 = vpack.c.b16 %v1171, %v1167
        %v1232 = vpack.c.b16 %v1172, %v1168
        %v1233 = vpack.c.b16 %v1173, %v1169
        %v1234 = vpack.c.b16 %v1174, %v1170
        %v1235 = vpack.c.b16 %v1179, %v1175
        %v1236 = vpack.c.b16 %v1180, %v1176
        %v1237 = vpack.c.b16 %v1181, %v1177
        %v1238 = vpack.c.b16 %v1182, %v1178
        %v1239 = vpack.c.b16 %v1187, %v1183
        %v1240 = vpack.c.b16 %v1188, %v1184
        %v1241 = vpack.c.b16 %v1189, %v1185
        %v1242 = vpack.c.b16 %v1190, %v1186
        %v1243 = vpack.c.b16 %v1195, %v1191
        %v1244 = vpack.c.b16 %v1196, %v1192
        %v1245 = vpack.c.b16 %v1197, %v1193
        %v1246 = vpack.c.b16 %v1198, %v1194
        %v1247 = vpack.c.b16 %v1203, %v1199
        %v1248 = vpack.c.b16 %v1204, %v1200
        %v1249 = vpack.c.b16 %v1205, %v1201
        %v1250 = vpack.c.b16 %v1206, %v1202
        %v1251 = vpack.c.b16 %v1211, %v1207
        %v1252 = vpack.c.b16 %v1212, %v1208
        %v1253 = vpack.c.b16 %v1213, %v1209
        %v1254 = vpack.c.b16 %v1214, %v1210
        %v1255 = vpack.c.b16 %v1219, %v1215
        %v1256 = vpack.c.b16 %v1220, %v1216
        %v1257 = vpack.c.b16 %v1221, %v1217
        %v1258 = vpack.c.b16 %v1222, %v1218
        %v1259 = vpack.c.b16 %v1227, %v1223
        %v1260 = vpack.c.b16 %v1228, %v1224
        %v1261 = vpack.c.b16 %v1229, %v1225
        %v1262 = vpack.c.b16 %v1230, %v1226
        %1295 = vmatprep.subr.bf16.mxu0 %v1232
        %1296 = vmatpush1.bf16.msra.mxu0 %v1231
        %1297 = vmatprep.subr.bf16.mxu0 %v1236
        %1298 = vmatpush1.bf16.msra.mxu0 %v1235
        %1299 = vmatprep.subr.bf16.mxu0 %v1240
        %1300 = vmatpush1.bf16.msra.mxu0 %v1239
        %1301 = vmatprep.subr.bf16.mxu0 %v1244
        %1302 = vmatpush1.bf16.msra.mxu0 %v1243
        %1303 = vmatprep.subr.bf16.mxu0 %v1248
        %1304 = vmatpush1.bf16.msra.mxu0 %v1247
        %1305 = vmatprep.subr.bf16.mxu0 %v1252
        %1306 = vmatpush1.bf16.msra.mxu0 %v1251
        %1307 = vmatprep.subr.bf16.mxu0 %v1256
        %1308 = vmatpush1.bf16.msra.mxu0 %v1255
        %1309 = vmatprep.subr.bf16.mxu0 %v1260
        %1310 = vmatpush1.bf16.msra.mxu0 %v1259
        %1311 = vmatprep.subr.bf16.mxu0 0
        %1312 = vmatpush1.bf16.msra.mxu0 0
        %1313 = vmatprep.subr.bf16.mxu0 0
        %1314 = vmatpush1.bf16.msra.mxu0 0
        %1315 = vmatprep.subr.bf16.mxu0 0
        %1316 = vmatpush1.bf16.msra.mxu0 0
        %1317 = vmatprep.subr.bf16.mxu0 0
        %1318 = vmatpush1.bf16.msra.mxu0 0
        %1319 = vmatprep.subr.bf16.mxu0 0
        %1320 = vmatpush1.bf16.msra.mxu0 0
        %1321 = vmatprep.subr.bf16.mxu0 0
        %1322 = vmatpush1.bf16.msra.mxu0 0
        %1323 = vmatprep.subr.bf16.mxu0 0
        %1324 = vmatpush1.bf16.msra.mxu0 0
        %1325 = vmatprep.subr.bf16.mxu0 0
        %1326 = vmatpush1.bf16.msra.mxu0 0
        %1327 = vmatprep.mubr.bf16.mxu0 0
        %1328 = vmatmul.mubr.bf16.gmra.mrb[0].mxu0 %v1099
        %v1329 = vpop.f32.mrb[0].mxu0
        %v1330 = vadd.f32 0.0, %v1329
        %v1331 = vpop.f32.mrb[0].mxu0
        %v1332 = vadd.f32 0.0, %v1331
        %v1333 = vpop.f32.mrb[0].mxu0
        %v1334 = vpop.f32.mrb[0].mxu0
        %1335 = vdwg.mxu0
        %1336 = vmatprep.subr.bf16.mxu0 %v1234
        %1337 = vmatpush1.bf16.msra.mxu0 %v1233
        %1338 = vmatprep.subr.bf16.mxu0 %v1238
        %1339 = vmatpush1.bf16.msra.mxu0 %v1237
        %1340 = vmatprep.subr.bf16.mxu0 %v1242
        %1341 = vmatpush1.bf16.msra.mxu0 %v1241
        %1342 = vmatprep.subr.bf16.mxu0 %v1246
        %1343 = vmatpush1.bf16.msra.mxu0 %v1245
        %1344 = vmatprep.subr.bf16.mxu0 %v1250
        %1345 = vmatpush1.bf16.msra.mxu0 %v1249
        %1346 = vmatprep.subr.bf16.mxu0 %v1254
        %1347 = vmatpush1.bf16.msra.mxu0 %v1253
        %1348 = vmatprep.subr.bf16.mxu0 %v1258
        %1349 = vmatpush1.bf16.msra.mxu0 %v1257
        %1350 = vmatprep.subr.bf16.mxu0 %v1262
        %1351 = vmatpush1.bf16.msra.mxu0 %v1261
        %1352 = vmatprep.subr.bf16.mxu0 0
        %1353 = vmatpush1.bf16.msra.mxu0 0
        %1354 = vmatprep.subr.bf16.mxu0 0
        %1355 = vmatpush1.bf16.msra.mxu0 0
        %1356 = vmatprep.subr.bf16.mxu0 0
        %1357 = vmatpush1.bf16.msra.mxu0 0
        %1358 = vmatprep.subr.bf16.mxu0 0
        %1359 = vmatpush1.bf16.msra.mxu0 0
        %1360 = vmatprep.subr.bf16.mxu0 0
        %1361 = vmatpush1.bf16.msra.mxu0 0
        %1362 = vmatprep.subr.bf16.mxu0 0
        %1363 = vmatpush1.bf16.msra.mxu0 0
        %1364 = vmatprep.subr.bf16.mxu0 0
        %1365 = vmatpush1.bf16.msra.mxu0 0
        %1366 = vmatprep.subr.bf16.mxu0 0
        %1367 = vmatpush1.bf16.msra.mxu0 0
        %1368 = vmatprep.mubr.bf16.mxu0 0
        %1369 = vmatmul.mubr.bf16.gmra.mrb[0].mxu0 %v1099
        %v1370 = vpop.f32.mrb[0].mxu0
        %v1371 = vadd.f32 0.0, %v1370
        %v1372 = vpop.f32.mrb[0].mxu0
        %v1373 = vadd.f32 0.0, %v1372
        %v1374 = vpop.f32.mrb[0].mxu0
        %v1375 = vpop.f32.mrb[0].mxu0
        %1376 = vdwg.mxu0
        %s1377 = scalar_lea.vmem [#allocation4], 16
        %v1378 = vld [vmem:[%s1377] sm:$0xff]
        %v1379 = vld [vmem:[%s1377 + $0x8] sm:$0xff]
        %v1380 = vunpack.c.l.bf16 %v1378
        %v1381 = vunpack.c.h.bf16 %v1378
        %v1382 = vunpack.c.l.bf16 %v1379
        %v1383 = vunpack.c.h.bf16 %v1379
        %v1384 = vadd.f32 %v1380, %v1330
        %v1385 = vadd.f32 %v1381, %v1332
        %v1386 = vadd.f32 %v1382, %v1371
        %v1387 = vadd.f32 %v1383, %v1373
        %v1388 = vxor.u32 %v1384, 2147483648
        %v1389 = vmul.f32 %v1388, 1.442695
        %v1390 = vpow.pop %v1389
        %v1391 = vadd.f32 %v1390, 1.0
        %v1392 = vrcp.pop %v1391
        %v1393 = vmul.f32 1.0, %v1392
        %v1394 = vxor.u32 %v1385, 2147483648
        %v1395 = vmul.f32 %v1394, 1.442695
        %v1396 = vpow.pop %v1395
        %v1397 = vadd.f32 %v1396, 1.0
        %v1398 = vrcp.pop %v1397
        %v1399 = vmul.f32 1.0, %v1398
        %v1400 = vtanh.pop %v1386
        %v1401 = vxor.u32 %v1387, 2147483648
        %v1402 = vmul.f32 %v1401, 1.442695
        %v1403 = vpow.pop %v1402
        %v1404 = vadd.f32 %v1403, 1.0
        %v1405 = vrcp.pop %v1404
        %v1406 = vmul.f32 1.0, %v1405
        %v1407 = vmul.f32 %v1399, %v1096
        %v1408 = vmul.f32 %v1393, %v1400
        %v1409 = vadd.f32 %v1407, %v1408
        %v1410 = vtanh.pop %v1409
        %v1411 = vmul.f32 %v1406, %v1410
        %v1412 = vpack.c.bf16 %v1411, %v1411
        %s1413 = scalar_lea.vmem %s359, 4
        %1414 = vst [vmem:[%s1413] sm:$0xf] %v1412
        %v1415 = vld [vmem:[#allocation9] sm:$0xff]
        %v1416 = vld [vmem:[#allocation9 + $0x8] sm:$0xff]
        %v1417 = vld [vmem:[#allocation9 + $0x10] sm:$0xff]
        %v1418 = vld [vmem:[#allocation9 + $0x18] sm:$0xff]
        %v1419 = vld [vmem:[#allocation9 + $0x20] sm:$0xff]
        %v1420 = vld [vmem:[#allocation9 + $0x28] sm:$0xff]
        %v1421 = vld [vmem:[#allocation9 + $0x30] sm:$0xff]
        %v1422 = vld [vmem:[#allocation9 + $0x38] sm:$0xff]
        %v1423 = vld [vmem:[#allocation9 + $0x40] sm:$0xff]
        %v1424 = vld [vmem:[#allocation9 + $0x48] sm:$0xff]
        %v1425 = vld [vmem:[#allocation9 + $0x50] sm:$0xff]
        %v1426 = vld [vmem:[#allocation9 + $0x58] sm:$0xff]
        %v1427 = vld [vmem:[#allocation9 + $0x60] sm:$0xff]
        %v1428 = vld [vmem:[#allocation9 + $0x68] sm:$0xff]
        %v1429 = vld [vmem:[#allocation9 + $0x70] sm:$0xff]
        %v1430 = vld [vmem:[#allocation9 + $0x78] sm:$0xff]
        %v1431 = vld [vmem:[#allocation9 + $0x80] sm:$0xff]
        %v1432 = vld [vmem:[#allocation9 + $0x88] sm:$0xff]
        %v1433 = vld [vmem:[#allocation9 + $0x90] sm:$0xff]
        %v1434 = vld [vmem:[#allocation9 + $0x98] sm:$0xff]
        %v1435 = vld [vmem:[#allocation9 + $0xa0] sm:$0xff]
        %v1436 = vld [vmem:[#allocation9 + $0xa8] sm:$0xff]
        %v1437 = vld [vmem:[#allocation9 + $0xb0] sm:$0xff]
        %v1438 = vld [vmem:[#allocation9 + $0xb8] sm:$0xff]
        %v1439 = vld [vmem:[#allocation9 + $0xc0] sm:$0xff]
        %v1440 = vld [vmem:[#allocation9 + $0xc8] sm:$0xff]
        %v1441 = vld [vmem:[#allocation9 + $0xd0] sm:$0xff]
        %v1442 = vld [vmem:[#allocation9 + $0xd8] sm:$0xff]
        %v1443 = vld [vmem:[#allocation9 + $0xe0] sm:$0xff]
        %v1444 = vld [vmem:[#allocation9 + $0xe8] sm:$0xff]
        %v1445 = vld [vmem:[#allocation9 + $0xf0] sm:$0xff]
        %v1446 = vld [vmem:[#allocation9 + $0xf8] sm:$0xff]
        %v1479 = vunpack.c.l.b16 %v1415
        %v1480 = vunpack.c.h.b16 %v1415
        %v1481 = vunpack.c.l.b16 %v1416
        %v1482 = vunpack.c.h.b16 %v1416
        %v1483 = vunpack.c.l.b16 %v1417
        %v1484 = vunpack.c.h.b16 %v1417
        %v1485 = vunpack.c.l.b16 %v1418
        %v1486 = vunpack.c.h.b16 %v1418
        %v1487 = vunpack.c.l.b16 %v1419
        %v1488 = vunpack.c.h.b16 %v1419
        %v1489 = vunpack.c.l.b16 %v1420
        %v1490 = vunpack.c.h.b16 %v1420
        %v1491 = vunpack.c.l.b16 %v1421
        %v1492 = vunpack.c.h.b16 %v1421
        %v1493 = vunpack.c.l.b16 %v1422
        %v1494 = vunpack.c.h.b16 %v1422
        %v1495 = vunpack.c.l.b16 %v1423
        %v1496 = vunpack.c.h.b16 %v1423
        %v1497 = vunpack.c.l.b16 %v1424
        %v1498 = vunpack.c.h.b16 %v1424
        %v1499 = vunpack.c.l.b16 %v1425
        %v1500 = vunpack.c.h.b16 %v1425
        %v1501 = vunpack.c.l.b16 %v1426
        %v1502 = vunpack.c.h.b16 %v1426
        %v1503 = vunpack.c.l.b16 %v1427
        %v1504 = vunpack.c.h.b16 %v1427
        %v1505 = vunpack.c.l.b16 %v1428
        %v1506 = vunpack.c.h.b16 %v1428
        %v1507 = vunpack.c.l.b16 %v1429
        %v1508 = vunpack.c.h.b16 %v1429
        %v1509 = vunpack.c.l.b16 %v1430
        %v1510 = vunpack.c.h.b16 %v1430
        %v1511 = vunpack.c.l.b16 %v1431
        %v1512 = vunpack.c.h.b16 %v1431
        %v1513 = vunpack.c.l.b16 %v1432
        %v1514 = vunpack.c.h.b16 %v1432
        %v1515 = vunpack.c.l.b16 %v1433
        %v1516 = vunpack.c.h.b16 %v1433
        %v1517 = vunpack.c.l.b16 %v1434
        %v1518 = vunpack.c.h.b16 %v1434
        %v1519 = vunpack.c.l.b16 %v1435
        %v1520 = vunpack.c.h.b16 %v1435
        %v1521 = vunpack.c.l.b16 %v1436
        %v1522 = vunpack.c.h.b16 %v1436
        %v1523 = vunpack.c.l.b16 %v1437
        %v1524 = vunpack.c.h.b16 %v1437
        %v1525 = vunpack.c.l.b16 %v1438
        %v1526 = vunpack.c.h.b16 %v1438
        %v1527 = vunpack.c.l.b16 %v1439
        %v1528 = vunpack.c.h.b16 %v1439
        %v1529 = vunpack.c.l.b16 %v1440
        %v1530 = vunpack.c.h.b16 %v1440
        %v1531 = vunpack.c.l.b16 %v1441
        %v1532 = vunpack.c.h.b16 %v1441
        %v1533 = vunpack.c.l.b16 %v1442
        %v1534 = vunpack.c.h.b16 %v1442
        %v1535 = vunpack.c.l.b16 %v1443
        %v1536 = vunpack.c.h.b16 %v1443
        %v1537 = vunpack.c.l.b16 %v1444
        %v1538 = vunpack.c.h.b16 %v1444
        %v1539 = vunpack.c.l.b16 %v1445
        %v1540 = vunpack.c.h.b16 %v1445
        %v1541 = vunpack.c.l.b16 %v1446
        %v1542 = vunpack.c.h.b16 %v1446
        %v1543 = vpack.c.b16 %v1483, %v1479
        %v1544 = vpack.c.b16 %v1484, %v1480
        %v1545 = vpack.c.b16 %v1485, %v1481
        %v1546 = vpack.c.b16 %v1486, %v1482
        %v1547 = vpack.c.b16 %v1491, %v1487
        %v1548 = vpack.c.b16 %v1492, %v1488
        %v1549 = vpack.c.b16 %v1493, %v1489
        %v1550 = vpack.c.b16 %v1494, %v1490
        %v1551 = vpack.c.b16 %v1499, %v1495
        %v1552 = vpack.c.b16 %v1500, %v1496
        %v1553 = vpack.c.b16 %v1501, %v1497
        %v1554 = vpack.c.b16 %v1502, %v1498
        %v1555 = vpack.c.b16 %v1507, %v1503
        %v1556 = vpack.c.b16 %v1508, %v1504
        %v1557 = vpack.c.b16 %v1509, %v1505
        %v1558 = vpack.c.b16 %v1510, %v1506
        %v1559 = vpack.c.b16 %v1515, %v1511
        %v1560 = vpack.c.b16 %v1516, %v1512
        %v1561 = vpack.c.b16 %v1517, %v1513
        %v1562 = vpack.c.b16 %v1518, %v1514
        %v1563 = vpack.c.b16 %v1523, %v1519
        %v1564 = vpack.c.b16 %v1524, %v1520
        %v1565 = vpack.c.b16 %v1525, %v1521
        %v1566 = vpack.c.b16 %v1526, %v1522
        %v1567 = vpack.c.b16 %v1531, %v1527
        %v1568 = vpack.c.b16 %v1532, %v1528
        %v1569 = vpack.c.b16 %v1533, %v1529
        %v1570 = vpack.c.b16 %v1534, %v1530
        %v1571 = vpack.c.b16 %v1539, %v1535
        %v1572 = vpack.c.b16 %v1540, %v1536
        %v1573 = vpack.c.b16 %v1541, %v1537
        %v1574 = vpack.c.b16 %v1542, %v1538
        %1607 = vmatprep.subr.bf16.mxu0 %v1544
        %1608 = vmatpush1.bf16.msra.mxu0 %v1543
        %1609 = vmatprep.subr.bf16.mxu0 %v1548
        %1610 = vmatpush1.bf16.msra.mxu0 %v1547
        %1611 = vmatprep.subr.bf16.mxu0 %v1552
        %1612 = vmatpush1.bf16.msra.mxu0 %v1551
        %1613 = vmatprep.subr.bf16.mxu0 %v1556
        %1614 = vmatpush1.bf16.msra.mxu0 %v1555
        %1615 = vmatprep.subr.bf16.mxu0 %v1560
        %1616 = vmatpush1.bf16.msra.mxu0 %v1559
        %1617 = vmatprep.subr.bf16.mxu0 %v1564
        %1618 = vmatpush1.bf16.msra.mxu0 %v1563
        %1619 = vmatprep.subr.bf16.mxu0 %v1568
        %1620 = vmatpush1.bf16.msra.mxu0 %v1567
        %1621 = vmatprep.subr.bf16.mxu0 %v1572
        %1622 = vmatpush1.bf16.msra.mxu0 %v1571
        %1623 = vmatprep.subr.bf16.mxu0 0
        %1624 = vmatpush1.bf16.msra.mxu0 0
        %1625 = vmatprep.subr.bf16.mxu0 0
        %1626 = vmatpush1.bf16.msra.mxu0 0
        %1627 = vmatprep.subr.bf16.mxu0 0
        %1628 = vmatpush1.bf16.msra.mxu0 0
        %1629 = vmatprep.subr.bf16.mxu0 0
        %1630 = vmatpush1.bf16.msra.mxu0 0
        %1631 = vmatprep.subr.bf16.mxu0 0
        %1632 = vmatpush1.bf16.msra.mxu0 0
        %1633 = vmatprep.subr.bf16.mxu0 0
        %1634 = vmatpush1.bf16.msra.mxu0 0
        %1635 = vmatprep.subr.bf16.mxu0 0
        %1636 = vmatpush1.bf16.msra.mxu0 0
        %1637 = vmatprep.subr.bf16.mxu0 0
        %1638 = vmatpush1.bf16.msra.mxu0 0
        %1639 = vmatprep.mubr.bf16.mxu0 0
        %1640 = vmatmul.mubr.bf16.gmra.mrb[0].mxu0 %v1101
        %v1641 = vpop.f32.mrb[0].mxu0
        %v1642 = vadd.f32 0.0, %v1641
        %v1643 = vpop.f32.mrb[0].mxu0
        %v1644 = vadd.f32 0.0, %v1643
        %v1645 = vpop.f32.mrb[0].mxu0
        %v1646 = vpop.f32.mrb[0].mxu0
        %1647 = vdwg.mxu0
        %1648 = vmatprep.subr.bf16.mxu0 %v1546
        %1649 = vmatpush1.bf16.msra.mxu0 %v1545
        %1650 = vmatprep.subr.bf16.mxu0 %v1550
        %1651 = vmatpush1.bf16.msra.mxu0 %v1549
        %1652 = vmatprep.subr.bf16.mxu0 %v1554
        %1653 = vmatpush1.bf16.msra.mxu0 %v1553
        %1654 = vmatprep.subr.bf16.mxu0 %v1558
        %1655 = vmatpush1.bf16.msra.mxu0 %v1557
        %1656 = vmatprep.subr.bf16.mxu0 %v1562
        %1657 = vmatpush1.bf16.msra.mxu0 %v1561
        %1658 = vmatprep.subr.bf16.mxu0 %v1566
        %1659 = vmatpush1.bf16.msra.mxu0 %v1565
        %1660 = vmatprep.subr.bf16.mxu0 %v1570
        %1661 = vmatpush1.bf16.msra.mxu0 %v1569
        %1662 = vmatprep.subr.bf16.mxu0 %v1574
        %1663 = vmatpush1.bf16.msra.mxu0 %v1573
        %1664 = vmatprep.subr.bf16.mxu0 0
        %1665 = vmatpush1.bf16.msra.mxu0 0
        %1666 = vmatprep.subr.bf16.mxu0 0
        %1667 = vmatpush1.bf16.msra.mxu0 0
        %1668 = vmatprep.subr.bf16.mxu0 0
        %1669 = vmatpush1.bf16.msra.mxu0 0
        %1670 = vmatprep.subr.bf16.mxu0 0
        %1671 = vmatpush1.bf16.msra.mxu0 0
        %1672 = vmatprep.subr.bf16.mxu0 0
        %1673 = vmatpush1.bf16.msra.mxu0 0
        %1674 = vmatprep.subr.bf16.mxu0 0
        %1675 = vmatpush1.bf16.msra.mxu0 0
        %1676 = vmatprep.subr.bf16.mxu0 0
        %1677 = vmatpush1.bf16.msra.mxu0 0
        %1678 = vmatprep.subr.bf16.mxu0 0
        %1679 = vmatpush1.bf16.msra.mxu0 0
        %1680 = vmatprep.mubr.bf16.mxu0 0
        %1681 = vmatmul.mubr.bf16.gmra.mrb[0].mxu0 %v1101
        %v1682 = vpop.f32.mrb[0].mxu0
        %v1683 = vadd.f32 0.0, %v1682
        %v1684 = vpop.f32.mrb[0].mxu0
        %v1685 = vadd.f32 0.0, %v1684
        %v1686 = vpop.f32.mrb[0].mxu0
        %v1687 = vpop.f32.mrb[0].mxu0
        %1688 = vdwg.mxu0
        %v1689 = vld [vmem:[#allocation7] sm:$0xff]
        %v1690 = vld [vmem:[#allocation7 + $0x8] sm:$0xff]
        %v1691 = vld [vmem:[#allocation7 + $0x10] sm:$0xff]
        %v1692 = vld [vmem:[#allocation7 + $0x18] sm:$0xff]
        %v1693 = vld [vmem:[#allocation7 + $0x20] sm:$0xff]
        %v1694 = vld [vmem:[#allocation7 + $0x28] sm:$0xff]
        %v1695 = vld [vmem:[#allocation7 + $0x30] sm:$0xff]
        %v1696 = vld [vmem:[#allocation7 + $0x38] sm:$0xff]
        %v1697 = vld [vmem:[#allocation7 + $0x40] sm:$0xff]
        %v1698 = vld [vmem:[#allocation7 + $0x48] sm:$0xff]
        %v1699 = vld [vmem:[#allocation7 + $0x50] sm:$0xff]
        %v1700 = vld [vmem:[#allocation7 + $0x58] sm:$0xff]
        %v1701 = vld [vmem:[#allocation7 + $0x60] sm:$0xff]
        %v1702 = vld [vmem:[#allocation7 + $0x68] sm:$0xff]
        %v1703 = vld [vmem:[#allocation7 + $0x70] sm:$0xff]
        %v1704 = vld [vmem:[#allocation7 + $0x78] sm:$0xff]
        %v1705 = vld [vmem:[#allocation7 + $0x80] sm:$0xff]
        %v1706 = vld [vmem:[#allocation7 + $0x88] sm:$0xff]
        %v1707 = vld [vmem:[#allocation7 + $0x90] sm:$0xff]
        %v1708 = vld [vmem:[#allocation7 + $0x98] sm:$0xff]
        %v1709 = vld [vmem:[#allocation7 + $0xa0] sm:$0xff]
        %v1710 = vld [vmem:[#allocation7 + $0xa8] sm:$0xff]
        %v1711 = vld [vmem:[#allocation7 + $0xb0] sm:$0xff]
        %v1712 = vld [vmem:[#allocation7 + $0xb8] sm:$0xff]
        %v1713 = vld [vmem:[#allocation7 + $0xc0] sm:$0xff]
        %v1714 = vld [vmem:[#allocation7 + $0xc8] sm:$0xff]
        %v1715 = vld [vmem:[#allocation7 + $0xd0] sm:$0xff]
        %v1716 = vld [vmem:[#allocation7 + $0xd8] sm:$0xff]
        %v1717 = vld [vmem:[#allocation7 + $0xe0] sm:$0xff]
        %v1718 = vld [vmem:[#allocation7 + $0xe8] sm:$0xff]
        %v1719 = vld [vmem:[#allocation7 + $0xf0] sm:$0xff]
        %v1720 = vld [vmem:[#allocation7 + $0xf8] sm:$0xff]
        %v1721 = vld [vmem:[%s6] sm:$0xf]
        %v1723 = vlaneseq
        %v1724 = vshrl.u32 %v1723, 7
        %v1725 = vsub.s32 0, %v1724
        %v1726 = vrot.slane %v1721, %v1725
        %v1727 = vlaneseq
        %v1728 = vshrl.u32 %v1727, 7
        %v1729 = vsub.s32 1, %v1728
        %v1730 = vrot.slane %v1721, %v1729
        %v1731 = vlaneseq
        %v1732 = vshrl.u32 %v1731, 7
        %v1733 = vsub.s32 2, %v1732
        %v1734 = vrot.slane %v1721, %v1733
        %v1735 = vlaneseq
        %v1736 = vshrl.u32 %v1735, 7
        %v1737 = vsub.s32 3, %v1736
        %v1738 = vrot.slane %v1721, %v1737
        %v1775 = vunpack.c.l.b16 %v1689
        %v1776 = vunpack.c.h.b16 %v1689
        %v1777 = vunpack.c.l.b16 %v1690
        %v1778 = vunpack.c.h.b16 %v1690
        %v1779 = vunpack.c.l.b16 %v1691
        %v1780 = vunpack.c.h.b16 %v1691
        %v1781 = vunpack.c.l.b16 %v1692
        %v1782 = vunpack.c.h.b16 %v1692
        %v1783 = vunpack.c.l.b16 %v1693
        %v1784 = vunpack.c.h.b16 %v1693
        %v1785 = vunpack.c.l.b16 %v1694
        %v1786 = vunpack.c.h.b16 %v1694
        %v1787 = vunpack.c.l.b16 %v1695
        %v1788 = vunpack.c.h.b16 %v1695
        %v1789 = vunpack.c.l.b16 %v1696
        %v1790 = vunpack.c.h.b16 %v1696
        %v1791 = vunpack.c.l.b16 %v1697
        %v1792 = vunpack.c.h.b16 %v1697
        %v1793 = vunpack.c.l.b16 %v1698
        %v1794 = vunpack.c.h.b16 %v1698
        %v1795 = vunpack.c.l.b16 %v1699
        %v1796 = vunpack.c.h.b16 %v1699
        %v1797 = vunpack.c.l.b16 %v1700
        %v1798 = vunpack.c.h.b16 %v1700
        %v1799 = vunpack.c.l.b16 %v1701
        %v1800 = vunpack.c.h.b16 %v1701
        %v1801 = vunpack.c.l.b16 %v1702
        %v1802 = vunpack.c.h.b16 %v1702
        %v1803 = vunpack.c.l.b16 %v1703
        %v1804 = vunpack.c.h.b16 %v1703
        %v1805 = vunpack.c.l.b16 %v1704
        %v1806 = vunpack.c.h.b16 %v1704
        %v1807 = vunpack.c.l.b16 %v1705
        %v1808 = vunpack.c.h.b16 %v1705
        %v1809 = vunpack.c.l.b16 %v1706
        %v1810 = vunpack.c.h.b16 %v1706
        %v1811 = vunpack.c.l.b16 %v1707
        %v1812 = vunpack.c.h.b16 %v1707
        %v1813 = vunpack.c.l.b16 %v1708
        %v1814 = vunpack.c.h.b16 %v1708
        %v1815 = vunpack.c.l.b16 %v1709
        %v1816 = vunpack.c.h.b16 %v1709
        %v1817 = vunpack.c.l.b16 %v1710
        %v1818 = vunpack.c.h.b16 %v1710
        %v1819 = vunpack.c.l.b16 %v1711
        %v1820 = vunpack.c.h.b16 %v1711
        %v1821 = vunpack.c.l.b16 %v1712
        %v1822 = vunpack.c.h.b16 %v1712
        %v1823 = vunpack.c.l.b16 %v1713
        %v1824 = vunpack.c.h.b16 %v1713
        %v1825 = vunpack.c.l.b16 %v1714
        %v1826 = vunpack.c.h.b16 %v1714
        %v1827 = vunpack.c.l.b16 %v1715
        %v1828 = vunpack.c.h.b16 %v1715
        %v1829 = vunpack.c.l.b16 %v1716
        %v1830 = vunpack.c.h.b16 %v1716
        %v1831 = vunpack.c.l.b16 %v1717
        %v1832 = vunpack.c.h.b16 %v1717
        %v1833 = vunpack.c.l.b16 %v1718
        %v1834 = vunpack.c.h.b16 %v1718
        %v1835 = vunpack.c.l.b16 %v1719
        %v1836 = vunpack.c.h.b16 %v1719
        %v1837 = vunpack.c.l.b16 %v1720
        %v1838 = vunpack.c.h.b16 %v1720
        %v1839 = vpack.c.b16 %v1779, %v1775
        %v1840 = vpack.c.b16 %v1780, %v1776
        %v1841 = vpack.c.b16 %v1781, %v1777
        %v1842 = vpack.c.b16 %v1782, %v1778
        %v1843 = vpack.c.b16 %v1787, %v1783
        %v1844 = vpack.c.b16 %v1788, %v1784
        %v1845 = vpack.c.b16 %v1789, %v1785
        %v1846 = vpack.c.b16 %v1790, %v1786
        %v1847 = vpack.c.b16 %v1795, %v1791
        %v1848 = vpack.c.b16 %v1796, %v1792
        %v1849 = vpack.c.b16 %v1797, %v1793
        %v1850 = vpack.c.b16 %v1798, %v1794
        %v1851 = vpack.c.b16 %v1803, %v1799
        %v1852 = vpack.c.b16 %v1804, %v1800
        %v1853 = vpack.c.b16 %v1805, %v1801
        %v1854 = vpack.c.b16 %v1806, %v1802
        %v1855 = vpack.c.b16 %v1811, %v1807
        %v1856 = vpack.c.b16 %v1812, %v1808
        %v1857 = vpack.c.b16 %v1813, %v1809
        %v1858 = vpack.c.b16 %v1814, %v1810
        %v1859 = vpack.c.b16 %v1819, %v1815
        %v1860 = vpack.c.b16 %v1820, %v1816
        %v1861 = vpack.c.b16 %v1821, %v1817
        %v1862 = vpack.c.b16 %v1822, %v1818
        %v1863 = vpack.c.b16 %v1827, %v1823
        %v1864 = vpack.c.b16 %v1828, %v1824
        %v1865 = vpack.c.b16 %v1829, %v1825
        %v1866 = vpack.c.b16 %v1830, %v1826
        %v1867 = vpack.c.b16 %v1835, %v1831
        %v1868 = vpack.c.b16 %v1836, %v1832
        %v1869 = vpack.c.b16 %v1837, %v1833
        %v1870 = vpack.c.b16 %v1838, %v1834
        %1903 = vmatprep.subr.bf16.mxu0 %v1840
        %1904 = vmatpush1.bf16.msra.mxu0 %v1839
        %1905 = vmatprep.subr.bf16.mxu0 %v1844
        %1906 = vmatpush1.bf16.msra.mxu0 %v1843
        %1907 = vmatprep.subr.bf16.mxu0 %v1848
        %1908 = vmatpush1.bf16.msra.mxu0 %v1847
        %1909 = vmatprep.subr.bf16.mxu0 %v1852
        %1910 = vmatpush1.bf16.msra.mxu0 %v1851
        %1911 = vmatprep.subr.bf16.mxu0 %v1856
        %1912 = vmatpush1.bf16.msra.mxu0 %v1855
        %1913 = vmatprep.subr.bf16.mxu0 %v1860
        %1914 = vmatpush1.bf16.msra.mxu0 %v1859
        %1915 = vmatprep.subr.bf16.mxu0 %v1864
        %1916 = vmatpush1.bf16.msra.mxu0 %v1863
        %1917 = vmatprep.subr.bf16.mxu0 %v1868
        %1918 = vmatpush1.bf16.msra.mxu0 %v1867
        %1919 = vmatprep.subr.bf16.mxu0 0
        %1920 = vmatpush1.bf16.msra.mxu0 0
        %1921 = vmatprep.subr.bf16.mxu0 0
        %1922 = vmatpush1.bf16.msra.mxu0 0
        %1923 = vmatprep.subr.bf16.mxu0 0
        %1924 = vmatpush1.bf16.msra.mxu0 0
        %1925 = vmatprep.subr.bf16.mxu0 0
        %1926 = vmatpush1.bf16.msra.mxu0 0
        %1927 = vmatprep.subr.bf16.mxu0 0
        %1928 = vmatpush1.bf16.msra.mxu0 0
        %1929 = vmatprep.subr.bf16.mxu0 0
        %1930 = vmatpush1.bf16.msra.mxu0 0
        %1931 = vmatprep.subr.bf16.mxu0 0
        %1932 = vmatpush1.bf16.msra.mxu0 0
        %1933 = vmatprep.subr.bf16.mxu0 0
        %1934 = vmatpush1.bf16.msra.mxu0 0
        %1935 = vmatprep.mubr.bf16.mxu0 0
        %1936 = vmatmul.mubr.bf16.gmra.mrb[0].mxu0 %v1099
        %v1937 = vpop.f32.mrb[0].mxu0
        %v1938 = vadd.f32 %v1726, %v1937
        %v1939 = vpop.f32.mrb[0].mxu0
        %v1940 = vadd.f32 %v1730, %v1939
        %v1941 = vpop.f32.mrb[0].mxu0
        %v1942 = vpop.f32.mrb[0].mxu0
        %1943 = vdwg.mxu0
        %1944 = vmatprep.subr.bf16.mxu0 %v1842
        %1945 = vmatpush1.bf16.msra.mxu0 %v1841
        %1946 = vmatprep.subr.bf16.mxu0 %v1846
        %1947 = vmatpush1.bf16.msra.mxu0 %v1845
        %1948 = vmatprep.subr.bf16.mxu0 %v1850
        %1949 = vmatpush1.bf16.msra.mxu0 %v1849
        %1950 = vmatprep.subr.bf16.mxu0 %v1854
        %1951 = vmatpush1.bf16.msra.mxu0 %v1853
        %1952 = vmatprep.subr.bf16.mxu0 %v1858
        %1953 = vmatpush1.bf16.msra.mxu0 %v1857
        %1954 = vmatprep.subr.bf16.mxu0 %v1862
        %1955 = vmatpush1.bf16.msra.mxu0 %v1861
        %1956 = vmatprep.subr.bf16.mxu0 %v1866
        %1957 = vmatpush1.bf16.msra.mxu0 %v1865
        %1958 = vmatprep.subr.bf16.mxu0 %v1870
        %1959 = vmatpush1.bf16.msra.mxu0 %v1869
        %1960 = vmatprep.subr.bf16.mxu0 0
        %1961 = vmatpush1.bf16.msra.mxu0 0
        %1962 = vmatprep.subr.bf16.mxu0 0
        %1963 = vmatpush1.bf16.msra.mxu0 0
        %1964 = vmatprep.subr.bf16.mxu0 0
        %1965 = vmatpush1.bf16.msra.mxu0 0
        %1966 = vmatprep.subr.bf16.mxu0 0
        %1967 = vmatpush1.bf16.msra.mxu0 0
        %1968 = vmatprep.subr.bf16.mxu0 0
        %1969 = vmatpush1.bf16.msra.mxu0 0
        %1970 = vmatprep.subr.bf16.mxu0 0
        %1971 = vmatpush1.bf16.msra.mxu0 0
        %1972 = vmatprep.subr.bf16.mxu0 0
        %1973 = vmatpush1.bf16.msra.mxu0 0
        %1974 = vmatprep.subr.bf16.mxu0 0
        %1975 = vmatpush1.bf16.msra.mxu0 0
        %1976 = vmatprep.mubr.bf16.mxu0 0
        %1977 = vmatmul.mubr.bf16.gmra.mrb[0].mxu0 %v1099
        %v1978 = vpop.f32.mrb[0].mxu0
        %v1979 = vadd.f32 %v1734, %v1978
        %v1980 = vpop.f32.mrb[0].mxu0
        %v1981 = vadd.f32 %v1738, %v1980
        %v1982 = vpop.f32.mrb[0].mxu0
        %v1983 = vpop.f32.mrb[0].mxu0
        %1984 = vdwg.mxu0
        %v1985 = vadd.f32 %v1938, %v1642
        %v1986 = vadd.f32 %v1940, %v1644
        %v1987 = vadd.f32 %v1979, %v1683
        %v1988 = vadd.f32 %v1981, %v1685
        %v1989 = vxor.u32 %v1985, 2147483648
        %v1990 = vmul.f32 %v1989, 1.442695
        %v1991 = vpow.pop %v1990
        %v1992 = vadd.f32 %v1991, 1.0
        %v1993 = vrcp.pop %v1992
        %v1994 = vmul.f32 1.0, %v1993
        %v1995 = vxor.u32 %v1986, 2147483648
        %v1996 = vmul.f32 %v1995, 1.442695
        %v1997 = vpow.pop %v1996
        %v1998 = vadd.f32 %v1997, 1.0
        %v1999 = vrcp.pop %v1998
        %v2000 = vmul.f32 1.0, %v1999
        %v2001 = vtanh.pop %v1987
        %v2002 = vxor.u32 %v1988, 2147483648
        %v2003 = vmul.f32 %v2002, 1.442695
        %v2004 = vpow.pop %v2003
        %v2005 = vadd.f32 %v2004, 1.0
        %v2006 = vrcp.pop %v2005
        %v2007 = vmul.f32 1.0, %v2006
        %v2008 = vmul.f32 %v2000, %v789
        %v2009 = vmul.f32 %v1994, %v2001
        %v2010 = vadd.f32 %v2008, %v2009
        %v2011 = vtanh.pop %v2010
        %v2012 = vmul.f32 %v2007, %v2011
        %v2013 = vpack.c.bf16 %v2012, %v2012
        %2014 = vst [vmem:[%s365] sm:$0xf] %v2013
        %v2015 = vld [vmem:[#allocation5] sm:$0xff]
        %v2016 = vld [vmem:[#allocation5 + $0x8] sm:$0xff]
        %v2017 = vld [vmem:[#allocation5 + $0x10] sm:$0xff]
        %v2018 = vld [vmem:[#allocation5 + $0x18] sm:$0xff]
        %v2019 = vld [vmem:[#allocation5 + $0x20] sm:$0xff]
        %v2020 = vld [vmem:[#allocation5 + $0x28] sm:$0xff]
        %v2021 = vld [vmem:[#allocation5 + $0x30] sm:$0xff]
        %v2022 = vld [vmem:[#allocation5 + $0x38] sm:$0xff]
        %v2023 = vld [vmem:[#allocation5 + $0x40] sm:$0xff]
        %v2024 = vld [vmem:[#allocation5 + $0x48] sm:$0xff]
        %v2025 = vld [vmem:[#allocation5 + $0x50] sm:$0xff]
        %v2026 = vld [vmem:[#allocation5 + $0x58] sm:$0xff]
        %v2027 = vld [vmem:[#allocation5 + $0x60] sm:$0xff]
        %v2028 = vld [vmem:[#allocation5 + $0x68] sm:$0xff]
        %v2029 = vld [vmem:[#allocation5 + $0x70] sm:$0xff]
        %v2030 = vld [vmem:[#allocation5 + $0x78] sm:$0xff]
        %v2031 = vld [vmem:[#allocation5 + $0x80] sm:$0xff]
        %v2032 = vld [vmem:[#allocation5 + $0x88] sm:$0xff]
        %v2033 = vld [vmem:[#allocation5 + $0x90] sm:$0xff]
        %v2034 = vld [vmem:[#allocation5 + $0x98] sm:$0xff]
        %v2035 = vld [vmem:[#allocation5 + $0xa0] sm:$0xff]
        %v2036 = vld [vmem:[#allocation5 + $0xa8] sm:$0xff]
        %v2037 = vld [vmem:[#allocation5 + $0xb0] sm:$0xff]
        %v2038 = vld [vmem:[#allocation5 + $0xb8] sm:$0xff]
        %v2039 = vld [vmem:[#allocation5 + $0xc0] sm:$0xff]
        %v2040 = vld [vmem:[#allocation5 + $0xc8] sm:$0xff]
        %v2041 = vld [vmem:[#allocation5 + $0xd0] sm:$0xff]
        %v2042 = vld [vmem:[#allocation5 + $0xd8] sm:$0xff]
        %v2043 = vld [vmem:[#allocation5 + $0xe0] sm:$0xff]
        %v2044 = vld [vmem:[#allocation5 + $0xe8] sm:$0xff]
        %v2045 = vld [vmem:[#allocation5 + $0xf0] sm:$0xff]
        %v2046 = vld [vmem:[#allocation5 + $0xf8] sm:$0xff]
        %v2079 = vunpack.c.l.b16 %v2015
        %v2080 = vunpack.c.h.b16 %v2015
        %v2081 = vunpack.c.l.b16 %v2016
        %v2082 = vunpack.c.h.b16 %v2016
        %v2083 = vunpack.c.l.b16 %v2017
        %v2084 = vunpack.c.h.b16 %v2017
        %v2085 = vunpack.c.l.b16 %v2018
        %v2086 = vunpack.c.h.b16 %v2018
        %v2087 = vunpack.c.l.b16 %v2019
        %v2088 = vunpack.c.h.b16 %v2019
        %v2089 = vunpack.c.l.b16 %v2020
        %v2090 = vunpack.c.h.b16 %v2020
        %v2091 = vunpack.c.l.b16 %v2021
        %v2092 = vunpack.c.h.b16 %v2021
        %v2093 = vunpack.c.l.b16 %v2022
        %v2094 = vunpack.c.h.b16 %v2022
        %v2095 = vunpack.c.l.b16 %v2023
        %v2096 = vunpack.c.h.b16 %v2023
        %v2097 = vunpack.c.l.b16 %v2024
        %v2098 = vunpack.c.h.b16 %v2024
        %v2099 = vunpack.c.l.b16 %v2025
        %v2100 = vunpack.c.h.b16 %v2025
        %v2101 = vunpack.c.l.b16 %v2026
        %v2102 = vunpack.c.h.b16 %v2026
        %v2103 = vunpack.c.l.b16 %v2027
        %v2104 = vunpack.c.h.b16 %v2027
        %v2105 = vunpack.c.l.b16 %v2028
        %v2106 = vunpack.c.h.b16 %v2028
        %v2107 = vunpack.c.l.b16 %v2029
        %v2108 = vunpack.c.h.b16 %v2029
        %v2109 = vunpack.c.l.b16 %v2030
        %v2110 = vunpack.c.h.b16 %v2030
        %v2111 = vunpack.c.l.b16 %v2031
        %v2112 = vunpack.c.h.b16 %v2031
        %v2113 = vunpack.c.l.b16 %v2032
        %v2114 = vunpack.c.h.b16 %v2032
        %v2115 = vunpack.c.l.b16 %v2033
        %v2116 = vunpack.c.h.b16 %v2033
        %v2117 = vunpack.c.l.b16 %v2034
        %v2118 = vunpack.c.h.b16 %v2034
        %v2119 = vunpack.c.l.b16 %v2035
        %v2120 = vunpack.c.h.b16 %v2035
        %v2121 = vunpack.c.l.b16 %v2036
        %v2122 = vunpack.c.h.b16 %v2036
        %v2123 = vunpack.c.l.b16 %v2037
        %v2124 = vunpack.c.h.b16 %v2037
        %v2125 = vunpack.c.l.b16 %v2038
        %v2126 = vunpack.c.h.b16 %v2038
        %v2127 = vunpack.c.l.b16 %v2039
        %v2128 = vunpack.c.h.b16 %v2039
        %v2129 = vunpack.c.l.b16 %v2040
        %v2130 = vunpack.c.h.b16 %v2040
        %v2131 = vunpack.c.l.b16 %v2041
        %v2132 = vunpack.c.h.b16 %v2041
        %v2133 = vunpack.c.l.b16 %v2042
        %v2134 = vunpack.c.h.b16 %v2042
        %v2135 = vunpack.c.l.b16 %v2043
        %v2136 = vunpack.c.h.b16 %v2043
        %v2137 = vunpack.c.l.b16 %v2044
        %v2138 = vunpack.c.h.b16 %v2044
        %v2139 = vunpack.c.l.b16 %v2045
        %v2140 = vunpack.c.h.b16 %v2045
        %v2141 = vunpack.c.l.b16 %v2046
        %v2142 = vunpack.c.h.b16 %v2046
        %v2143 = vpack.c.b16 %v2083, %v2079
        %v2144 = vpack.c.b16 %v2084, %v2080
        %v2145 = vpack.c.b16 %v2085, %v2081
        %v2146 = vpack.c.b16 %v2086, %v2082
        %v2147 = vpack.c.b16 %v2091, %v2087
        %v2148 = vpack.c.b16 %v2092, %v2088
        %v2149 = vpack.c.b16 %v2093, %v2089
        %v2150 = vpack.c.b16 %v2094, %v2090
        %v2151 = vpack.c.b16 %v2099, %v2095
        %v2152 = vpack.c.b16 %v2100, %v2096
        %v2153 = vpack.c.b16 %v2101, %v2097
        %v2154 = vpack.c.b16 %v2102, %v2098
        %v2155 = vpack.c.b16 %v2107, %v2103
        %v2156 = vpack.c.b16 %v2108, %v2104
        %v2157 = vpack.c.b16 %v2109, %v2105
        %v2158 = vpack.c.b16 %v2110, %v2106
        %v2159 = vpack.c.b16 %v2115, %v2111
        %v2160 = vpack.c.b16 %v2116, %v2112
        %v2161 = vpack.c.b16 %v2117, %v2113
        %v2162 = vpack.c.b16 %v2118, %v2114
        %v2163 = vpack.c.b16 %v2123, %v2119
        %v2164 = vpack.c.b16 %v2124, %v2120
        %v2165 = vpack.c.b16 %v2125, %v2121
        %v2166 = vpack.c.b16 %v2126, %v2122
        %v2167 = vpack.c.b16 %v2131, %v2127
        %v2168 = vpack.c.b16 %v2132, %v2128
        %v2169 = vpack.c.b16 %v2133, %v2129
        %v2170 = vpack.c.b16 %v2134, %v2130
        %v2171 = vpack.c.b16 %v2139, %v2135
        %v2172 = vpack.c.b16 %v2140, %v2136
        %v2173 = vpack.c.b16 %v2141, %v2137
        %v2174 = vpack.c.b16 %v2142, %v2138
        %2207 = vmatprep.subr.bf16.mxu0 %v2144
        %2208 = vmatpush1.bf16.msra.mxu0 %v2143
        %2209 = vmatprep.subr.bf16.mxu0 %v2148
        %2210 = vmatpush1.bf16.msra.mxu0 %v2147
        %2211 = vmatprep.subr.bf16.mxu0 %v2152
        %2212 = vmatpush1.bf16.msra.mxu0 %v2151
        %2213 = vmatprep.subr.bf16.mxu0 %v2156
        %2214 = vmatpush1.bf16.msra.mxu0 %v2155
        %2215 = vmatprep.subr.bf16.mxu0 %v2160
        %2216 = vmatpush1.bf16.msra.mxu0 %v2159
        %2217 = vmatprep.subr.bf16.mxu0 %v2164
        %2218 = vmatpush1.bf16.msra.mxu0 %v2163
        %2219 = vmatprep.subr.bf16.mxu0 %v2168
        %2220 = vmatpush1.bf16.msra.mxu0 %v2167
        %2221 = vmatprep.subr.bf16.mxu0 %v2172
        %2222 = vmatpush1.bf16.msra.mxu0 %v2171
        %2223 = vmatprep.subr.bf16.mxu0 0
        %2224 = vmatpush1.bf16.msra.mxu0 0
        %2225 = vmatprep.subr.bf16.mxu0 0
        %2226 = vmatpush1.bf16.msra.mxu0 0
        %2227 = vmatprep.subr.bf16.mxu0 0
        %2228 = vmatpush1.bf16.msra.mxu0 0
        %2229 = vmatprep.subr.bf16.mxu0 0
        %2230 = vmatpush1.bf16.msra.mxu0 0
        %2231 = vmatprep.subr.bf16.mxu0 0
        %2232 = vmatpush1.bf16.msra.mxu0 0
        %2233 = vmatprep.subr.bf16.mxu0 0
        %2234 = vmatpush1.bf16.msra.mxu0 0
        %2235 = vmatprep.subr.bf16.mxu0 0
        %2236 = vmatpush1.bf16.msra.mxu0 0
        %2237 = vmatprep.subr.bf16.mxu0 0
        %2238 = vmatpush1.bf16.msra.mxu0 0
        %2239 = vmatprep.mubr.bf16.mxu0 0
        %2240 = vmatmul.mubr.bf16.gmra.mrb[0].mxu0 %v1412
        %v2241 = vpop.f32.mrb[0].mxu0
        %v2242 = vadd.f32 0.0, %v2241
        %v2243 = vpop.f32.mrb[0].mxu0
        %v2244 = vadd.f32 0.0, %v2243
        %v2245 = vpop.f32.mrb[0].mxu0
        %v2246 = vpop.f32.mrb[0].mxu0
        %2247 = vdwg.mxu0
        %2248 = vmatprep.subr.bf16.mxu0 %v2146
        %2249 = vmatpush1.bf16.msra.mxu0 %v2145
        %2250 = vmatprep.subr.bf16.mxu0 %v2150
        %2251 = vmatpush1.bf16.msra.mxu0 %v2149
        %2252 = vmatprep.subr.bf16.mxu0 %v2154
        %2253 = vmatpush1.bf16.msra.mxu0 %v2153
        %2254 = vmatprep.subr.bf16.mxu0 %v2158
        %2255 = vmatpush1.bf16.msra.mxu0 %v2157
        %2256 = vmatprep.subr.bf16.mxu0 %v2162
        %2257 = vmatpush1.bf16.msra.mxu0 %v2161
        %2258 = vmatprep.subr.bf16.mxu0 %v2166
        %2259 = vmatpush1.bf16.msra.mxu0 %v2165
        %2260 = vmatprep.subr.bf16.mxu0 %v2170
        %2261 = vmatpush1.bf16.msra.mxu0 %v2169
        %2262 = vmatprep.subr.bf16.mxu0 %v2174
        %2263 = vmatpush1.bf16.msra.mxu0 %v2173
        %2264 = vmatprep.subr.bf16.mxu0 0
        %2265 = vmatpush1.bf16.msra.mxu0 0
        %2266 = vmatprep.subr.bf16.mxu0 0
        %2267 = vmatpush1.bf16.msra.mxu0 0
        %2268 = vmatprep.subr.bf16.mxu0 0
        %2269 = vmatpush1.bf16.msra.mxu0 0
        %2270 = vmatprep.subr.bf16.mxu0 0
        %2271 = vmatpush1.bf16.msra.mxu0 0
        %2272 = vmatprep.subr.bf16.mxu0 0
        %2273 = vmatpush1.bf16.msra.mxu0 0
        %2274 = vmatprep.subr.bf16.mxu0 0
        %2275 = vmatpush1.bf16.msra.mxu0 0
        %2276 = vmatprep.subr.bf16.mxu0 0
        %2277 = vmatpush1.bf16.msra.mxu0 0
        %2278 = vmatprep.subr.bf16.mxu0 0
        %2279 = vmatpush1.bf16.msra.mxu0 0
        %2280 = vmatprep.mubr.bf16.mxu0 0
        %2281 = vmatmul.mubr.bf16.gmra.mrb[0].mxu0 %v1412
        %v2282 = vpop.f32.mrb[0].mxu0
        %v2283 = vadd.f32 0.0, %v2282
        %v2284 = vpop.f32.mrb[0].mxu0
        %v2285 = vadd.f32 0.0, %v2284
        %v2286 = vpop.f32.mrb[0].mxu0
        %v2287 = vpop.f32.mrb[0].mxu0
        %2288 = vdwg.mxu0
        %s2289 = scalar_lea.vmem [#allocation4], 32
        %v2290 = vld [vmem:[%s2289] sm:$0xff]
        %v2291 = vld [vmem:[%s2289 + $0x8] sm:$0xff]
        %v2292 = vunpack.c.l.bf16 %v2290
        %v2293 = vunpack.c.h.bf16 %v2290
        %v2294 = vunpack.c.l.bf16 %v2291
        %v2295 = vunpack.c.h.bf16 %v2291
        %v2296 = vadd.f32 %v2292, %v2242
        %v2297 = vadd.f32 %v2293, %v2244
        %v2298 = vadd.f32 %v2294, %v2283
        %v2299 = vadd.f32 %v2295, %v2285
        %v2300 = vxor.u32 %v2296, 2147483648
        %v2301 = vmul.f32 %v2300, 1.442695
        %v2302 = vpow.pop %v2301
        %v2303 = vadd.f32 %v2302, 1.0
        %v2304 = vrcp.pop %v2303
        %v2305 = vmul.f32 1.0, %v2304
        %v2306 = vxor.u32 %v2297, 2147483648
        %v2307 = vmul.f32 %v2306, 1.442695
        %v2308 = vpow.pop %v2307
        %v2309 = vadd.f32 %v2308, 1.0
        %v2310 = vrcp.pop %v2309
        %v2311 = vmul.f32 1.0, %v2310
        %v2312 = vtanh.pop %v2298
        %v2313 = vxor.u32 %v2299, 2147483648
        %v2314 = vmul.f32 %v2313, 1.442695
        %v2315 = vpow.pop %v2314
        %v2316 = vadd.f32 %v2315, 1.0
        %v2317 = vrcp.pop %v2316
        %v2318 = vmul.f32 1.0, %v2317
        %v2319 = vmul.f32 %v2311, %v1409
        %v2320 = vmul.f32 %v2305, %v2312
        %v2321 = vadd.f32 %v2319, %v2320
        %v2322 = vtanh.pop %v2321
        %v2323 = vmul.f32 %v2318, %v2322
        %v2324 = vpack.c.bf16 %v2323, %v2323
        %s2325 = scalar_lea.vmem %s359, 8
        %2326 = vst [vmem:[%s2325] sm:$0xf] %v2324
        %v2327 = vld [vmem:[#allocation9] sm:$0xff]
        %v2328 = vld [vmem:[#allocation9 + $0x8] sm:$0xff]
        %v2329 = vld [vmem:[#allocation9 + $0x10] sm:$0xff]
        %v2330 = vld [vmem:[#allocation9 + $0x18] sm:$0xff]
        %v2331 = vld [vmem:[#allocation9 + $0x20] sm:$0xff]
        %v2332 = vld [vmem:[#allocation9 + $0x28] sm:$0xff]
        %v2333 = vld [vmem:[#allocation9 + $0x30] sm:$0xff]
        %v2334 = vld [vmem:[#allocation9 + $0x38] sm:$0xff]
        %v2335 = vld [vmem:[#allocation9 + $0x40] sm:$0xff]
        %v2336 = vld [vmem:[#allocation9 + $0x48] sm:$0xff]
        %v2337 = vld [vmem:[#allocation9 + $0x50] sm:$0xff]
        %v2338 = vld [vmem:[#allocation9 + $0x58] sm:$0xff]
        %v2339 = vld [vmem:[#allocation9 + $0x60] sm:$0xff]
        %v2340 = vld [vmem:[#allocation9 + $0x68] sm:$0xff]
        %v2341 = vld [vmem:[#allocation9 + $0x70] sm:$0xff]
        %v2342 = vld [vmem:[#allocation9 + $0x78] sm:$0xff]
        %v2343 = vld [vmem:[#allocation9 + $0x80] sm:$0xff]
        %v2344 = vld [vmem:[#allocation9 + $0x88] sm:$0xff]
        %v2345 = vld [vmem:[#allocation9 + $0x90] sm:$0xff]
        %v2346 = vld [vmem:[#allocation9 + $0x98] sm:$0xff]
        %v2347 = vld [vmem:[#allocation9 + $0xa0] sm:$0xff]
        %v2348 = vld [vmem:[#allocation9 + $0xa8] sm:$0xff]
        %v2349 = vld [vmem:[#allocation9 + $0xb0] sm:$0xff]
        %v2350 = vld [vmem:[#allocation9 + $0xb8] sm:$0xff]
        %v2351 = vld [vmem:[#allocation9 + $0xc0] sm:$0xff]
        %v2352 = vld [vmem:[#allocation9 + $0xc8] sm:$0xff]
        %v2353 = vld [vmem:[#allocation9 + $0xd0] sm:$0xff]
        %v2354 = vld [vmem:[#allocation9 + $0xd8] sm:$0xff]
        %v2355 = vld [vmem:[#allocation9 + $0xe0] sm:$0xff]
        %v2356 = vld [vmem:[#allocation9 + $0xe8] sm:$0xff]
        %v2357 = vld [vmem:[#allocation9 + $0xf0] sm:$0xff]
        %v2358 = vld [vmem:[#allocation9 + $0xf8] sm:$0xff]
        %v2391 = vunpack.c.l.b16 %v2327
        %v2392 = vunpack.c.h.b16 %v2327
        %v2393 = vunpack.c.l.b16 %v2328
        %v2394 = vunpack.c.h.b16 %v2328
        %v2395 = vunpack.c.l.b16 %v2329
        %v2396 = vunpack.c.h.b16 %v2329
        %v2397 = vunpack.c.l.b16 %v2330
        %v2398 = vunpack.c.h.b16 %v2330
        %v2399 = vunpack.c.l.b16 %v2331
        %v2400 = vunpack.c.h.b16 %v2331
        %v2401 = vunpack.c.l.b16 %v2332
        %v2402 = vunpack.c.h.b16 %v2332
        %v2403 = vunpack.c.l.b16 %v2333
        %v2404 = vunpack.c.h.b16 %v2333
        %v2405 = vunpack.c.l.b16 %v2334
        %v2406 = vunpack.c.h.b16 %v2334
        %v2407 = vunpack.c.l.b16 %v2335
        %v2408 = vunpack.c.h.b16 %v2335
        %v2409 = vunpack.c.l.b16 %v2336
        %v2410 = vunpack.c.h.b16 %v2336
        %v2411 = vunpack.c.l.b16 %v2337
        %v2412 = vunpack.c.h.b16 %v2337
        %v2413 = vunpack.c.l.b16 %v2338
        %v2414 = vunpack.c.h.b16 %v2338
        %v2415 = vunpack.c.l.b16 %v2339
        %v2416 = vunpack.c.h.b16 %v2339
        %v2417 = vunpack.c.l.b16 %v2340
        %v2418 = vunpack.c.h.b16 %v2340
        %v2419 = vunpack.c.l.b16 %v2341
        %v2420 = vunpack.c.h.b16 %v2341
        %v2421 = vunpack.c.l.b16 %v2342
        %v2422 = vunpack.c.h.b16 %v2342
        %v2423 = vunpack.c.l.b16 %v2343
        %v2424 = vunpack.c.h.b16 %v2343
        %v2425 = vunpack.c.l.b16 %v2344
        %v2426 = vunpack.c.h.b16 %v2344
        %v2427 = vunpack.c.l.b16 %v2345
        %v2428 = vunpack.c.h.b16 %v2345
        %v2429 = vunpack.c.l.b16 %v2346
        %v2430 = vunpack.c.h.b16 %v2346
        %v2431 = vunpack.c.l.b16 %v2347
        %v2432 = vunpack.c.h.b16 %v2347
        %v2433 = vunpack.c.l.b16 %v2348
        %v2434 = vunpack.c.h.b16 %v2348
        %v2435 = vunpack.c.l.b16 %v2349
        %v2436 = vunpack.c.h.b16 %v2349
        %v2437 = vunpack.c.l.b16 %v2350
        %v2438 = vunpack.c.h.b16 %v2350
        %v2439 = vunpack.c.l.b16 %v2351
        %v2440 = vunpack.c.h.b16 %v2351
        %v2441 = vunpack.c.l.b16 %v2352
        %v2442 = vunpack.c.h.b16 %v2352
        %v2443 = vunpack.c.l.b16 %v2353
        %v2444 = vunpack.c.h.b16 %v2353
        %v2445 = vunpack.c.l.b16 %v2354
        %v2446 = vunpack.c.h.b16 %v2354
        %v2447 = vunpack.c.l.b16 %v2355
        %v2448 = vunpack.c.h.b16 %v2355
        %v2449 = vunpack.c.l.b16 %v2356
        %v2450 = vunpack.c.h.b16 %v2356
        %v2451 = vunpack.c.l.b16 %v2357
        %v2452 = vunpack.c.h.b16 %v2357
        %v2453 = vunpack.c.l.b16 %v2358
        %v2454 = vunpack.c.h.b16 %v2358
        %v2455 = vpack.c.b16 %v2395, %v2391
        %v2456 = vpack.c.b16 %v2396, %v2392
        %v2457 = vpack.c.b16 %v2397, %v2393
        %v2458 = vpack.c.b16 %v2398, %v2394
        %v2459 = vpack.c.b16 %v2403, %v2399
        %v2460 = vpack.c.b16 %v2404, %v2400
        %v2461 = vpack.c.b16 %v2405, %v2401
        %v2462 = vpack.c.b16 %v2406, %v2402
        %v2463 = vpack.c.b16 %v2411, %v2407
        %v2464 = vpack.c.b16 %v2412, %v2408
        %v2465 = vpack.c.b16 %v2413, %v2409
        %v2466 = vpack.c.b16 %v2414, %v2410
        %v2467 = vpack.c.b16 %v2419, %v2415
        %v2468 = vpack.c.b16 %v2420, %v2416
        %v2469 = vpack.c.b16 %v2421, %v2417
        %v2470 = vpack.c.b16 %v2422, %v2418
        %v2471 = vpack.c.b16 %v2427, %v2423
        %v2472 = vpack.c.b16 %v2428, %v2424
        %v2473 = vpack.c.b16 %v2429, %v2425
        %v2474 = vpack.c.b16 %v2430, %v2426
        %v2475 = vpack.c.b16 %v2435, %v2431
        %v2476 = vpack.c.b16 %v2436, %v2432
        %v2477 = vpack.c.b16 %v2437, %v2433
        %v2478 = vpack.c.b16 %v2438, %v2434
        %v2479 = vpack.c.b16 %v2443, %v2439
        %v2480 = vpack.c.b16 %v2444, %v2440
        %v2481 = vpack.c.b16 %v2445, %v2441
        %v2482 = vpack.c.b16 %v2446, %v2442
        %v2483 = vpack.c.b16 %v2451, %v2447
        %v2484 = vpack.c.b16 %v2452, %v2448
        %v2485 = vpack.c.b16 %v2453, %v2449
        %v2486 = vpack.c.b16 %v2454, %v2450
        %2519 = vmatprep.subr.bf16.mxu0 %v2456
        %2520 = vmatpush1.bf16.msra.mxu0 %v2455
        %2521 = vmatprep.subr.bf16.mxu0 %v2460
        %2522 = vmatpush1.bf16.msra.mxu0 %v2459
        %2523 = vmatprep.subr.bf16.mxu0 %v2464
        %2524 = vmatpush1.bf16.msra.mxu0 %v2463
        %2525 = vmatprep.subr.bf16.mxu0 %v2468
        %2526 = vmatpush1.bf16.msra.mxu0 %v2467
        %2527 = vmatprep.subr.bf16.mxu0 %v2472
        %2528 = vmatpush1.bf16.msra.mxu0 %v2471
        %2529 = vmatprep.subr.bf16.mxu0 %v2476
        %2530 = vmatpush1.bf16.msra.mxu0 %v2475
        %2531 = vmatprep.subr.bf16.mxu0 %v2480
        %2532 = vmatpush1.bf16.msra.mxu0 %v2479
        %2533 = vmatprep.subr.bf16.mxu0 %v2484
        %2534 = vmatpush1.bf16.msra.mxu0 %v2483
        %2535 = vmatprep.subr.bf16.mxu0 0
        %2536 = vmatpush1.bf16.msra.mxu0 0
        %2537 = vmatprep.subr.bf16.mxu0 0
        %2538 = vmatpush1.bf16.msra.mxu0 0
        %2539 = vmatprep.subr.bf16.mxu0 0
        %2540 = vmatpush1.bf16.msra.mxu0 0
        %2541 = vmatprep.subr.bf16.mxu0 0
        %2542 = vmatpush1.bf16.msra.mxu0 0
        %2543 = vmatprep.subr.bf16.mxu0 0
        %2544 = vmatpush1.bf16.msra.mxu0 0
        %2545 = vmatprep.subr.bf16.mxu0 0
        %2546 = vmatpush1.bf16.msra.mxu0 0
        %2547 = vmatprep.subr.bf16.mxu0 0
        %2548 = vmatpush1.bf16.msra.mxu0 0
        %2549 = vmatprep.subr.bf16.mxu0 0
        %2550 = vmatpush1.bf16.msra.mxu0 0
        %2551 = vmatprep.mubr.bf16.mxu0 0
        %2552 = vmatmul.mubr.bf16.gmra.mrb[0].mxu0 %v2013
        %v2553 = vpop.f32.mrb[0].mxu0
        %v2554 = vadd.f32 0.0, %v2553
        %v2555 = vpop.f32.mrb[0].mxu0
        %v2556 = vadd.f32 0.0, %v2555
        %v2557 = vpop.f32.mrb[0].mxu0
        %v2558 = vpop.f32.mrb[0].mxu0
        %2559 = vdwg.mxu0
        %2560 = vmatprep.subr.bf16.mxu0 %v2458
        %2561 = vmatpush1.bf16.msra.mxu0 %v2457
        %2562 = vmatprep.subr.bf16.mxu0 %v2462
        %2563 = vmatpush1.bf16.msra.mxu0 %v2461
        %2564 = vmatprep.subr.bf16.mxu0 %v2466
        %2565 = vmatpush1.bf16.msra.mxu0 %v2465
        %2566 = vmatprep.subr.bf16.mxu0 %v2470
        %2567 = vmatpush1.bf16.msra.mxu0 %v2469
        %2568 = vmatprep.subr.bf16.mxu0 %v2474
        %2569 = vmatpush1.bf16.msra.mxu0 %v2473
        %2570 = vmatprep.subr.bf16.mxu0 %v2478
        %2571 = vmatpush1.bf16.msra.mxu0 %v2477
        %2572 = vmatprep.subr.bf16.mxu0 %v2482
        %2573 = vmatpush1.bf16.msra.mxu0 %v2481
        %2574 = vmatprep.subr.bf16.mxu0 %v2486
        %2575 = vmatpush1.bf16.msra.mxu0 %v2485
        %2576 = vmatprep.subr.bf16.mxu0 0
        %2577 = vmatpush1.bf16.msra.mxu0 0
        %2578 = vmatprep.subr.bf16.mxu0 0
        %2579 = vmatpush1.bf16.msra.mxu0 0
        %2580 = vmatprep.subr.bf16.mxu0 0
        %2581 = vmatpush1.bf16.msra.mxu0 0
        %2582 = vmatprep.subr.bf16.mxu0 0
        %2583 = vmatpush1.bf16.msra.mxu0 0
        %2584 = vmatprep.subr.bf16.mxu0 0
        %2585 = vmatpush1.bf16.msra.mxu0 0
        %2586 = vmatprep.subr.bf16.mxu0 0
        %2587 = vmatpush1.bf16.msra.mxu0 0
        %2588 = vmatprep.subr.bf16.mxu0 0
        %2589 = vmatpush1.bf16.msra.mxu0 0
        %2590 = vmatprep.subr.bf16.mxu0 0
        %2591 = vmatpush1.bf16.msra.mxu0 0
        %2592 = vmatprep.mubr.bf16.mxu0 0
        %2593 = vmatmul.mubr.bf16.gmra.mrb[0].mxu0 %v2013
        %v2594 = vpop.f32.mrb[0].mxu0
        %v2595 = vadd.f32 0.0, %v2594
        %v2596 = vpop.f32.mrb[0].mxu0
        %v2597 = vadd.f32 0.0, %v2596
        %v2598 = vpop.f32.mrb[0].mxu0
        %v2599 = vpop.f32.mrb[0].mxu0
        %2600 = vdwg.mxu0
        %v2601 = vld [vmem:[#allocation7] sm:$0xff]
        %v2602 = vld [vmem:[#allocation7 + $0x8] sm:$0xff]
        %v2603 = vld [vmem:[#allocation7 + $0x10] sm:$0xff]
        %v2604 = vld [vmem:[#allocation7 + $0x18] sm:$0xff]
        %v2605 = vld [vmem:[#allocation7 + $0x20] sm:$0xff]
        %v2606 = vld [vmem:[#allocation7 + $0x28] sm:$0xff]
        %v2607 = vld [vmem:[#allocation7 + $0x30] sm:$0xff]
        %v2608 = vld [vmem:[#allocation7 + $0x38] sm:$0xff]
        %v2609 = vld [vmem:[#allocation7 + $0x40] sm:$0xff]
        %v2610 = vld [vmem:[#allocation7 + $0x48] sm:$0xff]
        %v2611 = vld [vmem:[#allocation7 + $0x50] sm:$0xff]
        %v2612 = vld [vmem:[#allocation7 + $0x58] sm:$0xff]
        %v2613 = vld [vmem:[#allocation7 + $0x60] sm:$0xff]
        %v2614 = vld [vmem:[#allocation7 + $0x68] sm:$0xff]
        %v2615 = vld [vmem:[#allocation7 + $0x70] sm:$0xff]
        %v2616 = vld [vmem:[#allocation7 + $0x78] sm:$0xff]
        %v2617 = vld [vmem:[#allocation7 + $0x80] sm:$0xff]
        %v2618 = vld [vmem:[#allocation7 + $0x88] sm:$0xff]
        %v2619 = vld [vmem:[#allocation7 + $0x90] sm:$0xff]
        %v2620 = vld [vmem:[#allocation7 + $0x98] sm:$0xff]
        %v2621 = vld [vmem:[#allocation7 + $0xa0] sm:$0xff]
        %v2622 = vld [vmem:[#allocation7 + $0xa8] sm:$0xff]
        %v2623 = vld [vmem:[#allocation7 + $0xb0] sm:$0xff]
        %v2624 = vld [vmem:[#allocation7 + $0xb8] sm:$0xff]
        %v2625 = vld [vmem:[#allocation7 + $0xc0] sm:$0xff]
        %v2626 = vld [vmem:[#allocation7 + $0xc8] sm:$0xff]
        %v2627 = vld [vmem:[#allocation7 + $0xd0] sm:$0xff]
        %v2628 = vld [vmem:[#allocation7 + $0xd8] sm:$0xff]
        %v2629 = vld [vmem:[#allocation7 + $0xe0] sm:$0xff]
        %v2630 = vld [vmem:[#allocation7 + $0xe8] sm:$0xff]
        %v2631 = vld [vmem:[#allocation7 + $0xf0] sm:$0xff]
        %v2632 = vld [vmem:[#allocation7 + $0xf8] sm:$0xff]
        %v2633 = vld [vmem:[%s6] sm:$0xf]
        %v2635 = vlaneseq
        %v2636 = vshrl.u32 %v2635, 7
        %v2637 = vsub.s32 0, %v2636
        %v2638 = vrot.slane %v2633, %v2637
        %v2639 = vlaneseq
        %v2640 = vshrl.u32 %v2639, 7
        %v2641 = vsub.s32 1, %v2640
        %v2642 = vrot.slane %v2633, %v2641
        %v2643 = vlaneseq
        %v2644 = vshrl.u32 %v2643, 7
        %v2645 = vsub.s32 2, %v2644
        %v2646 = vrot.slane %v2633, %v2645
        %v2647 = vlaneseq
        %v2648 = vshrl.u32 %v2647, 7
        %v2649 = vsub.s32 3, %v2648
        %v2650 = vrot.slane %v2633, %v2649
        %v2687 = vunpack.c.l.b16 %v2601
        %v2688 = vunpack.c.h.b16 %v2601
        %v2689 = vunpack.c.l.b16 %v2602
        %v2690 = vunpack.c.h.b16 %v2602
        %v2691 = vunpack.c.l.b16 %v2603
        %v2692 = vunpack.c.h.b16 %v2603
        %v2693 = vunpack.c.l.b16 %v2604
        %v2694 = vunpack.c.h.b16 %v2604
        %v2695 = vunpack.c.l.b16 %v2605
        %v2696 = vunpack.c.h.b16 %v2605
        %v2697 = vunpack.c.l.b16 %v2606
        %v2698 = vunpack.c.h.b16 %v2606
        %v2699 = vunpack.c.l.b16 %v2607
        %v2700 = vunpack.c.h.b16 %v2607
        %v2701 = vunpack.c.l.b16 %v2608
        %v2702 = vunpack.c.h.b16 %v2608
        %v2703 = vunpack.c.l.b16 %v2609
        %v2704 = vunpack.c.h.b16 %v2609
        %v2705 = vunpack.c.l.b16 %v2610
        %v2706 = vunpack.c.h.b16 %v2610
        %v2707 = vunpack.c.l.b16 %v2611
        %v2708 = vunpack.c.h.b16 %v2611
        %v2709 = vunpack.c.l.b16 %v2612
        %v2710 = vunpack.c.h.b16 %v2612
        %v2711 = vunpack.c.l.b16 %v2613
        %v2712 = vunpack.c.h.b16 %v2613
        %v2713 = vunpack.c.l.b16 %v2614
        %v2714 = vunpack.c.h.b16 %v2614
        %v2715 = vunpack.c.l.b16 %v2615
        %v2716 = vunpack.c.h.b16 %v2615
        %v2717 = vunpack.c.l.b16 %v2616
        %v2718 = vunpack.c.h.b16 %v2616
        %v2719 = vunpack.c.l.b16 %v2617
        %v2720 = vunpack.c.h.b16 %v2617
        %v2721 = vunpack.c.l.b16 %v2618
        %v2722 = vunpack.c.h.b16 %v2618
        %v2723 = vunpack.c.l.b16 %v2619
        %v2724 = vunpack.c.h.b16 %v2619
        %v2725 = vunpack.c.l.b16 %v2620
        %v2726 = vunpack.c.h.b16 %v2620
        %v2727 = vunpack.c.l.b16 %v2621
        %v2728 = vunpack.c.h.b16 %v2621
        %v2729 = vunpack.c.l.b16 %v2622
        %v2730 = vunpack.c.h.b16 %v2622
        %v2731 = vunpack.c.l.b16 %v2623
        %v2732 = vunpack.c.h.b16 %v2623
        %v2733 = vunpack.c.l.b16 %v2624
        %v2734 = vunpack.c.h.b16 %v2624
        %v2735 = vunpack.c.l.b16 %v2625
        %v2736 = vunpack.c.h.b16 %v2625
        %v2737 = vunpack.c.l.b16 %v2626
        %v2738 = vunpack.c.h.b16 %v2626
        %v2739 = vunpack.c.l.b16 %v2627
        %v2740 = vunpack.c.h.b16 %v2627
        %v2741 = vunpack.c.l.b16 %v2628
        %v2742 = vunpack.c.h.b16 %v2628
        %v2743 = vunpack.c.l.b16 %v2629
        %v2744 = vunpack.c.h.b16 %v2629
        %v2745 = vunpack.c.l.b16 %v2630
        %v2746 = vunpack.c.h.b16 %v2630
        %v2747 = vunpack.c.l.b16 %v2631
        %v2748 = vunpack.c.h.b16 %v2631
        %v2749 = vunpack.c.l.b16 %v2632
        %v2750 = vunpack.c.h.b16 %v2632
        %v2751 = vpack.c.b16 %v2691, %v2687
        %v2752 = vpack.c.b16 %v2692, %v2688
        %v2753 = vpack.c.b16 %v2693, %v2689
        %v2754 = vpack.c.b16 %v2694, %v2690
        %v2755 = vpack.c.b16 %v2699, %v2695
        %v2756 = vpack.c.b16 %v2700, %v2696
        %v2757 = vpack.c.b16 %v2701, %v2697
        %v2758 = vpack.c.b16 %v2702, %v2698
        %v2759 = vpack.c.b16 %v2707, %v2703
        %v2760 = vpack.c.b16 %v2708, %v2704
        %v2761 = vpack.c.b16 %v2709, %v2705
        %v2762 = vpack.c.b16 %v2710, %v2706
        %v2763 = vpack.c.b16 %v2715, %v2711
        %v2764 = vpack.c.b16 %v2716, %v2712
        %v2765 = vpack.c.b16 %v2717, %v2713
        %v2766 = vpack.c.b16 %v2718, %v2714
        %v2767 = vpack.c.b16 %v2723, %v2719
        %v2768 = vpack.c.b16 %v2724, %v2720
        %v2769 = vpack.c.b16 %v2725, %v2721
        %v2770 = vpack.c.b16 %v2726, %v2722
        %v2771 = vpack.c.b16 %v2731, %v2727
        %v2772 = vpack.c.b16 %v2732, %v2728
        %v2773 = vpack.c.b16 %v2733, %v2729
        %v2774 = vpack.c.b16 %v2734, %v2730
        %v2775 = vpack.c.b16 %v2739, %v2735
        %v2776 = vpack.c.b16 %v2740, %v2736
        %v2777 = vpack.c.b16 %v2741, %v2737
        %v2778 = vpack.c.b16 %v2742, %v2738
        %v2779 = vpack.c.b16 %v2747, %v2743
        %v2780 = vpack.c.b16 %v2748, %v2744
        %v2781 = vpack.c.b16 %v2749, %v2745
        %v2782 = vpack.c.b16 %v2750, %v2746
        %2815 = vmatprep.subr.bf16.mxu0 %v2752
        %2816 = vmatpush1.bf16.msra.mxu0 %v2751
        %2817 = vmatprep.subr.bf16.mxu0 %v2756
        %2818 = vmatpush1.bf16.msra.mxu0 %v2755
        %2819 = vmatprep.subr.bf16.mxu0 %v2760
        %2820 = vmatpush1.bf16.msra.mxu0 %v2759
        %2821 = vmatprep.subr.bf16.mxu0 %v2764
        %2822 = vmatpush1.bf16.msra.mxu0 %v2763
        %2823 = vmatprep.subr.bf16.mxu0 %v2768
        %2824 = vmatpush1.bf16.msra.mxu0 %v2767
        %2825 = vmatprep.subr.bf16.mxu0 %v2772
        %2826 = vmatpush1.bf16.msra.mxu0 %v2771
        %2827 = vmatprep.subr.bf16.mxu0 %v2776
        %2828 = vmatpush1.bf16.msra.mxu0 %v2775
        %2829 = vmatprep.subr.bf16.mxu0 %v2780
        %2830 = vmatpush1.bf16.msra.mxu0 %v2779
        %2831 = vmatprep.subr.bf16.mxu0 0
        %2832 = vmatpush1.bf16.msra.mxu0 0
        %2833 = vmatprep.subr.bf16.mxu0 0
        %2834 = vmatpush1.bf16.msra.mxu0 0
        %2835 = vmatprep.subr.bf16.mxu0 0
        %2836 = vmatpush1.bf16.msra.mxu0 0
        %2837 = vmatprep.subr.bf16.mxu0 0
        %2838 = vmatpush1.bf16.msra.mxu0 0
        %2839 = vmatprep.subr.bf16.mxu0 0
        %2840 = vmatpush1.bf16.msra.mxu0 0
        %2841 = vmatprep.subr.bf16.mxu0 0
        %2842 = vmatpush1.bf16.msra.mxu0 0
        %2843 = vmatprep.subr.bf16.mxu0 0
        %2844 = vmatpush1.bf16.msra.mxu0 0
        %2845 = vmatprep.subr.bf16.mxu0 0
        %2846 = vmatpush1.bf16.msra.mxu0 0
        %2847 = vmatprep.mubr.bf16.mxu0 0
        %2848 = vmatmul.mubr.bf16.gmra.mrb[0].mxu0 %v1412
        %v2849 = vpop.f32.mrb[0].mxu0
        %v2850 = vadd.f32 %v2638, %v2849
        %v2851 = vpop.f32.mrb[0].mxu0
        %v2852 = vadd.f32 %v2642, %v2851
        %v2853 = vpop.f32.mrb[0].mxu0
        %v2854 = vpop.f32.mrb[0].mxu0
        %2855 = vdwg.mxu0
        %2856 = vmatprep.subr.bf16.mxu0 %v2754
        %2857 = vmatpush1.bf16.msra.mxu0 %v2753
        %2858 = vmatprep.subr.bf16.mxu0 %v2758
        %2859 = vmatpush1.bf16.msra.mxu0 %v2757
        %2860 = vmatprep.subr.bf16.mxu0 %v2762
        %2861 = vmatpush1.bf16.msra.mxu0 %v2761
        %2862 = vmatprep.subr.bf16.mxu0 %v2766
        %2863 = vmatpush1.bf16.msra.mxu0 %v2765
        %2864 = vmatprep.subr.bf16.mxu0 %v2770
        %2865 = vmatpush1.bf16.msra.mxu0 %v2769
        %2866 = vmatprep.subr.bf16.mxu0 %v2774
        %2867 = vmatpush1.bf16.msra.mxu0 %v2773
        %2868 = vmatprep.subr.bf16.mxu0 %v2778
        %2869 = vmatpush1.bf16.msra.mxu0 %v2777
        %2870 = vmatprep.subr.bf16.mxu0 %v2782
        %2871 = vmatpush1.bf16.msra.mxu0 %v2781
        %2872 = vmatprep.subr.bf16.mxu0 0
        %2873 = vmatpush1.bf16.msra.mxu0 0
        %2874 = vmatprep.subr.bf16.mxu0 0
        %2875 = vmatpush1.bf16.msra.mxu0 0
        %2876 = vmatprep.subr.bf16.mxu0 0
        %2877 = vmatpush1.bf16.msra.mxu0 0
        %2878 = vmatprep.subr.bf16.mxu0 0
        %2879 = vmatpush1.bf16.msra.mxu0 0
        %2880 = vmatprep.subr.bf16.mxu0 0
        %2881 = vmatpush1.bf16.msra.mxu0 0
        %2882 = vmatprep.subr.bf16.mxu0 0
        %2883 = vmatpush1.bf16.msra.mxu0 0
        %2884 = vmatprep.subr.bf16.mxu0 0
        %2885 = vmatpush1.bf16.msra.mxu0 0
        %2886 = vmatprep.subr.bf16.mxu0 0
        %2887 = vmatpush1.bf16.msra.mxu0 0
        %2888 = vmatprep.mubr.bf16.mxu0 0
        %2889 = vmatmul.mubr.bf16.gmra.mrb[0].mxu0 %v1412
        %v2890 = vpop.f32.mrb[0].mxu0
        %v2891 = vadd.f32 %v2646, %v2890
        %v2892 = vpop.f32.mrb[0].mxu0
        %v2893 = vadd.f32 %v2650, %v2892
        %v2894 = vpop.f32.mrb[0].mxu0
        %v2895 = vpop.f32.mrb[0].mxu0
        %2896 = vdwg.mxu0
        %v2897 = vadd.f32 %v2850, %v2554
        %v2898 = vadd.f32 %v2852, %v2556
        %v2899 = vadd.f32 %v2891, %v2595
        %v2900 = vadd.f32 %v2893, %v2597
        %v2901 = vxor.u32 %v2897, 2147483648
        %v2902 = vmul.f32 %v2901, 1.442695
        %v2903 = vpow.pop %v2902
        %v2904 = vadd.f32 %v2903, 1.0
        %v2905 = vrcp.pop %v2904
        %v2906 = vmul.f32 1.0, %v2905
        %v2907 = vxor.u32 %v2898, 2147483648
        %v2908 = vmul.f32 %v2907, 1.442695
        %v2909 = vpow.pop %v2908
        %v2910 = vadd.f32 %v2909, 1.0
        %v2911 = vrcp.pop %v2910
        %v2912 = vmul.f32 1.0, %v2911
        %v2913 = vtanh.pop %v2899
        %v2914 = vxor.u32 %v2900, 2147483648
        %v2915 = vmul.f32 %v2914, 1.442695
        %v2916 = vpow.pop %v2915
        %v2917 = vadd.f32 %v2916, 1.0
        %v2918 = vrcp.pop %v2917
        %v2919 = vmul.f32 1.0, %v2918
        %v2920 = vmul.f32 %v2912, %v2010
        %v2921 = vmul.f32 %v2906, %v2913
        %v2922 = vadd.f32 %v2920, %v2921
        %v2923 = vtanh.pop %v2922
        %v2924 = vmul.f32 %v2919, %v2923
        %v2925 = vpack.c.bf16 %v2924, %v2924
        %s2926 = scalar_lea.vmem %s365, 4
        %2927 = vst [vmem:[%s2926] sm:$0xf] %v2925
        %v2928 = vld [vmem:[#allocation5] sm:$0xff]
        %v2929 = vld [vmem:[#allocation5 + $0x8] sm:$0xff]
        %v2930 = vld [vmem:[#allocation5 + $0x10] sm:$0xff]
        %v2931 = vld [vmem:[#allocation5 + $0x18] sm:$0xff]
        %v2932 = vld [vmem:[#allocation5 + $0x20] sm:$0xff]
        %v2933 = vld [vmem:[#allocation5 + $0x28] sm:$0xff]
        %v2934 = vld [vmem:[#allocation5 + $0x30] sm:$0xff]
        %v2935 = vld [vmem:[#allocation5 + $0x38] sm:$0xff]
        %v2936 = vld [vmem:[#allocation5 + $0x40] sm:$0xff]
        %v2937 = vld [vmem:[#allocation5 + $0x48] sm:$0xff]
        %v2938 = vld [vmem:[#allocation5 + $0x50] sm:$0xff]
        %v2939 = vld [vmem:[#allocation5 + $0x58] sm:$0xff]
        %v2940 = vld [vmem:[#allocation5 + $0x60] sm:$0xff]
        %v2941 = vld [vmem:[#allocation5 + $0x68] sm:$0xff]
        %v2942 = vld [vmem:[#allocation5 + $0x70] sm:$0xff]
        %v2943 = vld [vmem:[#allocation5 + $0x78] sm:$0xff]
        %v2944 = vld [vmem:[#allocation5 + $0x80] sm:$0xff]
        %v2945 = vld [vmem:[#allocation5 + $0x88] sm:$0xff]
        %v2946 = vld [vmem:[#allocation5 + $0x90] sm:$0xff]
        %v2947 = vld [vmem:[#allocation5 + $0x98] sm:$0xff]
        %v2948 = vld [vmem:[#allocation5 + $0xa0] sm:$0xff]
        %v2949 = vld [vmem:[#allocation5 + $0xa8] sm:$0xff]
        %v2950 = vld [vmem:[#allocation5 + $0xb0] sm:$0xff]
        %v2951 = vld [vmem:[#allocation5 + $0xb8] sm:$0xff]
        %v2952 = vld [vmem:[#allocation5 + $0xc0] sm:$0xff]
        %v2953 = vld [vmem:[#allocation5 + $0xc8] sm:$0xff]
        %v2954 = vld [vmem:[#allocation5 + $0xd0] sm:$0xff]
        %v2955 = vld [vmem:[#allocation5 + $0xd8] sm:$0xff]
        %v2956 = vld [vmem:[#allocation5 + $0xe0] sm:$0xff]
        %v2957 = vld [vmem:[#allocation5 + $0xe8] sm:$0xff]
        %v2958 = vld [vmem:[#allocation5 + $0xf0] sm:$0xff]
        %v2959 = vld [vmem:[#allocation5 + $0xf8] sm:$0xff]
        %v2992 = vunpack.c.l.b16 %v2928
        %v2993 = vunpack.c.h.b16 %v2928
        %v2994 = vunpack.c.l.b16 %v2929
        %v2995 = vunpack.c.h.b16 %v2929
        %v2996 = vunpack.c.l.b16 %v2930
        %v2997 = vunpack.c.h.b16 %v2930
        %v2998 = vunpack.c.l.b16 %v2931
        %v2999 = vunpack.c.h.b16 %v2931
        %v3000 = vunpack.c.l.b16 %v2932
        %v3001 = vunpack.c.h.b16 %v2932
        %v3002 = vunpack.c.l.b16 %v2933
        %v3003 = vunpack.c.h.b16 %v2933
        %v3004 = vunpack.c.l.b16 %v2934
        %v3005 = vunpack.c.h.b16 %v2934
        %v3006 = vunpack.c.l.b16 %v2935
        %v3007 = vunpack.c.h.b16 %v2935
        %v3008 = vunpack.c.l.b16 %v2936
        %v3009 = vunpack.c.h.b16 %v2936
        %v3010 = vunpack.c.l.b16 %v2937
        %v3011 = vunpack.c.h.b16 %v2937
        %v3012 = vunpack.c.l.b16 %v2938
        %v3013 = vunpack.c.h.b16 %v2938
        %v3014 = vunpack.c.l.b16 %v2939
        %v3015 = vunpack.c.h.b16 %v2939
        %v3016 = vunpack.c.l.b16 %v2940
        %v3017 = vunpack.c.h.b16 %v2940
        %v3018 = vunpack.c.l.b16 %v2941
        %v3019 = vunpack.c.h.b16 %v2941
        %v3020 = vunpack.c.l.b16 %v2942
        %v3021 = vunpack.c.h.b16 %v2942
        %v3022 = vunpack.c.l.b16 %v2943
        %v3023 = vunpack.c.h.b16 %v2943
        %v3024 = vunpack.c.l.b16 %v2944
        %v3025 = vunpack.c.h.b16 %v2944
        %v3026 = vunpack.c.l.b16 %v2945
        %v3027 = vunpack.c.h.b16 %v2945
        %v3028 = vunpack.c.l.b16 %v2946
        %v3029 = vunpack.c.h.b16 %v2946
        %v3030 = vunpack.c.l.b16 %v2947
        %v3031 = vunpack.c.h.b16 %v2947
        %v3032 = vunpack.c.l.b16 %v2948
        %v3033 = vunpack.c.h.b16 %v2948
        %v3034 = vunpack.c.l.b16 %v2949
        %v3035 = vunpack.c.h.b16 %v2949
        %v3036 = vunpack.c.l.b16 %v2950
        %v3037 = vunpack.c.h.b16 %v2950
        %v3038 = vunpack.c.l.b16 %v2951
        %v3039 = vunpack.c.h.b16 %v2951
        %v3040 = vunpack.c.l.b16 %v2952
        %v3041 = vunpack.c.h.b16 %v2952
        %v3042 = vunpack.c.l.b16 %v2953
        %v3043 = vunpack.c.h.b16 %v2953
        %v3044 = vunpack.c.l.b16 %v2954
        %v3045 = vunpack.c.h.b16 %v2954
        %v3046 = vunpack.c.l.b16 %v2955
        %v3047 = vunpack.c.h.b16 %v2955
        %v3048 = vunpack.c.l.b16 %v2956
        %v3049 = vunpack.c.h.b16 %v2956
        %v3050 = vunpack.c.l.b16 %v2957
        %v3051 = vunpack.c.h.b16 %v2957
        %v3052 = vunpack.c.l.b16 %v2958
        %v3053 = vunpack.c.h.b16 %v2958
        %v3054 = vunpack.c.l.b16 %v2959
        %v3055 = vunpack.c.h.b16 %v2959
        %v3056 = vpack.c.b16 %v2996, %v2992
        %v3057 = vpack.c.b16 %v2997, %v2993
        %v3058 = vpack.c.b16 %v2998, %v2994
        %v3059 = vpack.c.b16 %v2999, %v2995
        %v3060 = vpack.c.b16 %v3004, %v3000
        %v3061 = vpack.c.b16 %v3005, %v3001
        %v3062 = vpack.c.b16 %v3006, %v3002
        %v3063 = vpack.c.b16 %v3007, %v3003
        %v3064 = vpack.c.b16 %v3012, %v3008
        %v3065 = vpack.c.b16 %v3013, %v3009
        %v3066 = vpack.c.b16 %v3014, %v3010
        %v3067 = vpack.c.b16 %v3015, %v3011
        %v3068 = vpack.c.b16 %v3020, %v3016
        %v3069 = vpack.c.b16 %v3021, %v3017
        %v3070 = vpack.c.b16 %v3022, %v3018
        %v3071 = vpack.c.b16 %v3023, %v3019
        %v3072 = vpack.c.b16 %v3028, %v3024
        %v3073 = vpack.c.b16 %v3029, %v3025
        %v3074 = vpack.c.b16 %v3030, %v3026
        %v3075 = vpack.c.b16 %v3031, %v3027
        %v3076 = vpack.c.b16 %v3036, %v3032
        %v3077 = vpack.c.b16 %v3037, %v3033
        %v3078 = vpack.c.b16 %v3038, %v3034
        %v3079 = vpack.c.b16 %v3039, %v3035
        %v3080 = vpack.c.b16 %v3044, %v3040
        %v3081 = vpack.c.b16 %v3045, %v3041
        %v3082 = vpack.c.b16 %v3046, %v3042
        %v3083 = vpack.c.b16 %v3047, %v3043
        %v3084 = vpack.c.b16 %v3052, %v3048
        %v3085 = vpack.c.b16 %v3053, %v3049
        %v3086 = vpack.c.b16 %v3054, %v3050
        %v3087 = vpack.c.b16 %v3055, %v3051
        %3120 = vmatprep.subr.bf16.mxu0 %v3057
        %3121 = vmatpush1.bf16.msra.mxu0 %v3056
        %3122 = vmatprep.subr.bf16.mxu0 %v3061
        %3123 = vmatpush1.bf16.msra.mxu0 %v3060
        %3124 = vmatprep.subr.bf16.mxu0 %v3065
        %3125 = vmatpush1.bf16.msra.mxu0 %v3064
        %3126 = vmatprep.subr.bf16.mxu0 %v3069
        %3127 = vmatpush1.bf16.msra.mxu0 %v3068
        %3128 = vmatprep.subr.bf16.mxu0 %v3073
        %3129 = vmatpush1.bf16.msra.mxu0 %v3072
        %3130 = vmatprep.subr.bf16.mxu0 %v3077
        %3131 = vmatpush1.bf16.msra.mxu0 %v3076
        %3132 = vmatprep.subr.bf16.mxu0 %v3081
        %3133 = vmatpush1.bf16.msra.mxu0 %v3080
        %3134 = vmatprep.subr.bf16.mxu0 %v3085
        %3135 = vmatpush1.bf16.msra.mxu0 %v3084
        %3136 = vmatprep.subr.bf16.mxu0 0
        %3137 = vmatpush1.bf16.msra.mxu0 0
        %3138 = vmatprep.subr.bf16.mxu0 0
        %3139 = vmatpush1.bf16.msra.mxu0 0
        %3140 = vmatprep.subr.bf16.mxu0 0
        %3141 = vmatpush1.bf16.msra.mxu0 0
        %3142 = vmatprep.subr.bf16.mxu0 0
        %3143 = vmatpush1.bf16.msra.mxu0 0
        %3144 = vmatprep.subr.bf16.mxu0 0
        %3145 = vmatpush1.bf16.msra.mxu0 0
        %3146 = vmatprep.subr.bf16.mxu0 0
        %3147 = vmatpush1.bf16.msra.mxu0 0
        %3148 = vmatprep.subr.bf16.mxu0 0
        %3149 = vmatpush1.bf16.msra.mxu0 0
        %3150 = vmatprep.subr.bf16.mxu0 0
        %3151 = vmatpush1.bf16.msra.mxu0 0
        %3152 = vmatprep.mubr.bf16.mxu0 0
        %3153 = vmatmul.mubr.bf16.gmra.mrb[0].mxu0 %v2324
        %v3154 = vpop.f32.mrb[0].mxu0
        %v3155 = vadd.f32 0.0, %v3154
        %v3156 = vpop.f32.mrb[0].mxu0
        %v3157 = vadd.f32 0.0, %v3156
        %v3158 = vpop.f32.mrb[0].mxu0
        %v3159 = vpop.f32.mrb[0].mxu0
        %3160 = vdwg.mxu0
        %3161 = vmatprep.subr.bf16.mxu0 %v3059
        %3162 = vmatpush1.bf16.msra.mxu0 %v3058
        %3163 = vmatprep.subr.bf16.mxu0 %v3063
        %3164 = vmatpush1.bf16.msra.mxu0 %v3062
        %3165 = vmatprep.subr.bf16.mxu0 %v3067
        %3166 = vmatpush1.bf16.msra.mxu0 %v3066
        %3167 = vmatprep.subr.bf16.mxu0 %v3071
        %3168 = vmatpush1.bf16.msra.mxu0 %v3070
        %3169 = vmatprep.subr.bf16.mxu0 %v3075
        %3170 = vmatpush1.bf16.msra.mxu0 %v3074
        %3171 = vmatprep.subr.bf16.mxu0 %v3079
        %3172 = vmatpush1.bf16.msra.mxu0 %v3078
        %3173 = vmatprep.subr.bf16.mxu0 %v3083
        %3174 = vmatpush1.bf16.msra.mxu0 %v3082
        %3175 = vmatprep.subr.bf16.mxu0 %v3087
        %3176 = vmatpush1.bf16.msra.mxu0 %v3086
        %3177 = vmatprep.subr.bf16.mxu0 0
        %3178 = vmatpush1.bf16.msra.mxu0 0
        %3179 = vmatprep.subr.bf16.mxu0 0
        %3180 = vmatpush1.bf16.msra.mxu0 0
        %3181 = vmatprep.subr.bf16.mxu0 0
        %3182 = vmatpush1.bf16.msra.mxu0 0
        %3183 = vmatprep.subr.bf16.mxu0 0
        %3184 = vmatpush1.bf16.msra.mxu0 0
        %3185 = vmatprep.subr.bf16.mxu0 0
        %3186 = vmatpush1.bf16.msra.mxu0 0
        %3187 = vmatprep.subr.bf16.mxu0 0
        %3188 = vmatpush1.bf16.msra.mxu0 0
        %3189 = vmatprep.subr.bf16.mxu0 0
        %3190 = vmatpush1.bf16.msra.mxu0 0
        %3191 = vmatprep.subr.bf16.mxu0 0
        %3192 = vmatpush1.bf16.msra.mxu0 0
        %3193 = vmatprep.mubr.bf16.mxu0 0
        %3194 = vmatmul.mubr.bf16.gmra.mrb[0].mxu0 %v2324
        %v3195 = vpop.f32.mrb[0].mxu0
        %v3196 = vadd.f32 0.0, %v3195
        %v3197 = vpop.f32.mrb[0].mxu0
        %v3198 = vadd.f32 0.0, %v3197
        %v3199 = vpop.f32.mrb[0].mxu0
        %v3200 = vpop.f32.mrb[0].mxu0
        %3201 = vdwg.mxu0
        %s3202 = scalar_lea.vmem [#allocation4], 48
        %v3203 = vld [vmem:[%s3202] sm:$0xff]
        %v3204 = vld [vmem:[%s3202 + $0x8] sm:$0xff]
        %v3205 = vunpack.c.l.bf16 %v3203
        %v3206 = vunpack.c.h.bf16 %v3203
        %v3207 = vunpack.c.l.bf16 %v3204
        %v3208 = vunpack.c.h.bf16 %v3204
        %v3209 = vadd.f32 %v3205, %v3155
        %v3210 = vadd.f32 %v3206, %v3157
        %v3211 = vadd.f32 %v3207, %v3196
        %v3212 = vadd.f32 %v3208, %v3198
        %v3213 = vxor.u32 %v3209, 2147483648
        %v3214 = vmul.f32 %v3213, 1.442695
        %v3215 = vpow.pop %v3214
        %v3216 = vadd.f32 %v3215, 1.0
        %v3217 = vrcp.pop %v3216
        %v3218 = vmul.f32 1.0, %v3217
        %v3219 = vxor.u32 %v3210, 2147483648
        %v3220 = vmul.f32 %v3219, 1.442695
        %v3221 = vpow.pop %v3220
        %v3222 = vadd.f32 %v3221, 1.0
        %v3223 = vrcp.pop %v3222
        %v3224 = vmul.f32 1.0, %v3223
        %v3225 = vtanh.pop %v3211
        %v3226 = vxor.u32 %v3212, 2147483648
        %v3227 = vmul.f32 %v3226, 1.442695
        %v3228 = vpow.pop %v3227
        %v3229 = vadd.f32 %v3228, 1.0
        %v3230 = vrcp.pop %v3229
        %v3231 = vmul.f32 1.0, %v3230
        %v3232 = vmul.f32 %v3224, %v2321
        %v3233 = vmul.f32 %v3218, %v3225
        %v3234 = vadd.f32 %v3232, %v3233
        %v3235 = vtanh.pop %v3234
        %v3236 = vmul.f32 %v3231, %v3235
        %v3237 = vpack.c.bf16 %v3236, %v3236
        %s3238 = scalar_lea.vmem %s359, 12
        %3239 = vst [vmem:[%s3238] sm:$0xf] %v3237
        %v3240 = vld [vmem:[#allocation9] sm:$0xff]
        %v3241 = vld [vmem:[#allocation9 + $0x8] sm:$0xff]
        %v3242 = vld [vmem:[#allocation9 + $0x10] sm:$0xff]
        %v3243 = vld [vmem:[#allocation9 + $0x18] sm:$0xff]
        %v3244 = vld [vmem:[#allocation9 + $0x20] sm:$0xff]
        %v3245 = vld [vmem:[#allocation9 + $0x28] sm:$0xff]
        %v3246 = vld [vmem:[#allocation9 + $0x30] sm:$0xff]
        %v3247 = vld [vmem:[#allocation9 + $0x38] sm:$0xff]
        %v3248 = vld [vmem:[#allocation9 + $0x40] sm:$0xff]
        %v3249 = vld [vmem:[#allocation9 + $0x48] sm:$0xff]
        %v3250 = vld [vmem:[#allocation9 + $0x50] sm:$0xff]
        %v3251 = vld [vmem:[#allocation9 + $0x58] sm:$0xff]
        %v3252 = vld [vmem:[#allocation9 + $0x60] sm:$0xff]
        %v3253 = vld [vmem:[#allocation9 + $0x68] sm:$0xff]
        %v3254 = vld [vmem:[#allocation9 + $0x70] sm:$0xff]
        %v3255 = vld [vmem:[#allocation9 + $0x78] sm:$0xff]
        %v3256 = vld [vmem:[#allocation9 + $0x80] sm:$0xff]
        %v3257 = vld [vmem:[#allocation9 + $0x88] sm:$0xff]
        %v3258 = vld [vmem:[#allocation9 + $0x90] sm:$0xff]
        %v3259 = vld [vmem:[#allocation9 + $0x98] sm:$0xff]
        %v3260 = vld [vmem:[#allocation9 + $0xa0] sm:$0xff]
        %v3261 = vld [vmem:[#allocation9 + $0xa8] sm:$0xff]
        %v3262 = vld [vmem:[#allocation9 + $0xb0] sm:$0xff]
        %v3263 = vld [vmem:[#allocation9 + $0xb8] sm:$0xff]
        %v3264 = vld [vmem:[#allocation9 + $0xc0] sm:$0xff]
        %v3265 = vld [vmem:[#allocation9 + $0xc8] sm:$0xff]
        %v3266 = vld [vmem:[#allocation9 + $0xd0] sm:$0xff]
        %v3267 = vld [vmem:[#allocation9 + $0xd8] sm:$0xff]
        %v3268 = vld [vmem:[#allocation9 + $0xe0] sm:$0xff]
        %v3269 = vld [vmem:[#allocation9 + $0xe8] sm:$0xff]
        %v3270 = vld [vmem:[#allocation9 + $0xf0] sm:$0xff]
        %v3271 = vld [vmem:[#allocation9 + $0xf8] sm:$0xff]
        %v3304 = vunpack.c.l.b16 %v3240
        %v3305 = vunpack.c.h.b16 %v3240
        %v3306 = vunpack.c.l.b16 %v3241
        %v3307 = vunpack.c.h.b16 %v3241
        %v3308 = vunpack.c.l.b16 %v3242
        %v3309 = vunpack.c.h.b16 %v3242
        %v3310 = vunpack.c.l.b16 %v3243
        %v3311 = vunpack.c.h.b16 %v3243
        %v3312 = vunpack.c.l.b16 %v3244
        %v3313 = vunpack.c.h.b16 %v3244
        %v3314 = vunpack.c.l.b16 %v3245
        %v3315 = vunpack.c.h.b16 %v3245
        %v3316 = vunpack.c.l.b16 %v3246
        %v3317 = vunpack.c.h.b16 %v3246
        %v3318 = vunpack.c.l.b16 %v3247
        %v3319 = vunpack.c.h.b16 %v3247
        %v3320 = vunpack.c.l.b16 %v3248
        %v3321 = vunpack.c.h.b16 %v3248
        %v3322 = vunpack.c.l.b16 %v3249
        %v3323 = vunpack.c.h.b16 %v3249
        %v3324 = vunpack.c.l.b16 %v3250
        %v3325 = vunpack.c.h.b16 %v3250
        %v3326 = vunpack.c.l.b16 %v3251
        %v3327 = vunpack.c.h.b16 %v3251
        %v3328 = vunpack.c.l.b16 %v3252
        %v3329 = vunpack.c.h.b16 %v3252
        %v3330 = vunpack.c.l.b16 %v3253
        %v3331 = vunpack.c.h.b16 %v3253
        %v3332 = vunpack.c.l.b16 %v3254
        %v3333 = vunpack.c.h.b16 %v3254
        %v3334 = vunpack.c.l.b16 %v3255
        %v3335 = vunpack.c.h.b16 %v3255
        %v3336 = vunpack.c.l.b16 %v3256
        %v3337 = vunpack.c.h.b16 %v3256
        %v3338 = vunpack.c.l.b16 %v3257
        %v3339 = vunpack.c.h.b16 %v3257
        %v3340 = vunpack.c.l.b16 %v3258
        %v3341 = vunpack.c.h.b16 %v3258
        %v3342 = vunpack.c.l.b16 %v3259
        %v3343 = vunpack.c.h.b16 %v3259
        %v3344 = vunpack.c.l.b16 %v3260
        %v3345 = vunpack.c.h.b16 %v3260
        %v3346 = vunpack.c.l.b16 %v3261
        %v3347 = vunpack.c.h.b16 %v3261
        %v3348 = vunpack.c.l.b16 %v3262
        %v3349 = vunpack.c.h.b16 %v3262
        %v3350 = vunpack.c.l.b16 %v3263
        %v3351 = vunpack.c.h.b16 %v3263
        %v3352 = vunpack.c.l.b16 %v3264
        %v3353 = vunpack.c.h.b16 %v3264
        %v3354 = vunpack.c.l.b16 %v3265
        %v3355 = vunpack.c.h.b16 %v3265
        %v3356 = vunpack.c.l.b16 %v3266
        %v3357 = vunpack.c.h.b16 %v3266
        %v3358 = vunpack.c.l.b16 %v3267
        %v3359 = vunpack.c.h.b16 %v3267
        %v3360 = vunpack.c.l.b16 %v3268
        %v3361 = vunpack.c.h.b16 %v3268
        %v3362 = vunpack.c.l.b16 %v3269
        %v3363 = vunpack.c.h.b16 %v3269
        %v3364 = vunpack.c.l.b16 %v3270
        %v3365 = vunpack.c.h.b16 %v3270
        %v3366 = vunpack.c.l.b16 %v3271
        %v3367 = vunpack.c.h.b16 %v3271
        %v3368 = vpack.c.b16 %v3308, %v3304
        %v3369 = vpack.c.b16 %v3309, %v3305
        %v3370 = vpack.c.b16 %v3310, %v3306
        %v3371 = vpack.c.b16 %v3311, %v3307
        %v3372 = vpack.c.b16 %v3316, %v3312
        %v3373 = vpack.c.b16 %v3317, %v3313
        %v3374 = vpack.c.b16 %v3318, %v3314
        %v3375 = vpack.c.b16 %v3319, %v3315
        %v3376 = vpack.c.b16 %v3324, %v3320
        %v3377 = vpack.c.b16 %v3325, %v3321
        %v3378 = vpack.c.b16 %v3326, %v3322
        %v3379 = vpack.c.b16 %v3327, %v3323
        %v3380 = vpack.c.b16 %v3332, %v3328
        %v3381 = vpack.c.b16 %v3333, %v3329
        %v3382 = vpack.c.b16 %v3334, %v3330
        %v3383 = vpack.c.b16 %v3335, %v3331
        %v3384 = vpack.c.b16 %v3340, %v3336
        %v3385 = vpack.c.b16 %v3341, %v3337
        %v3386 = vpack.c.b16 %v3342, %v3338
        %v3387 = vpack.c.b16 %v3343, %v3339
        %v3388 = vpack.c.b16 %v3348, %v3344
        %v3389 = vpack.c.b16 %v3349, %v3345
        %v3390 = vpack.c.b16 %v3350, %v3346
        %v3391 = vpack.c.b16 %v3351, %v3347
        %v3392 = vpack.c.b16 %v3356, %v3352
        %v3393 = vpack.c.b16 %v3357, %v3353
        %v3394 = vpack.c.b16 %v3358, %v3354
        %v3395 = vpack.c.b16 %v3359, %v3355
        %v3396 = vpack.c.b16 %v3364, %v3360
        %v3397 = vpack.c.b16 %v3365, %v3361
        %v3398 = vpack.c.b16 %v3366, %v3362
        %v3399 = vpack.c.b16 %v3367, %v3363
        %3432 = vmatprep.subr.bf16.mxu0 %v3369
        %3433 = vmatpush1.bf16.msra.mxu0 %v3368
        %3434 = vmatprep.subr.bf16.mxu0 %v3373
        %3435 = vmatpush1.bf16.msra.mxu0 %v3372
        %3436 = vmatprep.subr.bf16.mxu0 %v3377
        %3437 = vmatpush1.bf16.msra.mxu0 %v3376
        %3438 = vmatprep.subr.bf16.mxu0 %v3381
        %3439 = vmatpush1.bf16.msra.mxu0 %v3380
        %3440 = vmatprep.subr.bf16.mxu0 %v3385
        %3441 = vmatpush1.bf16.msra.mxu0 %v3384
        %3442 = vmatprep.subr.bf16.mxu0 %v3389
        %3443 = vmatpush1.bf16.msra.mxu0 %v3388
        %3444 = vmatprep.subr.bf16.mxu0 %v3393
        %3445 = vmatpush1.bf16.msra.mxu0 %v3392
        %3446 = vmatprep.subr.bf16.mxu0 %v3397
        %3447 = vmatpush1.bf16.msra.mxu0 %v3396
        %3448 = vmatprep.subr.bf16.mxu0 0
        %3449 = vmatpush1.bf16.msra.mxu0 0
        %3450 = vmatprep.subr.bf16.mxu0 0
        %3451 = vmatpush1.bf16.msra.mxu0 0
        %3452 = vmatprep.subr.bf16.mxu0 0
        %3453 = vmatpush1.bf16.msra.mxu0 0
        %3454 = vmatprep.subr.bf16.mxu0 0
        %3455 = vmatpush1.bf16.msra.mxu0 0
        %3456 = vmatprep.subr.bf16.mxu0 0
        %3457 = vmatpush1.bf16.msra.mxu0 0
        %3458 = vmatprep.subr.bf16.mxu0 0
        %3459 = vmatpush1.bf16.msra.mxu0 0
        %3460 = vmatprep.subr.bf16.mxu0 0
        %3461 = vmatpush1.bf16.msra.mxu0 0
        %3462 = vmatprep.subr.bf16.mxu0 0
        %3463 = vmatpush1.bf16.msra.mxu0 0
        %3464 = vmatprep.mubr.bf16.mxu0 0
        %3465 = vmatmul.mubr.bf16.gmra.mrb[0].mxu0 %v2925
        %v3466 = vpop.f32.mrb[0].mxu0
        %v3467 = vadd.f32 0.0, %v3466
        %v3468 = vpop.f32.mrb[0].mxu0
        %v3469 = vadd.f32 0.0, %v3468
        %v3470 = vpop.f32.mrb[0].mxu0
        %v3471 = vpop.f32.mrb[0].mxu0
        %3472 = vdwg.mxu0
        %3473 = vmatprep.subr.bf16.mxu0 %v3371
        %3474 = vmatpush1.bf16.msra.mxu0 %v3370
        %3475 = vmatprep.subr.bf16.mxu0 %v3375
        %3476 = vmatpush1.bf16.msra.mxu0 %v3374
        %3477 = vmatprep.subr.bf16.mxu0 %v3379
        %3478 = vmatpush1.bf16.msra.mxu0 %v3378
        %3479 = vmatprep.subr.bf16.mxu0 %v3383
        %3480 = vmatpush1.bf16.msra.mxu0 %v3382
        %3481 = vmatprep.subr.bf16.mxu0 %v3387
        %3482 = vmatpush1.bf16.msra.mxu0 %v3386
        %3483 = vmatprep.subr.bf16.mxu0 %v3391
        %3484 = vmatpush1.bf16.msra.mxu0 %v3390
        %3485 = vmatprep.subr.bf16.mxu0 %v3395
        %3486 = vmatpush1.bf16.msra.mxu0 %v3394
        %3487 = vmatprep.subr.bf16.mxu0 %v3399
        %3488 = vmatpush1.bf16.msra.mxu0 %v3398
        %3489 = vmatprep.subr.bf16.mxu0 0
        %3490 = vmatpush1.bf16.msra.mxu0 0
        %3491 = vmatprep.subr.bf16.mxu0 0
        %3492 = vmatpush1.bf16.msra.mxu0 0
        %3493 = vmatprep.subr.bf16.mxu0 0
        %3494 = vmatpush1.bf16.msra.mxu0 0
        %3495 = vmatprep.subr.bf16.mxu0 0
        %3496 = vmatpush1.bf16.msra.mxu0 0
        %3497 = vmatprep.subr.bf16.mxu0 0
        %3498 = vmatpush1.bf16.msra.mxu0 0
        %3499 = vmatprep.subr.bf16.mxu0 0
        %3500 = vmatpush1.bf16.msra.mxu0 0
        %3501 = vmatprep.subr.bf16.mxu0 0
        %3502 = vmatpush1.bf16.msra.mxu0 0
        %3503 = vmatprep.subr.bf16.mxu0 0
        %3504 = vmatpush1.bf16.msra.mxu0 0
        %3505 = vmatprep.mubr.bf16.mxu0 0
        %3506 = vmatmul.mubr.bf16.gmra.mrb[0].mxu0 %v2925
        %v3507 = vpop.f32.mrb[0].mxu0
        %v3508 = vadd.f32 0.0, %v3507
        %v3509 = vpop.f32.mrb[0].mxu0
        %v3510 = vadd.f32 0.0, %v3509
        %v3511 = vpop.f32.mrb[0].mxu0
        %v3512 = vpop.f32.mrb[0].mxu0
        %3513 = vdwg.mxu0
        %v3514 = vld [vmem:[#allocation7] sm:$0xff]
        %v3515 = vld [vmem:[#allocation7 + $0x8] sm:$0xff]
        %v3516 = vld [vmem:[#allocation7 + $0x10] sm:$0xff]
        %v3517 = vld [vmem:[#allocation7 + $0x18] sm:$0xff]
        %v3518 = vld [vmem:[#allocation7 + $0x20] sm:$0xff]
        %v3519 = vld [vmem:[#allocation7 + $0x28] sm:$0xff]
        %v3520 = vld [vmem:[#allocation7 + $0x30] sm:$0xff]
        %v3521 = vld [vmem:[#allocation7 + $0x38] sm:$0xff]
        %v3522 = vld [vmem:[#allocation7 + $0x40] sm:$0xff]
        %v3523 = vld [vmem:[#allocation7 + $0x48] sm:$0xff]
        %v3524 = vld [vmem:[#allocation7 + $0x50] sm:$0xff]
        %v3525 = vld [vmem:[#allocation7 + $0x58] sm:$0xff]
        %v3526 = vld [vmem:[#allocation7 + $0x60] sm:$0xff]
        %v3527 = vld [vmem:[#allocation7 + $0x68] sm:$0xff]
        %v3528 = vld [vmem:[#allocation7 + $0x70] sm:$0xff]
        %v3529 = vld [vmem:[#allocation7 + $0x78] sm:$0xff]
        %v3530 = vld [vmem:[#allocation7 + $0x80] sm:$0xff]
        %v3531 = vld [vmem:[#allocation7 + $0x88] sm:$0xff]
        %v3532 = vld [vmem:[#allocation7 + $0x90] sm:$0xff]
        %v3533 = vld [vmem:[#allocation7 + $0x98] sm:$0xff]
        %v3534 = vld [vmem:[#allocation7 + $0xa0] sm:$0xff]
        %v3535 = vld [vmem:[#allocation7 + $0xa8] sm:$0xff]
        %v3536 = vld [vmem:[#allocation7 + $0xb0] sm:$0xff]
        %v3537 = vld [vmem:[#allocation7 + $0xb8] sm:$0xff]
        %v3538 = vld [vmem:[#allocation7 + $0xc0] sm:$0xff]
        %v3539 = vld [vmem:[#allocation7 + $0xc8] sm:$0xff]
        %v3540 = vld [vmem:[#allocation7 + $0xd0] sm:$0xff]
        %v3541 = vld [vmem:[#allocation7 + $0xd8] sm:$0xff]
        %v3542 = vld [vmem:[#allocation7 + $0xe0] sm:$0xff]
        %v3543 = vld [vmem:[#allocation7 + $0xe8] sm:$0xff]
        %v3544 = vld [vmem:[#allocation7 + $0xf0] sm:$0xff]
        %v3545 = vld [vmem:[#allocation7 + $0xf8] sm:$0xff]
        %v3546 = vld [vmem:[%s6] sm:$0xf]
        %v3548 = vlaneseq
        %v3549 = vshrl.u32 %v3548, 7
        %v3550 = vsub.s32 0, %v3549
        %v3551 = vrot.slane %v3546, %v3550
        %v3552 = vlaneseq
        %v3553 = vshrl.u32 %v3552, 7
        %v3554 = vsub.s32 1, %v3553
        %v3555 = vrot.slane %v3546, %v3554
        %v3556 = vlaneseq
        %v3557 = vshrl.u32 %v3556, 7
        %v3558 = vsub.s32 2, %v3557
        %v3559 = vrot.slane %v3546, %v3558
        %v3560 = vlaneseq
        %v3561 = vshrl.u32 %v3560, 7
        %v3562 = vsub.s32 3, %v3561
        %v3563 = vrot.slane %v3546, %v3562
        %v3600 = vunpack.c.l.b16 %v3514
        %v3601 = vunpack.c.h.b16 %v3514
        %v3602 = vunpack.c.l.b16 %v3515
        %v3603 = vunpack.c.h.b16 %v3515
        %v3604 = vunpack.c.l.b16 %v3516
        %v3605 = vunpack.c.h.b16 %v3516
        %v3606 = vunpack.c.l.b16 %v3517
        %v3607 = vunpack.c.h.b16 %v3517
        %v3608 = vunpack.c.l.b16 %v3518
        %v3609 = vunpack.c.h.b16 %v3518
        %v3610 = vunpack.c.l.b16 %v3519
        %v3611 = vunpack.c.h.b16 %v3519
        %v3612 = vunpack.c.l.b16 %v3520
        %v3613 = vunpack.c.h.b16 %v3520
        %v3614 = vunpack.c.l.b16 %v3521
        %v3615 = vunpack.c.h.b16 %v3521
        %v3616 = vunpack.c.l.b16 %v3522
        %v3617 = vunpack.c.h.b16 %v3522
        %v3618 = vunpack.c.l.b16 %v3523
        %v3619 = vunpack.c.h.b16 %v3523
        %v3620 = vunpack.c.l.b16 %v3524
        %v3621 = vunpack.c.h.b16 %v3524
        %v3622 = vunpack.c.l.b16 %v3525
        %v3623 = vunpack.c.h.b16 %v3525
        %v3624 = vunpack.c.l.b16 %v3526
        %v3625 = vunpack.c.h.b16 %v3526
        %v3626 = vunpack.c.l.b16 %v3527
        %v3627 = vunpack.c.h.b16 %v3527
        %v3628 = vunpack.c.l.b16 %v3528
        %v3629 = vunpack.c.h.b16 %v3528
        %v3630 = vunpack.c.l.b16 %v3529
        %v3631 = vunpack.c.h.b16 %v3529
        %v3632 = vunpack.c.l.b16 %v3530
        %v3633 = vunpack.c.h.b16 %v3530
        %v3634 = vunpack.c.l.b16 %v3531
        %v3635 = vunpack.c.h.b16 %v3531
        %v3636 = vunpack.c.l.b16 %v3532
        %v3637 = vunpack.c.h.b16 %v3532
        %v3638 = vunpack.c.l.b16 %v3533
        %v3639 = vunpack.c.h.b16 %v3533
        %v3640 = vunpack.c.l.b16 %v3534
        %v3641 = vunpack.c.h.b16 %v3534
        %v3642 = vunpack.c.l.b16 %v3535
        %v3643 = vunpack.c.h.b16 %v3535
        %v3644 = vunpack.c.l.b16 %v3536
        %v3645 = vunpack.c.h.b16 %v3536
        %v3646 = vunpack.c.l.b16 %v3537
        %v3647 = vunpack.c.h.b16 %v3537
        %v3648 = vunpack.c.l.b16 %v3538
        %v3649 = vunpack.c.h.b16 %v3538
        %v3650 = vunpack.c.l.b16 %v3539
        %v3651 = vunpack.c.h.b16 %v3539
        %v3652 = vunpack.c.l.b16 %v3540
        %v3653 = vunpack.c.h.b16 %v3540
        %v3654 = vunpack.c.l.b16 %v3541
        %v3655 = vunpack.c.h.b16 %v3541
        %v3656 = vunpack.c.l.b16 %v3542
        %v3657 = vunpack.c.h.b16 %v3542
        %v3658 = vunpack.c.l.b16 %v3543
        %v3659 = vunpack.c.h.b16 %v3543
        %v3660 = vunpack.c.l.b16 %v3544
        %v3661 = vunpack.c.h.b16 %v3544
        %v3662 = vunpack.c.l.b16 %v3545
        %v3663 = vunpack.c.h.b16 %v3545
        %v3664 = vpack.c.b16 %v3604, %v3600
        %v3665 = vpack.c.b16 %v3605, %v3601
        %v3666 = vpack.c.b16 %v3606, %v3602
        %v3667 = vpack.c.b16 %v3607, %v3603
        %v3668 = vpack.c.b16 %v3612, %v3608
        %v3669 = vpack.c.b16 %v3613, %v3609
        %v3670 = vpack.c.b16 %v3614, %v3610
        %v3671 = vpack.c.b16 %v3615, %v3611
        %v3672 = vpack.c.b16 %v3620, %v3616
        %v3673 = vpack.c.b16 %v3621, %v3617
        %v3674 = vpack.c.b16 %v3622, %v3618
        %v3675 = vpack.c.b16 %v3623, %v3619
        %v3676 = vpack.c.b16 %v3628, %v3624
        %v3677 = vpack.c.b16 %v3629, %v3625
        %v3678 = vpack.c.b16 %v3630, %v3626
        %v3679 = vpack.c.b16 %v3631, %v3627
        %v3680 = vpack.c.b16 %v3636, %v3632
        %v3681 = vpack.c.b16 %v3637, %v3633
        %v3682 = vpack.c.b16 %v3638, %v3634
        %v3683 = vpack.c.b16 %v3639, %v3635
        %v3684 = vpack.c.b16 %v3644, %v3640
        %v3685 = vpack.c.b16 %v3645, %v3641
        %v3686 = vpack.c.b16 %v3646, %v3642
        %v3687 = vpack.c.b16 %v3647, %v3643
        %v3688 = vpack.c.b16 %v3652, %v3648
        %v3689 = vpack.c.b16 %v3653, %v3649
        %v3690 = vpack.c.b16 %v3654, %v3650
        %v3691 = vpack.c.b16 %v3655, %v3651
        %v3692 = vpack.c.b16 %v3660, %v3656
        %v3693 = vpack.c.b16 %v3661, %v3657
        %v3694 = vpack.c.b16 %v3662, %v3658
        %v3695 = vpack.c.b16 %v3663, %v3659
        %3728 = vmatprep.subr.bf16.mxu0 %v3665
        %3729 = vmatpush1.bf16.msra.mxu0 %v3664
        %3730 = vmatprep.subr.bf16.mxu0 %v3669
        %3731 = vmatpush1.bf16.msra.mxu0 %v3668
        %3732 = vmatprep.subr.bf16.mxu0 %v3673
        %3733 = vmatpush1.bf16.msra.mxu0 %v3672
        %3734 = vmatprep.subr.bf16.mxu0 %v3677
        %3735 = vmatpush1.bf16.msra.mxu0 %v3676
        %3736 = vmatprep.subr.bf16.mxu0 %v3681
        %3737 = vmatpush1.bf16.msra.mxu0 %v3680
        %3738 = vmatprep.subr.bf16.mxu0 %v3685
        %3739 = vmatpush1.bf16.msra.mxu0 %v3684
        %3740 = vmatprep.subr.bf16.mxu0 %v3689
        %3741 = vmatpush1.bf16.msra.mxu0 %v3688
        %3742 = vmatprep.subr.bf16.mxu0 %v3693
        %3743 = vmatpush1.bf16.msra.mxu0 %v3692
        %3744 = vmatprep.subr.bf16.mxu0 0
        %3745 = vmatpush1.bf16.msra.mxu0 0
        %3746 = vmatprep.subr.bf16.mxu0 0
        %3747 = vmatpush1.bf16.msra.mxu0 0
        %3748 = vmatprep.subr.bf16.mxu0 0
        %3749 = vmatpush1.bf16.msra.mxu0 0
        %3750 = vmatprep.subr.bf16.mxu0 0
        %3751 = vmatpush1.bf16.msra.mxu0 0
        %3752 = vmatprep.subr.bf16.mxu0 0
        %3753 = vmatpush1.bf16.msra.mxu0 0
        %3754 = vmatprep.subr.bf16.mxu0 0
        %3755 = vmatpush1.bf16.msra.mxu0 0
        %3756 = vmatprep.subr.bf16.mxu0 0
        %3757 = vmatpush1.bf16.msra.mxu0 0
        %3758 = vmatprep.subr.bf16.mxu0 0
        %3759 = vmatpush1.bf16.msra.mxu0 0
        %3760 = vmatprep.mubr.bf16.mxu0 0
        %3761 = vmatmul.mubr.bf16.gmra.mrb[0].mxu0 %v2324
        %v3762 = vpop.f32.mrb[0].mxu0
        %v3763 = vadd.f32 %v3551, %v3762
        %v3764 = vpop.f32.mrb[0].mxu0
        %v3765 = vadd.f32 %v3555, %v3764
        %v3766 = vpop.f32.mrb[0].mxu0
        %v3767 = vpop.f32.mrb[0].mxu0
        %3768 = vdwg.mxu0
        %3769 = vmatprep.subr.bf16.mxu0 %v3667
        %3770 = vmatpush1.bf16.msra.mxu0 %v3666
        %3771 = vmatprep.subr.bf16.mxu0 %v3671
        %3772 = vmatpush1.bf16.msra.mxu0 %v3670
        %3773 = vmatprep.subr.bf16.mxu0 %v3675
        %3774 = vmatpush1.bf16.msra.mxu0 %v3674
        %3775 = vmatprep.subr.bf16.mxu0 %v3679
        %3776 = vmatpush1.bf16.msra.mxu0 %v3678
        %3777 = vmatprep.subr.bf16.mxu0 %v3683
        %3778 = vmatpush1.bf16.msra.mxu0 %v3682
        %3779 = vmatprep.subr.bf16.mxu0 %v3687
        %3780 = vmatpush1.bf16.msra.mxu0 %v3686
        %3781 = vmatprep.subr.bf16.mxu0 %v3691
        %3782 = vmatpush1.bf16.msra.mxu0 %v3690
        %3783 = vmatprep.subr.bf16.mxu0 %v3695
        %3784 = vmatpush1.bf16.msra.mxu0 %v3694
        %3785 = vmatprep.subr.bf16.mxu0 0
        %3786 = vmatpush1.bf16.msra.mxu0 0
        %3787 = vmatprep.subr.bf16.mxu0 0
        %3788 = vmatpush1.bf16.msra.mxu0 0
        %3789 = vmatprep.subr.bf16.mxu0 0
        %3790 = vmatpush1.bf16.msra.mxu0 0
        %3791 = vmatprep.subr.bf16.mxu0 0
        %3792 = vmatpush1.bf16.msra.mxu0 0
        %3793 = vmatprep.subr.bf16.mxu0 0
        %3794 = vmatpush1.bf16.msra.mxu0 0
        %3795 = vmatprep.subr.bf16.mxu0 0
        %3796 = vmatpush1.bf16.msra.mxu0 0
        %3797 = vmatprep.subr.bf16.mxu0 0
        %3798 = vmatpush1.bf16.msra.mxu0 0
        %3799 = vmatprep.subr.bf16.mxu0 0
        %3800 = vmatpush1.bf16.msra.mxu0 0
        %3801 = vmatprep.mubr.bf16.mxu0 0
        %3802 = vmatmul.mubr.bf16.gmra.mrb[0].mxu0 %v2324
        %v3803 = vpop.f32.mrb[0].mxu0
        %v3804 = vadd.f32 %v3559, %v3803
        %v3805 = vpop.f32.mrb[0].mxu0
        %v3806 = vadd.f32 %v3563, %v3805
        %v3807 = vpop.f32.mrb[0].mxu0
        %v3808 = vpop.f32.mrb[0].mxu0
        %3809 = vdwg.mxu0
        %v3810 = vadd.f32 %v3763, %v3467
        %v3811 = vadd.f32 %v3765, %v3469
        %v3812 = vadd.f32 %v3804, %v3508
        %v3813 = vadd.f32 %v3806, %v3510
        %v3814 = vxor.u32 %v3810, 2147483648
        %v3815 = vmul.f32 %v3814, 1.442695
        %v3816 = vpow.pop %v3815
        %v3817 = vadd.f32 %v3816, 1.0
        %v3818 = vrcp.pop %v3817
        %v3819 = vmul.f32 1.0, %v3818
        %v3820 = vxor.u32 %v3811, 2147483648
        %v3821 = vmul.f32 %v3820, 1.442695
        %v3822 = vpow.pop %v3821
        %v3823 = vadd.f32 %v3822, 1.0
        %v3824 = vrcp.pop %v3823
        %v3825 = vmul.f32 1.0, %v3824
        %v3826 = vtanh.pop %v3812
        %v3827 = vxor.u32 %v3813, 2147483648
        %v3828 = vmul.f32 %v3827, 1.442695
        %v3829 = vpow.pop %v3828
        %v3830 = vadd.f32 %v3829, 1.0
        %v3831 = vrcp.pop %v3830
        %v3832 = vmul.f32 1.0, %v3831
        %v3833 = vmul.f32 %v3825, %v2922
        %v3834 = vmul.f32 %v3819, %v3826
        %v3835 = vadd.f32 %v3833, %v3834
        %v3836 = vtanh.pop %v3835
        %v3837 = vmul.f32 %v3832, %v3836
        %v3838 = vpack.c.bf16 %v3837, %v3837
        %s3839 = scalar_lea.vmem %s365, 8
        %3840 = vst [vmem:[%s3839] sm:$0xf] %v3838
        %3841 = vst [vmem:[%s3238] sm:$0xf] %v3237
        %v3842 = vld [vmem:[#allocation9] sm:$0xff]
        %v3843 = vld [vmem:[#allocation9 + $0x8] sm:$0xff]
        %v3844 = vld [vmem:[#allocation9 + $0x10] sm:$0xff]
        %v3845 = vld [vmem:[#allocation9 + $0x18] sm:$0xff]
        %v3846 = vld [vmem:[#allocation9 + $0x20] sm:$0xff]
        %v3847 = vld [vmem:[#allocation9 + $0x28] sm:$0xff]
        %v3848 = vld [vmem:[#allocation9 + $0x30] sm:$0xff]
        %v3849 = vld [vmem:[#allocation9 + $0x38] sm:$0xff]
        %v3850 = vld [vmem:[#allocation9 + $0x40] sm:$0xff]
        %v3851 = vld [vmem:[#allocation9 + $0x48] sm:$0xff]
        %v3852 = vld [vmem:[#allocation9 + $0x50] sm:$0xff]
        %v3853 = vld [vmem:[#allocation9 + $0x58] sm:$0xff]
        %v3854 = vld [vmem:[#allocation9 + $0x60] sm:$0xff]
        %v3855 = vld [vmem:[#allocation9 + $0x68] sm:$0xff]
        %v3856 = vld [vmem:[#allocation9 + $0x70] sm:$0xff]
        %v3857 = vld [vmem:[#allocation9 + $0x78] sm:$0xff]
        %v3858 = vld [vmem:[#allocation9 + $0x80] sm:$0xff]
        %v3859 = vld [vmem:[#allocation9 + $0x88] sm:$0xff]
        %v3860 = vld [vmem:[#allocation9 + $0x90] sm:$0xff]
        %v3861 = vld [vmem:[#allocation9 + $0x98] sm:$0xff]
        %v3862 = vld [vmem:[#allocation9 + $0xa0] sm:$0xff]
        %v3863 = vld [vmem:[#allocation9 + $0xa8] sm:$0xff]
        %v3864 = vld [vmem:[#allocation9 + $0xb0] sm:$0xff]
        %v3865 = vld [vmem:[#allocation9 + $0xb8] sm:$0xff]
        %v3866 = vld [vmem:[#allocation9 + $0xc0] sm:$0xff]
        %v3867 = vld [vmem:[#allocation9 + $0xc8] sm:$0xff]
        %v3868 = vld [vmem:[#allocation9 + $0xd0] sm:$0xff]
        %v3869 = vld [vmem:[#allocation9 + $0xd8] sm:$0xff]
        %v3870 = vld [vmem:[#allocation9 + $0xe0] sm:$0xff]
        %v3871 = vld [vmem:[#allocation9 + $0xe8] sm:$0xff]
        %v3872 = vld [vmem:[#allocation9 + $0xf0] sm:$0xff]
        %v3873 = vld [vmem:[#allocation9 + $0xf8] sm:$0xff]
        %v3906 = vunpack.c.l.b16 %v3842
        %v3907 = vunpack.c.h.b16 %v3842
        %v3908 = vunpack.c.l.b16 %v3843
        %v3909 = vunpack.c.h.b16 %v3843
        %v3910 = vunpack.c.l.b16 %v3844
        %v3911 = vunpack.c.h.b16 %v3844
        %v3912 = vunpack.c.l.b16 %v3845
        %v3913 = vunpack.c.h.b16 %v3845
        %v3914 = vunpack.c.l.b16 %v3846
        %v3915 = vunpack.c.h.b16 %v3846
        %v3916 = vunpack.c.l.b16 %v3847
        %v3917 = vunpack.c.h.b16 %v3847
        %v3918 = vunpack.c.l.b16 %v3848
        %v3919 = vunpack.c.h.b16 %v3848
        %v3920 = vunpack.c.l.b16 %v3849
        %v3921 = vunpack.c.h.b16 %v3849
        %v3922 = vunpack.c.l.b16 %v3850
        %v3923 = vunpack.c.h.b16 %v3850
        %v3924 = vunpack.c.l.b16 %v3851
        %v3925 = vunpack.c.h.b16 %v3851
        %v3926 = vunpack.c.l.b16 %v3852
        %v3927 = vunpack.c.h.b16 %v3852
        %v3928 = vunpack.c.l.b16 %v3853
        %v3929 = vunpack.c.h.b16 %v3853
        %v3930 = vunpack.c.l.b16 %v3854
        %v3931 = vunpack.c.h.b16 %v3854
        %v3932 = vunpack.c.l.b16 %v3855
        %v3933 = vunpack.c.h.b16 %v3855
        %v3934 = vunpack.c.l.b16 %v3856
        %v3935 = vunpack.c.h.b16 %v3856
        %v3936 = vunpack.c.l.b16 %v3857
        %v3937 = vunpack.c.h.b16 %v3857
        %v3938 = vunpack.c.l.b16 %v3858
        %v3939 = vunpack.c.h.b16 %v3858
        %v3940 = vunpack.c.l.b16 %v3859
        %v3941 = vunpack.c.h.b16 %v3859
        %v3942 = vunpack.c.l.b16 %v3860
        %v3943 = vunpack.c.h.b16 %v3860
        %v3944 = vunpack.c.l.b16 %v3861
        %v3945 = vunpack.c.h.b16 %v3861
        %v3946 = vunpack.c.l.b16 %v3862
        %v3947 = vunpack.c.h.b16 %v3862
        %v3948 = vunpack.c.l.b16 %v3863
        %v3949 = vunpack.c.h.b16 %v3863
        %v3950 = vunpack.c.l.b16 %v3864
        %v3951 = vunpack.c.h.b16 %v3864
        %v3952 = vunpack.c.l.b16 %v3865
        %v3953 = vunpack.c.h.b16 %v3865
        %v3954 = vunpack.c.l.b16 %v3866
        %v3955 = vunpack.c.h.b16 %v3866
        %v3956 = vunpack.c.l.b16 %v3867
        %v3957 = vunpack.c.h.b16 %v3867
        %v3958 = vunpack.c.l.b16 %v3868
        %v3959 = vunpack.c.h.b16 %v3868
        %v3960 = vunpack.c.l.b16 %v3869
        %v3961 = vunpack.c.h.b16 %v3869
        %v3962 = vunpack.c.l.b16 %v3870
        %v3963 = vunpack.c.h.b16 %v3870
        %v3964 = vunpack.c.l.b16 %v3871
        %v3965 = vunpack.c.h.b16 %v3871
        %v3966 = vunpack.c.l.b16 %v3872
        %v3967 = vunpack.c.h.b16 %v3872
        %v3968 = vunpack.c.l.b16 %v3873
        %v3969 = vunpack.c.h.b16 %v3873
        %v3970 = vpack.c.b16 %v3910, %v3906
        %v3971 = vpack.c.b16 %v3911, %v3907
        %v3972 = vpack.c.b16 %v3912, %v3908
        %v3973 = vpack.c.b16 %v3913, %v3909
        %v3974 = vpack.c.b16 %v3918, %v3914
        %v3975 = vpack.c.b16 %v3919, %v3915
        %v3976 = vpack.c.b16 %v3920, %v3916
        %v3977 = vpack.c.b16 %v3921, %v3917
        %v3978 = vpack.c.b16 %v3926, %v3922
        %v3979 = vpack.c.b16 %v3927, %v3923
        %v3980 = vpack.c.b16 %v3928, %v3924
        %v3981 = vpack.c.b16 %v3929, %v3925
        %v3982 = vpack.c.b16 %v3934, %v3930
        %v3983 = vpack.c.b16 %v3935, %v3931
        %v3984 = vpack.c.b16 %v3936, %v3932
        %v3985 = vpack.c.b16 %v3937, %v3933
        %v3986 = vpack.c.b16 %v3942, %v3938
        %v3987 = vpack.c.b16 %v3943, %v3939
        %v3988 = vpack.c.b16 %v3944, %v3940
        %v3989 = vpack.c.b16 %v3945, %v3941
        %v3990 = vpack.c.b16 %v3950, %v3946
        %v3991 = vpack.c.b16 %v3951, %v3947
        %v3992 = vpack.c.b16 %v3952, %v3948
        %v3993 = vpack.c.b16 %v3953, %v3949
        %v3994 = vpack.c.b16 %v3958, %v3954
        %v3995 = vpack.c.b16 %v3959, %v3955
        %v3996 = vpack.c.b16 %v3960, %v3956
        %v3997 = vpack.c.b16 %v3961, %v3957
        %v3998 = vpack.c.b16 %v3966, %v3962
        %v3999 = vpack.c.b16 %v3967, %v3963
        %v4000 = vpack.c.b16 %v3968, %v3964
        %v4001 = vpack.c.b16 %v3969, %v3965
        %4034 = vmatprep.subr.bf16.mxu0 %v3971
        %4035 = vmatpush1.bf16.msra.mxu0 %v3970
        %4036 = vmatprep.subr.bf16.mxu0 %v3975
        %4037 = vmatpush1.bf16.msra.mxu0 %v3974
        %4038 = vmatprep.subr.bf16.mxu0 %v3979
        %4039 = vmatpush1.bf16.msra.mxu0 %v3978
        %4040 = vmatprep.subr.bf16.mxu0 %v3983
        %4041 = vmatpush1.bf16.msra.mxu0 %v3982
        %4042 = vmatprep.subr.bf16.mxu0 %v3987
        %4043 = vmatpush1.bf16.msra.mxu0 %v3986
        %4044 = vmatprep.subr.bf16.mxu0 %v3991
        %4045 = vmatpush1.bf16.msra.mxu0 %v3990
        %4046 = vmatprep.subr.bf16.mxu0 %v3995
        %4047 = vmatpush1.bf16.msra.mxu0 %v3994
        %4048 = vmatprep.subr.bf16.mxu0 %v3999
        %4049 = vmatpush1.bf16.msra.mxu0 %v3998
        %4050 = vmatprep.subr.bf16.mxu0 0
        %4051 = vmatpush1.bf16.msra.mxu0 0
        %4052 = vmatprep.subr.bf16.mxu0 0
        %4053 = vmatpush1.bf16.msra.mxu0 0
        %4054 = vmatprep.subr.bf16.mxu0 0
        %4055 = vmatpush1.bf16.msra.mxu0 0
        %4056 = vmatprep.subr.bf16.mxu0 0
        %4057 = vmatpush1.bf16.msra.mxu0 0
        %4058 = vmatprep.subr.bf16.mxu0 0
        %4059 = vmatpush1.bf16.msra.mxu0 0
        %4060 = vmatprep.subr.bf16.mxu0 0
        %4061 = vmatpush1.bf16.msra.mxu0 0
        %4062 = vmatprep.subr.bf16.mxu0 0
        %4063 = vmatpush1.bf16.msra.mxu0 0
        %4064 = vmatprep.subr.bf16.mxu0 0
        %4065 = vmatpush1.bf16.msra.mxu0 0
        %4066 = vmatprep.mubr.bf16.mxu0 0
        %4067 = vmatmul.mubr.bf16.gmra.mrb[0].mxu0 %v3838
        %v4068 = vpop.f32.mrb[0].mxu0
        %v4069 = vadd.f32 0.0, %v4068
        %v4070 = vpop.f32.mrb[0].mxu0
        %v4071 = vadd.f32 0.0, %v4070
        %v4072 = vpop.f32.mrb[0].mxu0
        %v4073 = vpop.f32.mrb[0].mxu0
        %4074 = vdwg.mxu0
        %4075 = vmatprep.subr.bf16.mxu0 %v3973
        %4076 = vmatpush1.bf16.msra.mxu0 %v3972
        %4077 = vmatprep.subr.bf16.mxu0 %v3977
        %4078 = vmatpush1.bf16.msra.mxu0 %v3976
        %4079 = vmatprep.subr.bf16.mxu0 %v3981
        %4080 = vmatpush1.bf16.msra.mxu0 %v3980
        %4081 = vmatprep.subr.bf16.mxu0 %v3985
        %4082 = vmatpush1.bf16.msra.mxu0 %v3984
        %4083 = vmatprep.subr.bf16.mxu0 %v3989
        %4084 = vmatpush1.bf16.msra.mxu0 %v3988
        %4085 = vmatprep.subr.bf16.mxu0 %v3993
        %4086 = vmatpush1.bf16.msra.mxu0 %v3992
        %4087 = vmatprep.subr.bf16.mxu0 %v3997
        %4088 = vmatpush1.bf16.msra.mxu0 %v3996
        %4089 = vmatprep.subr.bf16.mxu0 %v4001
        %4090 = vmatpush1.bf16.msra.mxu0 %v4000
        %4091 = vmatprep.subr.bf16.mxu0 0
        %4092 = vmatpush1.bf16.msra.mxu0 0
        %4093 = vmatprep.subr.bf16.mxu0 0
        %4094 = vmatpush1.bf16.msra.mxu0 0
        %4095 = vmatprep.subr.bf16.mxu0 0
        %4096 = vmatpush1.bf16.msra.mxu0 0
        %4097 = vmatprep.subr.bf16.mxu0 0
        %4098 = vmatpush1.bf16.msra.mxu0 0
        %4099 = vmatprep.subr.bf16.mxu0 0
        %4100 = vmatpush1.bf16.msra.mxu0 0
        %4101 = vmatprep.subr.bf16.mxu0 0
        %4102 = vmatpush1.bf16.msra.mxu0 0
        %4103 = vmatprep.subr.bf16.mxu0 0
        %4104 = vmatpush1.bf16.msra.mxu0 0
        %4105 = vmatprep.subr.bf16.mxu0 0
        %4106 = vmatpush1.bf16.msra.mxu0 0
        %4107 = vmatprep.mubr.bf16.mxu0 0
        %4108 = vmatmul.mubr.bf16.gmra.mrb[0].mxu0 %v3838
        %v4109 = vpop.f32.mrb[0].mxu0
        %v4110 = vadd.f32 0.0, %v4109
        %v4111 = vpop.f32.mrb[0].mxu0
        %v4112 = vadd.f32 0.0, %v4111
        %v4113 = vpop.f32.mrb[0].mxu0
        %v4114 = vpop.f32.mrb[0].mxu0
        %4115 = vdwg.mxu0
        %v4116 = vld [vmem:[#allocation7] sm:$0xff]
        %v4117 = vld [vmem:[#allocation7 + $0x8] sm:$0xff]
        %v4118 = vld [vmem:[#allocation7 + $0x10] sm:$0xff]
        %v4119 = vld [vmem:[#allocation7 + $0x18] sm:$0xff]
        %v4120 = vld [vmem:[#allocation7 + $0x20] sm:$0xff]
        %v4121 = vld [vmem:[#allocation7 + $0x28] sm:$0xff]
        %v4122 = vld [vmem:[#allocation7 + $0x30] sm:$0xff]
        %v4123 = vld [vmem:[#allocation7 + $0x38] sm:$0xff]
        %v4124 = vld [vmem:[#allocation7 + $0x40] sm:$0xff]
        %v4125 = vld [vmem:[#allocation7 + $0x48] sm:$0xff]
        %v4126 = vld [vmem:[#allocation7 + $0x50] sm:$0xff]
        %v4127 = vld [vmem:[#allocation7 + $0x58] sm:$0xff]
        %v4128 = vld [vmem:[#allocation7 + $0x60] sm:$0xff]
        %v4129 = vld [vmem:[#allocation7 + $0x68] sm:$0xff]
        %v4130 = vld [vmem:[#allocation7 + $0x70] sm:$0xff]
        %v4131 = vld [vmem:[#allocation7 + $0x78] sm:$0xff]
        %v4132 = vld [vmem:[#allocation7 + $0x80] sm:$0xff]
        %v4133 = vld [vmem:[#allocation7 + $0x88] sm:$0xff]
        %v4134 = vld [vmem:[#allocation7 + $0x90] sm:$0xff]
        %v4135 = vld [vmem:[#allocation7 + $0x98] sm:$0xff]
        %v4136 = vld [vmem:[#allocation7 + $0xa0] sm:$0xff]
        %v4137 = vld [vmem:[#allocation7 + $0xa8] sm:$0xff]
        %v4138 = vld [vmem:[#allocation7 + $0xb0] sm:$0xff]
        %v4139 = vld [vmem:[#allocation7 + $0xb8] sm:$0xff]
        %v4140 = vld [vmem:[#allocation7 + $0xc0] sm:$0xff]
        %v4141 = vld [vmem:[#allocation7 + $0xc8] sm:$0xff]
        %v4142 = vld [vmem:[#allocation7 + $0xd0] sm:$0xff]
        %v4143 = vld [vmem:[#allocation7 + $0xd8] sm:$0xff]
        %v4144 = vld [vmem:[#allocation7 + $0xe0] sm:$0xff]
        %v4145 = vld [vmem:[#allocation7 + $0xe8] sm:$0xff]
        %v4146 = vld [vmem:[#allocation7 + $0xf0] sm:$0xff]
        %v4147 = vld [vmem:[#allocation7 + $0xf8] sm:$0xff]
        %v4148 = vld [vmem:[%s6] sm:$0xf]
        %v4150 = vlaneseq
        %v4151 = vshrl.u32 %v4150, 7
        %v4152 = vsub.s32 0, %v4151
        %v4153 = vrot.slane %v4148, %v4152
        %v4154 = vlaneseq
        %v4155 = vshrl.u32 %v4154, 7
        %v4156 = vsub.s32 1, %v4155
        %v4157 = vrot.slane %v4148, %v4156
        %v4158 = vlaneseq
        %v4159 = vshrl.u32 %v4158, 7
        %v4160 = vsub.s32 2, %v4159
        %v4161 = vrot.slane %v4148, %v4160
        %v4162 = vlaneseq
        %v4163 = vshrl.u32 %v4162, 7
        %v4164 = vsub.s32 3, %v4163
        %v4165 = vrot.slane %v4148, %v4164
        %v4202 = vunpack.c.l.b16 %v4116
        %v4203 = vunpack.c.h.b16 %v4116
        %v4204 = vunpack.c.l.b16 %v4117
        %v4205 = vunpack.c.h.b16 %v4117
        %v4206 = vunpack.c.l.b16 %v4118
        %v4207 = vunpack.c.h.b16 %v4118
        %v4208 = vunpack.c.l.b16 %v4119
        %v4209 = vunpack.c.h.b16 %v4119
        %v4210 = vunpack.c.l.b16 %v4120
        %v4211 = vunpack.c.h.b16 %v4120
        %v4212 = vunpack.c.l.b16 %v4121
        %v4213 = vunpack.c.h.b16 %v4121
        %v4214 = vunpack.c.l.b16 %v4122
        %v4215 = vunpack.c.h.b16 %v4122
        %v4216 = vunpack.c.l.b16 %v4123
        %v4217 = vunpack.c.h.b16 %v4123
        %v4218 = vunpack.c.l.b16 %v4124
        %v4219 = vunpack.c.h.b16 %v4124
        %v4220 = vunpack.c.l.b16 %v4125
        %v4221 = vunpack.c.h.b16 %v4125
        %v4222 = vunpack.c.l.b16 %v4126
        %v4223 = vunpack.c.h.b16 %v4126
        %v4224 = vunpack.c.l.b16 %v4127
        %v4225 = vunpack.c.h.b16 %v4127
        %v4226 = vunpack.c.l.b16 %v4128
        %v4227 = vunpack.c.h.b16 %v4128
        %v4228 = vunpack.c.l.b16 %v4129
        %v4229 = vunpack.c.h.b16 %v4129
        %v4230 = vunpack.c.l.b16 %v4130
        %v4231 = vunpack.c.h.b16 %v4130
        %v4232 = vunpack.c.l.b16 %v4131
        %v4233 = vunpack.c.h.b16 %v4131
        %v4234 = vunpack.c.l.b16 %v4132
        %v4235 = vunpack.c.h.b16 %v4132
        %v4236 = vunpack.c.l.b16 %v4133
        %v4237 = vunpack.c.h.b16 %v4133
        %v4238 = vunpack.c.l.b16 %v4134
        %v4239 = vunpack.c.h.b16 %v4134
        %v4240 = vunpack.c.l.b16 %v4135
        %v4241 = vunpack.c.h.b16 %v4135
        %v4242 = vunpack.c.l.b16 %v4136
        %v4243 = vunpack.c.h.b16 %v4136
        %v4244 = vunpack.c.l.b16 %v4137
        %v4245 = vunpack.c.h.b16 %v4137
        %v4246 = vunpack.c.l.b16 %v4138
        %v4247 = vunpack.c.h.b16 %v4138
        %v4248 = vunpack.c.l.b16 %v4139
        %v4249 = vunpack.c.h.b16 %v4139
        %v4250 = vunpack.c.l.b16 %v4140
        %v4251 = vunpack.c.h.b16 %v4140
        %v4252 = vunpack.c.l.b16 %v4141
        %v4253 = vunpack.c.h.b16 %v4141
        %v4254 = vunpack.c.l.b16 %v4142
        %v4255 = vunpack.c.h.b16 %v4142
        %v4256 = vunpack.c.l.b16 %v4143
        %v4257 = vunpack.c.h.b16 %v4143
        %v4258 = vunpack.c.l.b16 %v4144
        %v4259 = vunpack.c.h.b16 %v4144
        %v4260 = vunpack.c.l.b16 %v4145
        %v4261 = vunpack.c.h.b16 %v4145
        %v4262 = vunpack.c.l.b16 %v4146
        %v4263 = vunpack.c.h.b16 %v4146
        %v4264 = vunpack.c.l.b16 %v4147
        %v4265 = vunpack.c.h.b16 %v4147
        %v4266 = vpack.c.b16 %v4206, %v4202
        %v4267 = vpack.c.b16 %v4207, %v4203
        %v4268 = vpack.c.b16 %v4208, %v4204
        %v4269 = vpack.c.b16 %v4209, %v4205
        %v4270 = vpack.c.b16 %v4214, %v4210
        %v4271 = vpack.c.b16 %v4215, %v4211
        %v4272 = vpack.c.b16 %v4216, %v4212
        %v4273 = vpack.c.b16 %v4217, %v4213
        %v4274 = vpack.c.b16 %v4222, %v4218
        %v4275 = vpack.c.b16 %v4223, %v4219
        %v4276 = vpack.c.b16 %v4224, %v4220
        %v4277 = vpack.c.b16 %v4225, %v4221
        %v4278 = vpack.c.b16 %v4230, %v4226
        %v4279 = vpack.c.b16 %v4231, %v4227
        %v4280 = vpack.c.b16 %v4232, %v4228
        %v4281 = vpack.c.b16 %v4233, %v4229
        %v4282 = vpack.c.b16 %v4238, %v4234
        %v4283 = vpack.c.b16 %v4239, %v4235
        %v4284 = vpack.c.b16 %v4240, %v4236
        %v4285 = vpack.c.b16 %v4241, %v4237
        %v4286 = vpack.c.b16 %v4246, %v4242
        %v4287 = vpack.c.b16 %v4247, %v4243
        %v4288 = vpack.c.b16 %v4248, %v4244
        %v4289 = vpack.c.b16 %v4249, %v4245
        %v4290 = vpack.c.b16 %v4254, %v4250
        %v4291 = vpack.c.b16 %v4255, %v4251
        %v4292 = vpack.c.b16 %v4256, %v4252
        %v4293 = vpack.c.b16 %v4257, %v4253
        %v4294 = vpack.c.b16 %v4262, %v4258
        %v4295 = vpack.c.b16 %v4263, %v4259
        %v4296 = vpack.c.b16 %v4264, %v4260
        %v4297 = vpack.c.b16 %v4265, %v4261
        %4330 = vmatprep.subr.bf16.mxu0 %v4267
        %4331 = vmatpush1.bf16.msra.mxu0 %v4266
        %4332 = vmatprep.subr.bf16.mxu0 %v4271
        %4333 = vmatpush1.bf16.msra.mxu0 %v4270
        %4334 = vmatprep.subr.bf16.mxu0 %v4275
        %4335 = vmatpush1.bf16.msra.mxu0 %v4274
        %4336 = vmatprep.subr.bf16.mxu0 %v4279
        %4337 = vmatpush1.bf16.msra.mxu0 %v4278
        %4338 = vmatprep.subr.bf16.mxu0 %v4283
        %4339 = vmatpush1.bf16.msra.mxu0 %v4282
        %4340 = vmatprep.subr.bf16.mxu0 %v4287
        %4341 = vmatpush1.bf16.msra.mxu0 %v4286
        %4342 = vmatprep.subr.bf16.mxu0 %v4291
        %4343 = vmatpush1.bf16.msra.mxu0 %v4290
        %4344 = vmatprep.subr.bf16.mxu0 %v4295
        %4345 = vmatpush1.bf16.msra.mxu0 %v4294
        %4346 = vmatprep.subr.bf16.mxu0 0
        %4347 = vmatpush1.bf16.msra.mxu0 0
        %4348 = vmatprep.subr.bf16.mxu0 0
        %4349 = vmatpush1.bf16.msra.mxu0 0
        %4350 = vmatprep.subr.bf16.mxu0 0
        %4351 = vmatpush1.bf16.msra.mxu0 0
        %4352 = vmatprep.subr.bf16.mxu0 0
        %4353 = vmatpush1.bf16.msra.mxu0 0
        %4354 = vmatprep.subr.bf16.mxu0 0
        %4355 = vmatpush1.bf16.msra.mxu0 0
        %4356 = vmatprep.subr.bf16.mxu0 0
        %4357 = vmatpush1.bf16.msra.mxu0 0
        %4358 = vmatprep.subr.bf16.mxu0 0
        %4359 = vmatpush1.bf16.msra.mxu0 0
        %4360 = vmatprep.subr.bf16.mxu0 0
        %4361 = vmatpush1.bf16.msra.mxu0 0
        %4362 = vmatprep.mubr.bf16.mxu0 0
        %4363 = vmatmul.mubr.bf16.gmra.mrb[0].mxu0 %v3237
        %v4364 = vpop.f32.mrb[0].mxu0
        %v4365 = vadd.f32 %v4153, %v4364
        %v4366 = vpop.f32.mrb[0].mxu0
        %v4367 = vadd.f32 %v4157, %v4366
        %v4368 = vpop.f32.mrb[0].mxu0
        %v4369 = vpop.f32.mrb[0].mxu0
        %4370 = vdwg.mxu0
        %4371 = vmatprep.subr.bf16.mxu0 %v4269
        %4372 = vmatpush1.bf16.msra.mxu0 %v4268
        %4373 = vmatprep.subr.bf16.mxu0 %v4273
        %4374 = vmatpush1.bf16.msra.mxu0 %v4272
        %4375 = vmatprep.subr.bf16.mxu0 %v4277
        %4376 = vmatpush1.bf16.msra.mxu0 %v4276
        %4377 = vmatprep.subr.bf16.mxu0 %v4281
        %4378 = vmatpush1.bf16.msra.mxu0 %v4280
        %4379 = vmatprep.subr.bf16.mxu0 %v4285
        %4380 = vmatpush1.bf16.msra.mxu0 %v4284
        %4381 = vmatprep.subr.bf16.mxu0 %v4289
        %4382 = vmatpush1.bf16.msra.mxu0 %v4288
        %4383 = vmatprep.subr.bf16.mxu0 %v4293
        %4384 = vmatpush1.bf16.msra.mxu0 %v4292
        %4385 = vmatprep.subr.bf16.mxu0 %v4297
        %4386 = vmatpush1.bf16.msra.mxu0 %v4296
        %4387 = vmatprep.subr.bf16.mxu0 0
        %4388 = vmatpush1.bf16.msra.mxu0 0
        %4389 = vmatprep.subr.bf16.mxu0 0
        %4390 = vmatpush1.bf16.msra.mxu0 0
        %4391 = vmatprep.subr.bf16.mxu0 0
        %4392 = vmatpush1.bf16.msra.mxu0 0
        %4393 = vmatprep.subr.bf16.mxu0 0
        %4394 = vmatpush1.bf16.msra.mxu0 0
        %4395 = vmatprep.subr.bf16.mxu0 0
        %4396 = vmatpush1.bf16.msra.mxu0 0
        %4397 = vmatprep.subr.bf16.mxu0 0
        %4398 = vmatpush1.bf16.msra.mxu0 0
        %4399 = vmatprep.subr.bf16.mxu0 0
        %4400 = vmatpush1.bf16.msra.mxu0 0
        %4401 = vmatprep.subr.bf16.mxu0 0
        %4402 = vmatpush1.bf16.msra.mxu0 0
        %4403 = vmatprep.mubr.bf16.mxu0 0
        %4404 = vmatmul.mubr.bf16.gmra.mrb[0].mxu0 %v3237
        %v4405 = vpop.f32.mrb[0].mxu0
        %v4406 = vadd.f32 %v4161, %v4405
        %v4407 = vpop.f32.mrb[0].mxu0
        %v4408 = vadd.f32 %v4165, %v4407
        %v4409 = vpop.f32.mrb[0].mxu0
        %v4410 = vpop.f32.mrb[0].mxu0
        %4411 = vdwg.mxu0
        %v4412 = vadd.f32 %v4365, %v4069
        %v4413 = vadd.f32 %v4367, %v4071
        %v4414 = vadd.f32 %v4406, %v4110
        %v4415 = vadd.f32 %v4408, %v4112
        %v4416 = vxor.u32 %v4412, 2147483648
        %v4417 = vmul.f32 %v4416, 1.442695
        %v4418 = vpow.pop %v4417
        %v4419 = vadd.f32 %v4418, 1.0
        %v4420 = vrcp.pop %v4419
        %v4421 = vmul.f32 1.0, %v4420
        %v4422 = vxor.u32 %v4413, 2147483648
        %v4423 = vmul.f32 %v4422, 1.442695
        %v4424 = vpow.pop %v4423
        %v4425 = vadd.f32 %v4424, 1.0
        %v4426 = vrcp.pop %v4425
        %v4427 = vmul.f32 1.0, %v4426
        %v4428 = vtanh.pop %v4414
        %v4429 = vxor.u32 %v4415, 2147483648
        %v4430 = vmul.f32 %v4429, 1.442695
        %v4431 = vpow.pop %v4430
        %v4432 = vadd.f32 %v4431, 1.0
        %v4433 = vrcp.pop %v4432
        %v4434 = vmul.f32 1.0, %v4433
        %v4435 = vmul.f32 %v4427, %v3835
        %v4436 = vmul.f32 %v4421, %v4428
        %v4437 = vadd.f32 %v4435, %v4436
        %v4438 = vtanh.pop %v4437
        %v4439 = vmul.f32 %v4434, %v4438
        %v4440 = vpack.c.bf16 %v4439, %v4439
        %s4441 = scalar_lea.vmem %s365, 12
        %4442 = vst [vmem:[%s4441] sm:$0xf] %v4440
        %4443 = vst [vmem:[#allocation2] sm:$0xff] %v3236
        %4444 = vst [vmem:[#allocation3] sm:$0xff] %v3234
        %4445 = vst [vmem:[%s785] sm:$0xff] %v4439
        %4446 = vst [vmem:[%s788] sm:$0xff] %v4437
        %s4447 = smul.u32 4, %s22
        %p4448 = scmp.lt.s32.totalorder %s4447, 7
        %s4449 = scalar_select %p4448, %s4447, 7
        %s4450 = smul.addr %s4449, 4
        %s4451 = scalar_lea.vmem %s7, %s4450
        %s4452 = smul.u32 4, %s22
        %p4453 = scmp.lt.s32.totalorder %s4452, 7
        %s4454 = scalar_select %p4453, %s4452, 7
        %s4455 = smul.addr %s4454, 4
        %s4456 = scalar_lea.vmem %s8, %s4455
        // Predicated region
        $region65: #{_fused_forward.1} parent=47 // pred_check
          %p4457 = pneg %p192
        $region66: #{_fused_forward.1} parent=47 // pred_check_branch
          %4459 = sbr.rel (%p4457) target = $region68
        $region67: #{_fused_forward.1} parent=47 // pred_region
          %s4460 = smul.u32 4, %s22
        $region68: #{_fused_forward.1} parent=47 // pred_fallthru
          _
        // Predicated region
        $region69: #{_fused_forward.1} parent=47 // pred_check
          %p4461 = pneg %p218
        $region70: #{_fused_forward.1} parent=47 // pred_check_branch
          %4463 = sbr.rel (%p4461) target = $region72
        $region71: #{_fused_forward.1} parent=47 // pred_region
          %s4464 = smul.u32 4, %s22
        $region72: #{_fused_forward.1} parent=47 // pred_fallthru
          _
      $region48: #{_fused_forward.1} parent=5 // pred_fallthru
        _
      %p4465 = scmp.le.s32.totalorder 2, %s17
      // Predicated region
      $region73: #{_fused_forward.1} parent=5 // pred_check
        %p4466 = pneg %p4465
      $region74: #{_fused_forward.1} parent=5 // pred_check_branch
        %4468 = sbr.rel (%p4466) target = $region76
      $region75: #{_fused_forward.1} parent=5 // pred_region
        %s4469 = ssub.s32 %s17, 2
        // Predicated region
        $region77: #{_fused_forward.1} parent=75 // pred_check
          %p4470 = pneg %p198
        $region78: #{_fused_forward.1} parent=75 // pred_check_branch
          %4472 = sbr.rel (%p4470) target = $region80
        $region79: #{_fused_forward.1} parent=75 // pred_region
          %s4473 = smul.u32 4, %s23
          %p4474 = scmp.lt.s32.totalorder %s4473, 7
          %s4475 = scalar_select %p4474, %s4473, 7
          %s4476 = smul.addr %s4475, 4
          %s4477 = scalar_lea.vmem %s7, %s4476
        $region80: #{_fused_forward.1} parent=75 // pred_fallthru
          _
        // Predicated region
        $region81: #{_fused_forward.1} parent=75 // pred_check
          %p4478 = pneg %p224
        $region82: #{_fused_forward.1} parent=75 // pred_check_branch
          %4480 = sbr.rel (%p4478) target = $region84
        $region83: #{_fused_forward.1} parent=75 // pred_region
          %s4481 = smul.u32 4, %s23
          %p4482 = scmp.lt.s32.totalorder %s4481, 7
          %s4483 = scalar_select %p4482, %s4481, 7
          %s4484 = smul.addr %s4483, 4
          %s4485 = scalar_lea.vmem %s8, %s4484
        $region84: #{_fused_forward.1} parent=75 // pred_fallthru
          _
      $region76: #{_fused_forward.1} parent=5 // pred_fallthru
        _
    $region6: #{_fused_forward.1} parent=1 // loop_footer
      %s21 = sadd.s32 1, %s17
    $region7: #{_fused_forward.1} parent=1 // loop_footer_branch
      %16 = sbr.rel target = $region3
    $region8: #{_fused_forward.1} parent=1 // loop_exit
      _
    %4486 = vsyncpa [#allocation6], 1
    %s4487 = scalar_lea.sflag [#allocation6], 1
    %4488 = vsyncpa %s4487, 1
    %4489 = vsyncpa [#allocation8], 1

</llo_original>
